<compile_context>
chip_gen: v7x
topology: tpu7x:2x2x1
jax: 0.10.0
libtpu: 0.0.40
codegen_flags: <defaults>
</compile_context>

<pallas_src>
import functools

import jax
import jax.numpy as jnp
from jax.experimental import pallas as pl
from jax.experimental.pallas import tpu as pltpu


# ----------------------------------------------------------------------------
# Single fused kernel:
#   x_ref      : (B, T+K-1, C)  f32   time-major, 'same'-padded EEG          (VMEM)
#   wcomb_ref  : (K*C, H)       f32   wavelet (x) stem combined weight        (VMEM)
#   bstem_ref  : (1, H)         f32                                           (VMEM)
#   wproj_hbm  : (H, 1280)      bf16  dominant weight, left in HBM (pl.ANY)
#   bproj_ref  : (1, 1280)      f32                                           (VMEM)
#   wcls_hbm   : (1280, cls)    f32   classifier weight, left in HBM (pl.ANY)
#   bcls_ref   : (1, cls)       f32                                           (VMEM)
#   o_ref      : (B, cls)       f32
#   xc_ref     : (B*T, K*C)     f32   VMEM scratch (im2col)
#   wproj_vmem : (H, 1280)      bf16  VMEM landing buffer for wproj_hbm
#   wcls_vmem  : (1280, cls)    f32   VMEM landing buffer for wcls_hbm
#   dma_sems   : DMA semaphores (2,)
# ----------------------------------------------------------------------------
def fused_eeg_kernel(x_ref, wcomb_ref, bstem_ref, wproj_hbm, bproj_ref,
                     wcls_hbm, bcls_ref, o_ref,
                     xc_ref, wproj_vmem, wcls_vmem, dma_sems, *, K, T, inv_t):
    B = x_ref.shape[0]
    C = x_ref.shape[2]

    # 0) Kick off the weight DMAs immediately; w_proj is only needed at step 4 and w_cls at
    #    step 5, so both copies overlap with im2col + stem + pooling instead of serializing
    #    in front of the whole body (as whole-array VMEM in_specs would).
    wproj_cp = pltpu.make_async_copy(wproj_hbm, wproj_vmem, dma_sems.at[0])
    wcls_cp = pltpu.make_async_copy(wcls_hbm, wcls_vmem, dma_sems.at[1])
    wproj_cp.start()
    wcls_cp.start()

    # 1) im2col: xc[b*T + t, k*C + c] = x_pad[b, t+k, c].  K*B small static slice copies
    #    (K=8, B=2).  Note: the source sublane starts k=1..7 are NOT 8-aligned and the
    #    destination columns are 8-lane-wide slices of a 64-lane scratch; the compiler handles
    #    both (sublane rotates + masked stores).  At these sizes the cost is negligible; a
    #    roll/register-concat variant would remove it if this kernel is ever scaled up.
    for b in range(B):
        for k in range(K):
            xc_ref[b * T:(b + 1) * T, k * C:(k + 1) * C] = x_ref[b, k:k + T, :]

    # 2) wavelet FIR + transpose + 1x1 stem conv as ONE MXU matmul: (B*T, K*C) @ (K*C, H)
    xc = xc_ref[...]                                             # (B*T, K*C)
    h = jnp.dot(xc, wcomb_ref[...],
                preferred_element_type=jnp.float32) + bstem_ref[...]
    h = h * jax.nn.sigmoid(h)                                    # SiLU in f32 (VPU/EUP)

    # 3) global average pool over time -> (B, H)
    Hdim = h.shape[-1]
    feat = h.reshape(B, T, Hdim).sum(axis=1) * inv_t

    # 4) 1280-dim EfficientNet feature projection (bf16 weights, f32 accumulate) + SiLU
    wproj_cp.wait()                                              # copy hidden behind steps 1-3
    z = jnp.dot(feat.astype(wproj_vmem.dtype), wproj_vmem[...],
                preferred_element_type=jnp.float32) + bproj_ref[...]
    z = z * jax.nn.sigmoid(z)

    # 5) final Linear(1280, cls) classifier
    wcls_cp.wait()                                               # hidden behind steps 1-4
    o_ref[...] = jnp.dot(z, wcls_vmem[...],
                         preferred_element_type=jnp.float32) + bcls_ref[...]


# ----------------------------------------------------------------------------
# Wrapper: only a tiny transpose+pad of x (one XLA fusion) + ONE pallas_call.
# All weight preprocessing (w_comb folding, bf16 storage of w_proj) happens at init time.
# ----------------------------------------------------------------------------
def eeg_classification_forward(x, params):
    B, C, T = x.shape
    w_comb = params["w_comb"]                                    # (K*C, H), precomputed
    K = w_comb.shape[0] // C
    cls = params["w_cls"].shape[1]
    H, feat_dim = params["w_proj"].shape

    # 'same' padding, PyTorch convention for even K: left=(K-1)//2, right=K//2.
    pad_l = (K - 1) // 2
    pad_r = K // 2
    x_t = jnp.pad(jnp.transpose(x, (0, 2, 1)),                   # (B, T+K-1, C), time-major
                  ((0, 0), (pad_l, pad_r), (0, 0)))

    kernel = functools.partial(fused_eeg_kernel, K=K, T=T, inv_t=1.0 / T)
    vmem = pl.BlockSpec(memory_space=pltpu.MemorySpace.VMEM)
    hbm = pl.BlockSpec(memory_space=pl.ANY)                      # manual DMA inside kernel
    return pl.pallas_call(
        kernel,
        out_shape=jax.ShapeDtypeStruct((B, cls), jnp.float32),
        in_specs=[vmem, vmem, vmem, hbm, vmem, hbm, vmem],
        out_specs=vmem,
        scratch_shapes=[
            pltpu.VMEM((B * T, K * C), jnp.float32),             # im2col
            pltpu.VMEM((H, feat_dim), jnp.bfloat16),             # w_proj landing buffer
            pltpu.VMEM((feat_dim, cls), jnp.float32),            # w_cls landing buffer
            pltpu.SemaphoreType.DMA((2,)),
        ],
        compiler_params=pltpu.CompilerParams(vmem_limit_bytes=32 * 1024 * 1024),
    )(x_t, w_comb, params["b_stem"], params["w_proj"], params["b_proj"],
      params["w_cls"], params["b_cls"])


# ----------------------------------------------------------------------------
# Pure-JAX reference (same math, un-fused, f32 matmuls at HIGHEST precision except the
# projection which intentionally uses the deployed bf16 weight) for a correctness check.
# ----------------------------------------------------------------------------
def reference_forward(x, params):
    B, C, T = x.shape
    wavelet = params["wavelet"]
    K = wavelet.shape[1]
    pad_l = (K - 1) // 2
    pad_r = K // 2
    x_pad = jnp.pad(x, ((0, 0), (0, 0), (pad_l, pad_r)))
    xw = jnp.stack(
        [sum(wavelet[band, k] * x_pad[:, :, k:k + T] for k in range(K))
         for band in range(3)], axis=1)                          # (B, 3, C, T)
    x_btf = jnp.transpose(xw, (0, 3, 1, 2)).reshape(B, T, 3 * C)
    h = jnp.dot(x_btf, params["w_stem"],
                precision=jax.lax.Precision.HIGHEST) + params["b_stem"]
    h = h * jax.nn.sigmoid(h)
    feat = h.mean(axis=1)
    z = jnp.dot(feat.astype(jnp.bfloat16), params["w_proj"],
                preferred_element_type=jnp.float32) + params["b_proj"]
    z = z * jax.nn.sigmoid(z)
    return jnp.dot(z, params["w_cls"],
                   precision=jax.lax.Precision.HIGHEST) + params["b_cls"]


# ----------------------------------------------------------------------------
# Parameter construction (deterministic, in-script).  ALL one-time preprocessing (weight
# folding, bf16 cast of the dominant weight) happens HERE, never per forward call.
# ----------------------------------------------------------------------------
def make_wavelet_filters(K=8):
    # Three Morlet-like band filters (low / mid / high), deterministic.
    t = jnp.arange(K, dtype=jnp.float32) - (K - 1) / 2.0
    sigmas = jnp.array([3.0, 1.5, 0.8], dtype=jnp.float32)
    freqs = jnp.array([0.05, 0.15, 0.35], dtype=jnp.float32)
    env = jnp.exp(-0.5 * (t[None, :] / sigmas[:, None]) ** 2)
    carrier = jnp.cos(2.0 * jnp.pi * freqs[:, None] * t[None, :])
    filt = env * carrier
    filt = filt / jnp.sum(jnp.abs(filt), axis=1, keepdims=True)
    return filt.astype(jnp.float32)                              # (3, K)


def init_linear(key, fan_in, fan_out):
    kw, kb = jax.random.split(key)
    bound = 1.0 / jnp.sqrt(jnp.float32(fan_in))
    w = jax.random.uniform(kw, (fan_in, fan_out), jnp.float32, -bound, bound)
    b = jax.random.uniform(kb, (1, fan_out), jnp.float32, -bound, bound)
    return w, b


def make_params(key, chans, hidden, feat_dim, cls, k_taps):
    k1, k2, k3 = jax.random.split(key, 3)
    wavelet = make_wavelet_filters(k_taps)                       # (3, K)
    w_stem, b_stem = init_linear(k1, 3 * chans, hidden)
    w_proj, b_proj = init_linear(k2, hidden, feat_dim)
    w_cls, b_cls = init_linear(k3, feat_dim, cls)

    # Fold wavelet FIR + (B,3,C,T)->(B,T,3C) transpose + 1x1 stem conv (all linear) into one
    # weight, ONCE:  W_comb[k*C + c, h] = sum_band wavelet[band, k] * w_stem[band*C + c, h]
    w_comb = jnp.einsum("bk,bch->kch", wavelet,
                        w_stem.reshape(3, chans, hidden)).reshape(k_taps * chans, hidden)

    return dict(
        wavelet=wavelet, w_stem=w_stem,                          # reference path only
        w_comb=w_comb.astype(jnp.float32),
        b_stem=b_stem,
        w_proj=w_proj.astype(jnp.bfloat16),                      # stored bf16: halves HBM DMA
        b_proj=b_proj,
        w_cls=w_cls, b_cls=b_cls,
    )


if __name__ == "__main__":
    # small, module-consistent shapes (module defaults are chans=122, samples=1651, cls=39)
    B, CHANS, SAMPLES = 2, 8, 64
    HIDDEN, FEAT_DIM, CLS = 128, 1280, 8
    K_TAPS = 8

    key = jax.random.PRNGKey(0)
    kx, kp = jax.random.split(key)

    x = jax.random.normal(kx, (B, CHANS, SAMPLES), jnp.float32)
    params = make_params(kp, CHANS, HIDDEN, FEAT_DIM, CLS, K_TAPS)

    fwd = jax.jit(eeg_classification_forward)
    out = jax.block_until_ready(fwd(x, params))
    ref = jax.block_until_ready(reference_forward(x, params))

    assert out.shape == (B, CLS), out.shape
    assert bool(jnp.all(jnp.isfinite(out)))
    assert bool(jnp.allclose(out, ref, atol=1e-2, rtol=1e-2)), (out, ref)
    print("KERNEL_OK")
</pallas_src>

<mosaic_0001>
module attributes {stable_mosaic.version = 11 : i64} {
  func.func @fused_eeg_kernel(%arg0: memref<2x71x8xf32, #tpu.memory_space<vmem>>, %arg1: memref<64x128xf32, #tpu.memory_space<vmem>>, %arg2: memref<1x128xf32, #tpu.memory_space<vmem>>, %arg3: memref<128x1280xbf16, #tpu.memory_space<any>>, %arg4: memref<1x1280xf32, #tpu.memory_space<vmem>>, %arg5: memref<1280x8xf32, #tpu.memory_space<any>>, %arg6: memref<1x8xf32, #tpu.memory_space<vmem>>, %arg7: memref<2x8xf32, #tpu.memory_space<vmem>>, %arg8: memref<128x64xf32, #tpu.memory_space<vmem>>, %arg9: memref<128x1280xbf16, #tpu.memory_space<vmem>>, %arg10: memref<1280x8xf32, #tpu.memory_space<vmem>>, %arg11: memref<2x!tpu.dma_semaphore, #tpu.memory_space<semaphore_mem>>) attributes {dimension_semantics = [], scalar_prefetch = 0 : i64, scratch_operands = 4 : i64, tpu.core_type = #tpu.core_type<tc>} {
    %c0_i32 = arith.constant 0 : i32
    %0 = tpu.memref_slice %arg11[%c0_i32] : memref<2x!tpu.dma_semaphore, #tpu.memory_space<semaphore_mem>> -> memref<1x!tpu.dma_semaphore, #tpu.memory_space<semaphore_mem>>
    %1 = tpu.memref_squeeze %0 : memref<1x!tpu.dma_semaphore, #tpu.memory_space<semaphore_mem>> -> memref<!tpu.dma_semaphore, #tpu.memory_space<semaphore_mem>>
    tpu.enqueue_dma source(%arg3 : memref<128x1280xbf16, #tpu.memory_space<any>>) target(%arg9 : memref<128x1280xbf16, #tpu.memory_space<vmem>>) target_semaphore(%1 : memref<!tpu.dma_semaphore, #tpu.memory_space<semaphore_mem>>)
    %c1_i32 = arith.constant 1 : i32
    %2 = tpu.memref_slice %arg11[%c1_i32] : memref<2x!tpu.dma_semaphore, #tpu.memory_space<semaphore_mem>> -> memref<1x!tpu.dma_semaphore, #tpu.memory_space<semaphore_mem>>
    %3 = tpu.memref_squeeze %2 : memref<1x!tpu.dma_semaphore, #tpu.memory_space<semaphore_mem>> -> memref<!tpu.dma_semaphore, #tpu.memory_space<semaphore_mem>>
    tpu.enqueue_dma source(%arg5 : memref<1280x8xf32, #tpu.memory_space<any>>) target(%arg10 : memref<1280x8xf32, #tpu.memory_space<vmem>>) target_semaphore(%3 : memref<!tpu.dma_semaphore, #tpu.memory_space<semaphore_mem>>)
    %c0 = arith.constant 0 : index
    %c0_0 = arith.constant 0 : index
    %c0_1 = arith.constant 0 : index
    %4 = vector.load %arg0[%c0, %c0_0, %c0_1] : memref<2x71x8xf32, #tpu.memory_space<vmem>>, vector<1x64x8xf32>
    %5 = vector.shape_cast %4 : vector<1x64x8xf32> to vector<64x8xf32>
    %c0_2 = arith.constant 0 : index
    %c0_3 = arith.constant 0 : index
    %6 = vector.load %arg8[%c0_2, %c0_3] : memref<128x64xf32, #tpu.memory_space<vmem>>, vector<64x8xf32>
    tpu.vector_store %arg8[%c0_2, %c0_3], %5 {strides = array<i32>} : memref<128x64xf32, #tpu.memory_space<vmem>>, vector<64x8xf32>,
    %c0_4 = arith.constant 0 : index
    %c1 = arith.constant 1 : index
    %c0_5 = arith.constant 0 : index
    %7 = vector.load %arg0[%c0_4, %c1, %c0_5] : memref<2x71x8xf32, #tpu.memory_space<vmem>>, vector<1x64x8xf32>
    %8 = vector.shape_cast %7 : vector<1x64x8xf32> to vector<64x8xf32>
    %c0_6 = arith.constant 0 : index
    %c8 = arith.constant 8 : index
    %9 = vector.load %arg8[%c0_6, %c8] : memref<128x64xf32, #tpu.memory_space<vmem>>, vector<64x8xf32>
    tpu.vector_store %arg8[%c0_6, %c8], %8 {strides = array<i32>} : memref<128x64xf32, #tpu.memory_space<vmem>>, vector<64x8xf32>,
    %c0_7 = arith.constant 0 : index
    %c2 = arith.constant 2 : index
    %c0_8 = arith.constant 0 : index
    %10 = vector.load %arg0[%c0_7, %c2, %c0_8] : memref<2x71x8xf32, #tpu.memory_space<vmem>>, vector<1x64x8xf32>
    %11 = vector.shape_cast %10 : vector<1x64x8xf32> to vector<64x8xf32>
    %c0_9 = arith.constant 0 : index
    %c16 = arith.constant 16 : index
    %12 = vector.load %arg8[%c0_9, %c16] : memref<128x64xf32, #tpu.memory_space<vmem>>, vector<64x8xf32>
    tpu.vector_store %arg8[%c0_9, %c16], %11 {strides = array<i32>} : memref<128x64xf32, #tpu.memory_space<vmem>>, vector<64x8xf32>,
    %c0_10 = arith.constant 0 : index
    %c3 = arith.constant 3 : index
    %c0_11 = arith.constant 0 : index
    %13 = vector.load %arg0[%c0_10, %c3, %c0_11] : memref<2x71x8xf32, #tpu.memory_space<vmem>>, vector<1x64x8xf32>
    %14 = vector.shape_cast %13 : vector<1x64x8xf32> to vector<64x8xf32>
    %c0_12 = arith.constant 0 : index
    %c24 = arith.constant 24 : index
    %15 = vector.load %arg8[%c0_12, %c24] : memref<128x64xf32, #tpu.memory_space<vmem>>, vector<64x8xf32>
    tpu.vector_store %arg8[%c0_12, %c24], %14 {strides = array<i32>} : memref<128x64xf32, #tpu.memory_space<vmem>>, vector<64x8xf32>,
    %c0_13 = arith.constant 0 : index
    %c4 = arith.constant 4 : index
    %c0_14 = arith.constant 0 : index
    %16 = vector.load %arg0[%c0_13, %c4, %c0_14] : memref<2x71x8xf32, #tpu.memory_space<vmem>>, vector<1x64x8xf32>
    %17 = vector.shape_cast %16 : vector<1x64x8xf32> to vector<64x8xf32>
    %c0_15 = arith.constant 0 : index
    %c32 = arith.constant 32 : index
    %18 = vector.load %arg8[%c0_15, %c32] : memref<128x64xf32, #tpu.memory_space<vmem>>, vector<64x8xf32>
    tpu.vector_store %arg8[%c0_15, %c32], %17 {strides = array<i32>} : memref<128x64xf32, #tpu.memory_space<vmem>>, vector<64x8xf32>,
    %c0_16 = arith.constant 0 : index
    %c5 = arith.constant 5 : index
    %c0_17 = arith.constant 0 : index
    %19 = vector.load %arg0[%c0_16, %c5, %c0_17] : memref<2x71x8xf32, #tpu.memory_space<vmem>>, vector<1x64x8xf32>
    %20 = vector.shape_cast %19 : vector<1x64x8xf32> to vector<64x8xf32>
    %c0_18 = arith.constant 0 : index
    %c40 = arith.constant 40 : index
    %21 = vector.load %arg8[%c0_18, %c40] : memref<128x64xf32, #tpu.memory_space<vmem>>, vector<64x8xf32>
    tpu.vector_store %arg8[%c0_18, %c40], %20 {strides = array<i32>} : memref<128x64xf32, #tpu.memory_space<vmem>>, vector<64x8xf32>,
    %c0_19 = arith.constant 0 : index
    %c6 = arith.constant 6 : index
    %c0_20 = arith.constant 0 : index
    %22 = vector.load %arg0[%c0_19, %c6, %c0_20] : memref<2x71x8xf32, #tpu.memory_space<vmem>>, vector<1x64x8xf32>
    %23 = vector.shape_cast %22 : vector<1x64x8xf32> to vector<64x8xf32>
    %c0_21 = arith.constant 0 : index
    %c48 = arith.constant 48 : index
    %24 = vector.load %arg8[%c0_21, %c48] : memref<128x64xf32, #tpu.memory_space<vmem>>, vector<64x8xf32>
    tpu.vector_store %arg8[%c0_21, %c48], %23 {strides = array<i32>} : memref<128x64xf32, #tpu.memory_space<vmem>>, vector<64x8xf32>,
    %c0_22 = arith.constant 0 : index
    %c7 = arith.constant 7 : index
    %c0_23 = arith.constant 0 : index
    %25 = vector.load %arg0[%c0_22, %c7, %c0_23] : memref<2x71x8xf32, #tpu.memory_space<vmem>>, vector<1x64x8xf32>
    %26 = vector.shape_cast %25 : vector<1x64x8xf32> to vector<64x8xf32>
    %c0_24 = arith.constant 0 : index
    %c56 = arith.constant 56 : index
    %27 = vector.load %arg8[%c0_24, %c56] : memref<128x64xf32, #tpu.memory_space<vmem>>, vector<64x8xf32>
    tpu.vector_store %arg8[%c0_24, %c56], %26 {strides = array<i32>} : memref<128x64xf32, #tpu.memory_space<vmem>>, vector<64x8xf32>,
    %c1_25 = arith.constant 1 : index
    %c0_26 = arith.constant 0 : index
    %c0_27 = arith.constant 0 : index
    %28 = vector.load %arg0[%c1_25, %c0_26, %c0_27] : memref<2x71x8xf32, #tpu.memory_space<vmem>>, vector<1x64x8xf32>
    %29 = vector.shape_cast %28 : vector<1x64x8xf32> to vector<64x8xf32>
    %c64 = arith.constant 64 : index
    %c0_28 = arith.constant 0 : index
    %30 = vector.load %arg8[%c64, %c0_28] : memref<128x64xf32, #tpu.memory_space<vmem>>, vector<64x8xf32>
    tpu.vector_store %arg8[%c64, %c0_28], %29 {strides = array<i32>} : memref<128x64xf32, #tpu.memory_space<vmem>>, vector<64x8xf32>,
    %c1_29 = arith.constant 1 : index
    %c1_30 = arith.constant 1 : index
    %c0_31 = arith.constant 0 : index
    %31 = vector.load %arg0[%c1_29, %c1_30, %c0_31] : memref<2x71x8xf32, #tpu.memory_space<vmem>>, vector<1x64x8xf32>
    %32 = vector.shape_cast %31 : vector<1x64x8xf32> to vector<64x8xf32>
    %c64_32 = arith.constant 64 : index
    %c8_33 = arith.constant 8 : index
    %33 = vector.load %arg8[%c64_32, %c8_33] : memref<128x64xf32, #tpu.memory_space<vmem>>, vector<64x8xf32>
    tpu.vector_store %arg8[%c64_32, %c8_33], %32 {strides = array<i32>} : memref<128x64xf32, #tpu.memory_space<vmem>>, vector<64x8xf32>,
    %c1_34 = arith.constant 1 : index
    %c2_35 = arith.constant 2 : index
    %c0_36 = arith.constant 0 : index
    %34 = vector.load %arg0[%c1_34, %c2_35, %c0_36] : memref<2x71x8xf32, #tpu.memory_space<vmem>>, vector<1x64x8xf32>
    %35 = vector.shape_cast %34 : vector<1x64x8xf32> to vector<64x8xf32>
    %c64_37 = arith.constant 64 : index
    %c16_38 = arith.constant 16 : index
    %36 = vector.load %arg8[%c64_37, %c16_38] : memref<128x64xf32, #tpu.memory_space<vmem>>, vector<64x8xf32>
    tpu.vector_store %arg8[%c64_37, %c16_38], %35 {strides = array<i32>} : memref<128x64xf32, #tpu.memory_space<vmem>>, vector<64x8xf32>,
    %c1_39 = arith.constant 1 : index
    %c3_40 = arith.constant 3 : index
    %c0_41 = arith.constant 0 : index
    %37 = vector.load %arg0[%c1_39, %c3_40, %c0_41] : memref<2x71x8xf32, #tpu.memory_space<vmem>>, vector<1x64x8xf32>
    %38 = vector.shape_cast %37 : vector<1x64x8xf32> to vector<64x8xf32>
    %c64_42 = arith.constant 64 : index
    %c24_43 = arith.constant 24 : index
    %39 = vector.load %arg8[%c64_42, %c24_43] : memref<128x64xf32, #tpu.memory_space<vmem>>, vector<64x8xf32>
    tpu.vector_store %arg8[%c64_42, %c24_43], %38 {strides = array<i32>} : memref<128x64xf32, #tpu.memory_space<vmem>>, vector<64x8xf32>,
    %c1_44 = arith.constant 1 : index
    %c4_45 = arith.constant 4 : index
    %c0_46 = arith.constant 0 : index
    %40 = vector.load %arg0[%c1_44, %c4_45, %c0_46] : memref<2x71x8xf32, #tpu.memory_space<vmem>>, vector<1x64x8xf32>
    %41 = vector.shape_cast %40 : vector<1x64x8xf32> to vector<64x8xf32>
    %c64_47 = arith.constant 64 : index
    %c32_48 = arith.constant 32 : index
    %42 = vector.load %arg8[%c64_47, %c32_48] : memref<128x64xf32, #tpu.memory_space<vmem>>, vector<64x8xf32>
    tpu.vector_store %arg8[%c64_47, %c32_48], %41 {strides = array<i32>} : memref<128x64xf32, #tpu.memory_space<vmem>>, vector<64x8xf32>,
    %c1_49 = arith.constant 1 : index
    %c5_50 = arith.constant 5 : index
    %c0_51 = arith.constant 0 : index
    %43 = vector.load %arg0[%c1_49, %c5_50, %c0_51] : memref<2x71x8xf32, #tpu.memory_space<vmem>>, vector<1x64x8xf32>
    %44 = vector.shape_cast %43 : vector<1x64x8xf32> to vector<64x8xf32>
    %c64_52 = arith.constant 64 : index
    %c40_53 = arith.constant 40 : index
    %45 = vector.load %arg8[%c64_52, %c40_53] : memref<128x64xf32, #tpu.memory_space<vmem>>, vector<64x8xf32>
    tpu.vector_store %arg8[%c64_52, %c40_53], %44 {strides = array<i32>} : memref<128x64xf32, #tpu.memory_space<vmem>>, vector<64x8xf32>,
    %c1_54 = arith.constant 1 : index
    %c6_55 = arith.constant 6 : index
    %c0_56 = arith.constant 0 : index
    %46 = vector.load %arg0[%c1_54, %c6_55, %c0_56] : memref<2x71x8xf32, #tpu.memory_space<vmem>>, vector<1x64x8xf32>
    %47 = vector.shape_cast %46 : vector<1x64x8xf32> to vector<64x8xf32>
    %c64_57 = arith.constant 64 : index
    %c48_58 = arith.constant 48 : index
    %48 = vector.load %arg8[%c64_57, %c48_58] : memref<128x64xf32, #tpu.memory_space<vmem>>, vector<64x8xf32>
    tpu.vector_store %arg8[%c64_57, %c48_58], %47 {strides = array<i32>} : memref<128x64xf32, #tpu.memory_space<vmem>>, vector<64x8xf32>,
    %c1_59 = arith.constant 1 : index
    %c7_60 = arith.constant 7 : index
    %c0_61 = arith.constant 0 : index
    %49 = vector.load %arg0[%c1_59, %c7_60, %c0_61] : memref<2x71x8xf32, #tpu.memory_space<vmem>>, vector<1x64x8xf32>
    %50 = vector.shape_cast %49 : vector<1x64x8xf32> to vector<64x8xf32>
    %c64_62 = arith.constant 64 : index
    %c56_63 = arith.constant 56 : index
    %51 = vector.load %arg8[%c64_62, %c56_63] : memref<128x64xf32, #tpu.memory_space<vmem>>, vector<64x8xf32>
    tpu.vector_store %arg8[%c64_62, %c56_63], %50 {strides = array<i32>} : memref<128x64xf32, #tpu.memory_space<vmem>>, vector<64x8xf32>,
    %c0_64 = arith.constant 0 : index
    %c0_65 = arith.constant 0 : index
    %52 = vector.load %arg8[%c0_64, %c0_65] : memref<128x64xf32, #tpu.memory_space<vmem>>, vector<128x64xf32>
    %c0_66 = arith.constant 0 : index
    %c0_67 = arith.constant 0 : index
    %53 = vector.load %arg1[%c0_66, %c0_67] : memref<64x128xf32, #tpu.memory_space<vmem>>, vector<64x128xf32>
    %cst = arith.constant dense<0.000000e+00> : vector<128x128xf32>
    %54 = tpu.matmul %52, %53, %cst {dimension_numbers = #tpu.dot_dimension_numbers<[1], [0], [0], [1], [0, 0, 1, 1], [], []>} : vector<128x64xf32>, vector<64x128xf32>, vector<128x128xf32> -> vector<128x128xf32>
    %c0_68 = arith.constant 0 : index
    %c0_69 = arith.constant 0 : index
    %55 = vector.load %arg2[%c0_68, %c0_69] : memref<1x128xf32, #tpu.memory_space<vmem>>, vector<1x128xf32>
    %56 = vector.broadcast %55 : vector<1x128xf32> to vector<128x128xf32>
    %57 = arith.addf %54, %56 : vector<128x128xf32>
    %58 = arith.negf %57 : vector<128x128xf32>
    %59 = math.exp %58 : vector<128x128xf32>
    %cst_70 = arith.constant 1.000000e+00 : f32
    %60 = vector.broadcast %cst_70 : f32 to vector<128x128xf32>
    %61 = arith.addf %60, %59 : vector<128x128xf32>
    %62 = arith.divf %60, %61 : vector<128x128xf32>
    %63 = arith.mulf %57, %62 : vector<128x128xf32>
    %64 = vector.shape_cast %63 : vector<128x128xf32> to vector<2x64x128xf32>
    %cst_71 = arith.constant dense<0.000000e+00> : vector<2x128xf32>
    %65 = vector.multi_reduction <add>, %64, %cst_71 [1] : vector<2x64x128xf32> to vector<2x128xf32>
    %cst_72 = arith.constant 1.562500e-02 : f32
    %66 = vector.broadcast %cst_72 : f32 to vector<2x128xf32>
    %67 = arith.mulf %65, %66 : vector<2x128xf32>
    %c0_i32_73 = arith.constant 0 : i32
    %68 = tpu.memref_slice %arg11[%c0_i32_73] : memref<2x!tpu.dma_semaphore, #tpu.memory_space<semaphore_mem>> -> memref<1x!tpu.dma_semaphore, #tpu.memory_space<semaphore_mem>>
    %69 = tpu.memref_squeeze %68 : memref<1x!tpu.dma_semaphore, #tpu.memory_space<semaphore_mem>> -> memref<!tpu.dma_semaphore, #tpu.memory_space<semaphore_mem>>
    tpu.wait_dma2 semaphore(%69 : memref<!tpu.dma_semaphore, #tpu.memory_space<semaphore_mem>>) src(%arg3 : memref<128x1280xbf16, #tpu.memory_space<any>>) dst(%arg9 : memref<128x1280xbf16, #tpu.memory_space<vmem>>)
    %70 = arith.truncf %67 : vector<2x128xf32> to vector<2x128xbf16>
    %c0_74 = arith.constant 0 : index
    %c0_75 = arith.constant 0 : index
    %71 = vector.load %arg9[%c0_74, %c0_75] : memref<128x1280xbf16, #tpu.memory_space<vmem>>, vector<128x1280xbf16>
    %cst_76 = arith.constant dense<0.000000e+00> : vector<2x1280xf32>
    %72 = tpu.matmul %70, %71, %cst_76 {dimension_numbers = #tpu.dot_dimension_numbers<[1], [0], [0], [1], [0, 0, 1, 1], [], []>} : vector<2x128xbf16>, vector<128x1280xbf16>, vector<2x1280xf32> -> vector<2x1280xf32>
    %c0_77 = arith.constant 0 : index
    %c0_78 = arith.constant 0 : index
    %73 = vector.load %arg4[%c0_77, %c0_78] : memref<1x1280xf32, #tpu.memory_space<vmem>>, vector<1x1280xf32>
    %74 = vector.broadcast %73 : vector<1x1280xf32> to vector<2x1280xf32>
    %75 = arith.addf %72, %74 : vector<2x1280xf32>
    %76 = arith.negf %75 : vector<2x1280xf32>
    %77 = math.exp %76 : vector<2x1280xf32>
    %cst_79 = arith.constant 1.000000e+00 : f32
    %78 = vector.broadcast %cst_79 : f32 to vector<2x1280xf32>
    %79 = arith.addf %78, %77 : vector<2x1280xf32>
    %80 = arith.divf %78, %79 : vector<2x1280xf32>
    %81 = arith.mulf %75, %80 : vector<2x1280xf32>
    %c1_i32_80 = arith.constant 1 : i32
    %82 = tpu.memref_slice %arg11[%c1_i32_80] : memref<2x!tpu.dma_semaphore, #tpu.memory_space<semaphore_mem>> -> memref<1x!tpu.dma_semaphore, #tpu.memory_space<semaphore_mem>>
    %83 = tpu.memref_squeeze %82 : memref<1x!tpu.dma_semaphore, #tpu.memory_space<semaphore_mem>> -> memref<!tpu.dma_semaphore, #tpu.memory_space<semaphore_mem>>
    tpu.wait_dma2 semaphore(%83 : memref<!tpu.dma_semaphore, #tpu.memory_space<semaphore_mem>>) src(%arg5 : memref<1280x8xf32, #tpu.memory_space<any>>) dst(%arg10 : memref<1280x8xf32, #tpu.memory_space<vmem>>)
    %c0_81 = arith.constant 0 : index
    %c0_82 = arith.constant 0 : index
    %84 = vector.load %arg10[%c0_81, %c0_82] : memref<1280x8xf32, #tpu.memory_space<vmem>>, vector<1280x8xf32>
    %cst_83 = arith.constant dense<0.000000e+00> : vector<2x8xf32>
    %85 = tpu.matmul %81, %84, %cst_83 {dimension_numbers = #tpu.dot_dimension_numbers<[1], [0], [0], [1], [0, 0, 1, 1], [], []>} : vector<2x1280xf32>, vector<1280x8xf32>, vector<2x8xf32> -> vector<2x8xf32>
    %c0_84 = arith.constant 0 : index
    %c0_85 = arith.constant 0 : index
    %86 = vector.load %arg6[%c0_84, %c0_85] : memref<1x8xf32, #tpu.memory_space<vmem>>, vector<1x8xf32>
    %87 = vector.broadcast %86 : vector<1x8xf32> to vector<2x8xf32>
    %88 = arith.addf %85, %87 : vector<2x8xf32>
    %c0_86 = arith.constant 0 : index
    %c0_87 = arith.constant 0 : index
    %89 = vector.load %arg7[%c0_86, %c0_87] : memref<2x8xf32, #tpu.memory_space<vmem>>, vector<2x8xf32>
    tpu.vector_store %arg7[%c0_86, %c0_87], %88 {strides = array<i32>} : memref<2x8xf32, #tpu.memory_space<vmem>>, vector<2x8xf32>,
    return
  }
}

</mosaic_0001>

<llo_original>
// kernel: eeg_classification_forward.1
$region0: #{eeg_classification_forward.1}
  #allocation0 [shape = 'u32[]', space=smem, size = 0x4, offset = 0x4, fixed_abs, tag = 'smem constant byte address 0x4 - core index']
  #allocation1 [shape = 'u32[144,128]{1,0:T(1,128)}', space=vmem, size = 0x12000, scoped, tag = 'internal scratch']
  #allocation2 [shape = 'f32[128,64]{1,0:T(8,128)}', space=vmem, size = 0x10000, scoped, tag = 'scratch operand']
  #allocation3 [shape = 'bf16[128,1280]{1,0:T(16,128)(2,1)}', space=vmem, size = 0x50000, scoped, tag = 'scratch operand']
  #allocation4 [shape = 'f32[1280,8]{1,0:T(8,128)}', space=vmem, size = 0xa0000, scoped, tag = 'scratch operand']
  #allocation5 [shape = 's32[2]{0}', space=sflag, size = 0x8, scoped, tag = 'scratch operand']
  #allocation8 [shape = 's32[]', space=sflag, size = 0x4, offset = 0, fixed_abs, tag = 'sflag constant byte address 0x0 - dummy sync flag']
  #allocation9 [shape = 's32[]', space=sflag, size = 0x4, offset = 0, fixed_abs, tag = 'sflag constant byte address 0x0 - dummy sync flag']
  %s0 = inlined_call_operand.vmem [shape: f32[2,71,8], index: 0, kind: input, shape index: {}]
  %s1 = inlined_call_operand.vmem [shape: f32[64,128], index: 1, kind: input, shape index: {}]
  %s2 = inlined_call_operand.vmem [shape: f32[1,128], index: 2, kind: input, shape index: {}]
  %s3 = inlined_call_operand.vmem [shape: bf16[128,1280], index: 3, kind: input, shape index: {}]
  %s4 = inlined_call_operand.vmem [shape: f32[1,1280], index: 4, kind: input, shape index: {}]
  %s5 = inlined_call_operand.vmem [shape: f32[1280,8], index: 5, kind: input, shape index: {}]
  %s6 = inlined_call_operand.vmem [shape: f32[1,8], index: 6, kind: input, shape index: {}]
  %s7 = inlined_call_operand.hbm [shape: f32[2,8], index: 7, kind: output, shape index: {}]
  %s8 = sld [smem:[#allocation0]]
  $region101: #{eeg_classification_forward.1} parent=0
    _
  %s10 = ssub.s32 1, %s8
  %s11 = scalar_select 0, %s10, %s8
  $region1: #{eeg_classification_forward.1} parent=0
    #allocation6 [shape = 'u8[1024]{0}', space=vmem, size = 0x400, scoped, tag = 'output window, operand 0, single buffered']
    #allocation7 [shape = 's32[1]{0}', space=sflag, size = 0x4, scoped, tag = 'scoped memory for eeg_classification_forward.1']
    %12 = vsyncpa [#allocation7], 0
    // Predicated region
    $region2: #{eeg_classification_forward.1} parent=1 // pred_check
      _
    $region3: #{eeg_classification_forward.1} parent=1 // pred_check_branch
      %14 = sbr.rel (0) target = $region5
    $region4: #{eeg_classification_forward.1} parent=1 // pred_region
      _
    $region5: #{eeg_classification_forward.1} parent=1 // pred_fallthru
      _
    // Predicated region
    $region6: #{eeg_classification_forward.1} parent=1 // pred_check
      _
    $region7: #{eeg_classification_forward.1} parent=1 // pred_check_branch
      %16 = sbr.rel (0) target = $region9
    $region8: #{eeg_classification_forward.1} parent=1 // pred_region
      _
    $region9: #{eeg_classification_forward.1} parent=1 // pred_fallthru
      _
    // Predicated region
    $region10: #{eeg_classification_forward.1} parent=1 // pred_check
      _
    $region11: #{eeg_classification_forward.1} parent=1 // pred_check_branch
      %18 = sbr.rel (0) target = $region13
    $region12: #{eeg_classification_forward.1} parent=1 // pred_region
      _
    $region13: #{eeg_classification_forward.1} parent=1 // pred_fallthru
      _
    // Predicated region
    $region14: #{eeg_classification_forward.1} parent=1 // pred_check
      _
    $region15: #{eeg_classification_forward.1} parent=1 // pred_check_branch
      %20 = sbr.rel (0) target = $region17
    $region16: #{eeg_classification_forward.1} parent=1 // pred_region
      _
    $region17: #{eeg_classification_forward.1} parent=1 // pred_fallthru
      _
    // Predicated region
    $region18: #{eeg_classification_forward.1} parent=1 // pred_check
      _
    $region19: #{eeg_classification_forward.1} parent=1 // pred_check_branch
      %22 = sbr.rel (0) target = $region21
    $region20: #{eeg_classification_forward.1} parent=1 // pred_region
      _
    $region21: #{eeg_classification_forward.1} parent=1 // pred_fallthru
      _
    %p25 = scmp.lt.u32.totalorder 4, 8
    %p26 = pneg %p25
    // Predicated region
    $region22: #{eeg_classification_forward.1} parent=1 // pred_check
      _
    $region23: #{eeg_classification_forward.1} parent=1 // pred_check_branch
      %28 = sbr.rel (%p25) target = $region25
    $region24: #{eeg_classification_forward.1} parent=1 // pred_region
      %s361 = sand.u32 4, 7
      %p362 = scmp.eq.s32.totalorder %s361, 0
      %p363 = pneg %p362
      // Predicated region
      $region37: #{eeg_classification_forward.1} parent=24 // pred_check
        _
      $region38: #{eeg_classification_forward.1} parent=24 // pred_check_branch
        %365 = sbr.rel (%p362) target = $region40
      $region39: #{eeg_classification_forward.1} parent=24 // pred_region
        %s366 = sand.u32 4, 7
        %s367 = ssub.s32 4, %s366
        %s368 = scalar_lea.vmem %s3, %s367
        %s369 = ssub.s32 4, %s366
        %s370 = scalar_lea.vmem [#allocation3], %s369
        loop: start=0, step=1, limit=1
        $region41: #{eeg_classification_forward.1} parent=39 // loop_pre_header
          _
        $region42: #{eeg_classification_forward.1} parent=39 // loop_header
          %s372 = sphi 0, %s376
          %p373 = scmp.ge.s32.totalorder %s372, 1
          %s377 = sphi %s3, %s3
          %s378 = sphi [#allocation3], [#allocation3]
        $region43: #{eeg_classification_forward.1} parent=39 // loop_header_branch
          %375 = sbr.rel (%p373) target = $region47
        $region44: #{eeg_classification_forward.1} parent=39 // loop_body
          _
        $region45: #{eeg_classification_forward.1} parent=39 // loop_footer
          %s376 = sadd.s32 1, %s372
        $region46: #{eeg_classification_forward.1} parent=39 // loop_footer_branch
          %371 = sbr.rel target = $region42
        $region47: #{eeg_classification_forward.1} parent=39 // loop_exit
          _
        %s379 = sshllo.u32 0, %s366
        loop: start=0, step=1, limit=1
        $region48: #{eeg_classification_forward.1} parent=39 // loop_pre_header
          _
        $region49: #{eeg_classification_forward.1} parent=39 // loop_header
          %s381 = sphi 0, %s385
          %p382 = scmp.ge.s32.totalorder %s381, 1
          %s386 = sphi %s368, %s368
          %s387 = sphi %s370, %s370
        $region50: #{eeg_classification_forward.1} parent=39 // loop_header_branch
          %384 = sbr.rel (%p382) target = $region54
        $region51: #{eeg_classification_forward.1} parent=39 // loop_body
          %v388 = vld [vmem:[%s386] sm:%s379]
          %389 = vst [vmem:[%s387] sm:%s379] %v388
          %v390 = vld [vmem:[%s386 + $0x28] sm:%s379]
          %391 = vst [vmem:[%s387 + $0x4] sm:%s379] %v390
          %v392 = vld [vmem:[%s386 + $0x4] sm:%s379]
          %393 = vst [vmem:[%s387 + $0x8] sm:%s379] %v392
          %v394 = vld [vmem:[%s386 + $0x2c] sm:%s379]
          %395 = vst [vmem:[%s387 + $0xc] sm:%s379] %v394
          %v396 = vld [vmem:[%s386 + $0x8] sm:%s379]
          %397 = vst [vmem:[%s387 + $0x10] sm:%s379] %v396
          %v398 = vld [vmem:[%s386 + $0x30] sm:%s379]
          %399 = vst [vmem:[%s387 + $0x14] sm:%s379] %v398
          %v400 = vld [vmem:[%s386 + $0xc] sm:%s379]
          %401 = vst [vmem:[%s387 + $0x18] sm:%s379] %v400
          %v402 = vld [vmem:[%s386 + $0x34] sm:%s379]
          %403 = vst [vmem:[%s387 + $0x1c] sm:%s379] %v402
          %v404 = vld [vmem:[%s386 + $0x10] sm:%s379]
          %405 = vst [vmem:[%s387 + $0x20] sm:%s379] %v404
          %v406 = vld [vmem:[%s386 + $0x38] sm:%s379]
          %407 = vst [vmem:[%s387 + $0x24] sm:%s379] %v406
          %v408 = vld [vmem:[%s386 + $0x14] sm:%s379]
          %409 = vst [vmem:[%s387 + $0x28] sm:%s379] %v408
          %v410 = vld [vmem:[%s386 + $0x3c] sm:%s379]
          %411 = vst [vmem:[%s387 + $0x2c] sm:%s379] %v410
          %v412 = vld [vmem:[%s386 + $0x18] sm:%s379]
          %413 = vst [vmem:[%s387 + $0x30] sm:%s379] %v412
          %v414 = vld [vmem:[%s386 + $0x40] sm:%s379]
          %415 = vst [vmem:[%s387 + $0x34] sm:%s379] %v414
          %v416 = vld [vmem:[%s386 + $0x1c] sm:%s379]
          %417 = vst [vmem:[%s387 + $0x38] sm:%s379] %v416
          %v418 = vld [vmem:[%s386 + $0x44] sm:%s379]
          %419 = vst [vmem:[%s387 + $0x3c] sm:%s379] %v418
          %v420 = vld [vmem:[%s386 + $0x20] sm:%s379]
          %421 = vst [vmem:[%s387 + $0x40] sm:%s379] %v420
          %v422 = vld [vmem:[%s386 + $0x48] sm:%s379]
          %423 = vst [vmem:[%s387 + $0x44] sm:%s379] %v422
          %v424 = vld [vmem:[%s386 + $0x24] sm:%s379]
          %425 = vst [vmem:[%s387 + $0x48] sm:%s379] %v424
          %v426 = vld [vmem:[%s386 + $0x4c] sm:%s379]
          %427 = vst [vmem:[%s387 + $0x4c] sm:%s379] %v426
          %v428 = vld [vmem:[%s386 + $0x50] sm:%s379]
          %429 = vst [vmem:[%s387 + $0x50] sm:%s379] %v428
          %v430 = vld [vmem:[%s386 + $0x78] sm:%s379]
          %431 = vst [vmem:[%s387 + $0x54] sm:%s379] %v430
          %v432 = vld [vmem:[%s386 + $0x54] sm:%s379]
          %433 = vst [vmem:[%s387 + $0x58] sm:%s379] %v432
          %v434 = vld [vmem:[%s386 + $0x7c] sm:%s379]
          %435 = vst [vmem:[%s387 + $0x5c] sm:%s379] %v434
          %v436 = vld [vmem:[%s386 + $0x58] sm:%s379]
          %437 = vst [vmem:[%s387 + $0x60] sm:%s379] %v436
          %v438 = vld [vmem:[%s386 + $0x80] sm:%s379]
          %439 = vst [vmem:[%s387 + $0x64] sm:%s379] %v438
          %v440 = vld [vmem:[%s386 + $0x5c] sm:%s379]
          %441 = vst [vmem:[%s387 + $0x68] sm:%s379] %v440
          %v442 = vld [vmem:[%s386 + $0x84] sm:%s379]
          %443 = vst [vmem:[%s387 + $0x6c] sm:%s379] %v442
          %v444 = vld [vmem:[%s386 + $0x60] sm:%s379]
          %445 = vst [vmem:[%s387 + $0x70] sm:%s379] %v444
          %v446 = vld [vmem:[%s386 + $0x88] sm:%s379]
          %447 = vst [vmem:[%s387 + $0x74] sm:%s379] %v446
          %v448 = vld [vmem:[%s386 + $0x64] sm:%s379]
          %449 = vst [vmem:[%s387 + $0x78] sm:%s379] %v448
          %v450 = vld [vmem:[%s386 + $0x8c] sm:%s379]
          %451 = vst [vmem:[%s387 + $0x7c] sm:%s379] %v450
          %v452 = vld [vmem:[%s386 + $0x68] sm:%s379]
          %453 = vst [vmem:[%s387 + $0x80] sm:%s379] %v452
          %v454 = vld [vmem:[%s386 + $0x90] sm:%s379]
          %455 = vst [vmem:[%s387 + $0x84] sm:%s379] %v454
          %v456 = vld [vmem:[%s386 + $0x6c] sm:%s379]
          %457 = vst [vmem:[%s387 + $0x88] sm:%s379] %v456
          %v458 = vld [vmem:[%s386 + $0x94] sm:%s379]
          %459 = vst [vmem:[%s387 + $0x8c] sm:%s379] %v458
          %v460 = vld [vmem:[%s386 + $0x70] sm:%s379]
          %461 = vst [vmem:[%s387 + $0x90] sm:%s379] %v460
          %v462 = vld [vmem:[%s386 + $0x98] sm:%s379]
          %463 = vst [vmem:[%s387 + $0x94] sm:%s379] %v462
          %v464 = vld [vmem:[%s386 + $0x74] sm:%s379]
          %465 = vst [vmem:[%s387 + $0x98] sm:%s379] %v464
          %v466 = vld [vmem:[%s386 + $0x9c] sm:%s379]
          %467 = vst [vmem:[%s387 + $0x9c] sm:%s379] %v466
          %v468 = vld [vmem:[%s386 + $0xa0] sm:%s379]
          %469 = vst [vmem:[%s387 + $0xa0] sm:%s379] %v468
          %v470 = vld [vmem:[%s386 + $0xc8] sm:%s379]
          %471 = vst [vmem:[%s387 + $0xa4] sm:%s379] %v470
          %v472 = vld [vmem:[%s386 + $0xa4] sm:%s379]
          %473 = vst [vmem:[%s387 + $0xa8] sm:%s379] %v472
          %v474 = vld [vmem:[%s386 + $0xcc] sm:%s379]
          %475 = vst [vmem:[%s387 + $0xac] sm:%s379] %v474
          %v476 = vld [vmem:[%s386 + $0xa8] sm:%s379]
          %477 = vst [vmem:[%s387 + $0xb0] sm:%s379] %v476
          %v478 = vld [vmem:[%s386 + $0xd0] sm:%s379]
          %479 = vst [vmem:[%s387 + $0xb4] sm:%s379] %v478
          %v480 = vld [vmem:[%s386 + $0xac] sm:%s379]
          %481 = vst [vmem:[%s387 + $0xb8] sm:%s379] %v480
          %v482 = vld [vmem:[%s386 + $0xd4] sm:%s379]
          %483 = vst [vmem:[%s387 + $0xbc] sm:%s379] %v482
          %v484 = vld [vmem:[%s386 + $0xb0] sm:%s379]
          %485 = vst [vmem:[%s387 + $0xc0] sm:%s379] %v484
          %v486 = vld [vmem:[%s386 + $0xd8] sm:%s379]
          %487 = vst [vmem:[%s387 + $0xc4] sm:%s379] %v486
          %v488 = vld [vmem:[%s386 + $0xb4] sm:%s379]
          %489 = vst [vmem:[%s387 + $0xc8] sm:%s379] %v488
          %v490 = vld [vmem:[%s386 + $0xdc] sm:%s379]
          %491 = vst [vmem:[%s387 + $0xcc] sm:%s379] %v490
          %v492 = vld [vmem:[%s386 + $0xb8] sm:%s379]
          %493 = vst [vmem:[%s387 + $0xd0] sm:%s379] %v492
          %v494 = vld [vmem:[%s386 + $0xe0] sm:%s379]
          %495 = vst [vmem:[%s387 + $0xd4] sm:%s379] %v494
          %v496 = vld [vmem:[%s386 + $0xbc] sm:%s379]
          %497 = vst [vmem:[%s387 + $0xd8] sm:%s379] %v496
          %v498 = vld [vmem:[%s386 + $0xe4] sm:%s379]
          %499 = vst [vmem:[%s387 + $0xdc] sm:%s379] %v498
          %v500 = vld [vmem:[%s386 + $0xc0] sm:%s379]
          %501 = vst [vmem:[%s387 + $0xe0] sm:%s379] %v500
          %v502 = vld [vmem:[%s386 + $0xe8] sm:%s379]
          %503 = vst [vmem:[%s387 + $0xe4] sm:%s379] %v502
          %v504 = vld [vmem:[%s386 + $0xc4] sm:%s379]
          %505 = vst [vmem:[%s387 + $0xe8] sm:%s379] %v504
          %v506 = vld [vmem:[%s386 + $0xec] sm:%s379]
          %507 = vst [vmem:[%s387 + $0xec] sm:%s379] %v506
          %v508 = vld [vmem:[%s386 + $0xf0] sm:%s379]
          %509 = vst [vmem:[%s387 + $0xf0] sm:%s379] %v508
          %v510 = vld [vmem:[%s386 + $0x118] sm:%s379]
          %511 = vst [vmem:[%s387 + $0xf4] sm:%s379] %v510
          %v512 = vld [vmem:[%s386 + $0xf4] sm:%s379]
          %513 = vst [vmem:[%s387 + $0xf8] sm:%s379] %v512
          %v514 = vld [vmem:[%s386 + $0x11c] sm:%s379]
          %515 = vst [vmem:[%s387 + $0xfc] sm:%s379] %v514
          %v516 = vld [vmem:[%s386 + $0xf8] sm:%s379]
          %517 = vst [vmem:[%s387 + $0x100] sm:%s379] %v516
          %v518 = vld [vmem:[%s386 + $0x120] sm:%s379]
          %519 = vst [vmem:[%s387 + $0x104] sm:%s379] %v518
          %v520 = vld [vmem:[%s386 + $0xfc] sm:%s379]
          %521 = vst [vmem:[%s387 + $0x108] sm:%s379] %v520
          %v522 = vld [vmem:[%s386 + $0x124] sm:%s379]
          %523 = vst [vmem:[%s387 + $0x10c] sm:%s379] %v522
          %v524 = vld [vmem:[%s386 + $0x100] sm:%s379]
          %525 = vst [vmem:[%s387 + $0x110] sm:%s379] %v524
          %v526 = vld [vmem:[%s386 + $0x128] sm:%s379]
          %527 = vst [vmem:[%s387 + $0x114] sm:%s379] %v526
          %v528 = vld [vmem:[%s386 + $0x104] sm:%s379]
          %529 = vst [vmem:[%s387 + $0x118] sm:%s379] %v528
          %v530 = vld [vmem:[%s386 + $0x12c] sm:%s379]
          %531 = vst [vmem:[%s387 + $0x11c] sm:%s379] %v530
          %v532 = vld [vmem:[%s386 + $0x108] sm:%s379]
          %533 = vst [vmem:[%s387 + $0x120] sm:%s379] %v532
          %v534 = vld [vmem:[%s386 + $0x130] sm:%s379]
          %535 = vst [vmem:[%s387 + $0x124] sm:%s379] %v534
          %v536 = vld [vmem:[%s386 + $0x10c] sm:%s379]
          %537 = vst [vmem:[%s387 + $0x128] sm:%s379] %v536
          %v538 = vld [vmem:[%s386 + $0x134] sm:%s379]
          %539 = vst [vmem:[%s387 + $0x12c] sm:%s379] %v538
          %v540 = vld [vmem:[%s386 + $0x110] sm:%s379]
          %541 = vst [vmem:[%s387 + $0x130] sm:%s379] %v540
          %v542 = vld [vmem:[%s386 + $0x138] sm:%s379]
          %543 = vst [vmem:[%s387 + $0x134] sm:%s379] %v542
          %v544 = vld [vmem:[%s386 + $0x114] sm:%s379]
          %545 = vst [vmem:[%s387 + $0x138] sm:%s379] %v544
          %v546 = vld [vmem:[%s386 + $0x13c] sm:%s379]
          %547 = vst [vmem:[%s387 + $0x13c] sm:%s379] %v546
          %v548 = vld [vmem:[%s386 + $0x140] sm:%s379]
          %549 = vst [vmem:[%s387 + $0x140] sm:%s379] %v548
          %v550 = vld [vmem:[%s386 + $0x168] sm:%s379]
          %551 = vst [vmem:[%s387 + $0x144] sm:%s379] %v550
          %v552 = vld [vmem:[%s386 + $0x144] sm:%s379]
          %553 = vst [vmem:[%s387 + $0x148] sm:%s379] %v552
          %v554 = vld [vmem:[%s386 + $0x16c] sm:%s379]
          %555 = vst [vmem:[%s387 + $0x14c] sm:%s379] %v554
          %v556 = vld [vmem:[%s386 + $0x148] sm:%s379]
          %557 = vst [vmem:[%s387 + $0x150] sm:%s379] %v556
          %v558 = vld [vmem:[%s386 + $0x170] sm:%s379]
          %559 = vst [vmem:[%s387 + $0x154] sm:%s379] %v558
          %v560 = vld [vmem:[%s386 + $0x14c] sm:%s379]
          %561 = vst [vmem:[%s387 + $0x158] sm:%s379] %v560
          %v562 = vld [vmem:[%s386 + $0x174] sm:%s379]
          %563 = vst [vmem:[%s387 + $0x15c] sm:%s379] %v562
          %v564 = vld [vmem:[%s386 + $0x150] sm:%s379]
          %565 = vst [vmem:[%s387 + $0x160] sm:%s379] %v564
          %v566 = vld [vmem:[%s386 + $0x178] sm:%s379]
          %567 = vst [vmem:[%s387 + $0x164] sm:%s379] %v566
          %v568 = vld [vmem:[%s386 + $0x154] sm:%s379]
          %569 = vst [vmem:[%s387 + $0x168] sm:%s379] %v568
          %v570 = vld [vmem:[%s386 + $0x17c] sm:%s379]
          %571 = vst [vmem:[%s387 + $0x16c] sm:%s379] %v570
          %v572 = vld [vmem:[%s386 + $0x158] sm:%s379]
          %573 = vst [vmem:[%s387 + $0x170] sm:%s379] %v572
          %v574 = vld [vmem:[%s386 + $0x180] sm:%s379]
          %575 = vst [vmem:[%s387 + $0x174] sm:%s379] %v574
          %v576 = vld [vmem:[%s386 + $0x15c] sm:%s379]
          %577 = vst [vmem:[%s387 + $0x178] sm:%s379] %v576
          %v578 = vld [vmem:[%s386 + $0x184] sm:%s379]
          %579 = vst [vmem:[%s387 + $0x17c] sm:%s379] %v578
          %v580 = vld [vmem:[%s386 + $0x160] sm:%s379]
          %581 = vst [vmem:[%s387 + $0x180] sm:%s379] %v580
          %v582 = vld [vmem:[%s386 + $0x188] sm:%s379]
          %583 = vst [vmem:[%s387 + $0x184] sm:%s379] %v582
          %v584 = vld [vmem:[%s386 + $0x164] sm:%s379]
          %585 = vst [vmem:[%s387 + $0x188] sm:%s379] %v584
          %v586 = vld [vmem:[%s386 + $0x18c] sm:%s379]
          %587 = vst [vmem:[%s387 + $0x18c] sm:%s379] %v586
          %v588 = vld [vmem:[%s386 + $0x190] sm:%s379]
          %589 = vst [vmem:[%s387 + $0x190] sm:%s379] %v588
          %v590 = vld [vmem:[%s386 + $0x1b8] sm:%s379]
          %591 = vst [vmem:[%s387 + $0x194] sm:%s379] %v590
          %v592 = vld [vmem:[%s386 + $0x194] sm:%s379]
          %593 = vst [vmem:[%s387 + $0x198] sm:%s379] %v592
          %v594 = vld [vmem:[%s386 + $0x1bc] sm:%s379]
          %595 = vst [vmem:[%s387 + $0x19c] sm:%s379] %v594
          %v596 = vld [vmem:[%s386 + $0x198] sm:%s379]
          %597 = vst [vmem:[%s387 + $0x1a0] sm:%s379] %v596
          %v598 = vld [vmem:[%s386 + $0x1c0] sm:%s379]
          %599 = vst [vmem:[%s387 + $0x1a4] sm:%s379] %v598
          %v600 = vld [vmem:[%s386 + $0x19c] sm:%s379]
          %601 = vst [vmem:[%s387 + $0x1a8] sm:%s379] %v600
          %v602 = vld [vmem:[%s386 + $0x1c4] sm:%s379]
          %603 = vst [vmem:[%s387 + $0x1ac] sm:%s379] %v602
          %v604 = vld [vmem:[%s386 + $0x1a0] sm:%s379]
          %605 = vst [vmem:[%s387 + $0x1b0] sm:%s379] %v604
          %v606 = vld [vmem:[%s386 + $0x1c8] sm:%s379]
          %607 = vst [vmem:[%s387 + $0x1b4] sm:%s379] %v606
          %v608 = vld [vmem:[%s386 + $0x1a4] sm:%s379]
          %609 = vst [vmem:[%s387 + $0x1b8] sm:%s379] %v608
          %v610 = vld [vmem:[%s386 + $0x1cc] sm:%s379]
          %611 = vst [vmem:[%s387 + $0x1bc] sm:%s379] %v610
          %v612 = vld [vmem:[%s386 + $0x1a8] sm:%s379]
          %613 = vst [vmem:[%s387 + $0x1c0] sm:%s379] %v612
          %v614 = vld [vmem:[%s386 + $0x1d0] sm:%s379]
          %615 = vst [vmem:[%s387 + $0x1c4] sm:%s379] %v614
          %v616 = vld [vmem:[%s386 + $0x1ac] sm:%s379]
          %617 = vst [vmem:[%s387 + $0x1c8] sm:%s379] %v616
          %v618 = vld [vmem:[%s386 + $0x1d4] sm:%s379]
          %619 = vst [vmem:[%s387 + $0x1cc] sm:%s379] %v618
          %v620 = vld [vmem:[%s386 + $0x1b0] sm:%s379]
          %621 = vst [vmem:[%s387 + $0x1d0] sm:%s379] %v620
          %v622 = vld [vmem:[%s386 + $0x1d8] sm:%s379]
          %623 = vst [vmem:[%s387 + $0x1d4] sm:%s379] %v622
          %v624 = vld [vmem:[%s386 + $0x1b4] sm:%s379]
          %625 = vst [vmem:[%s387 + $0x1d8] sm:%s379] %v624
          %v626 = vld [vmem:[%s386 + $0x1dc] sm:%s379]
          %627 = vst [vmem:[%s387 + $0x1dc] sm:%s379] %v626
          %v628 = vld [vmem:[%s386 + $0x1e0] sm:%s379]
          %629 = vst [vmem:[%s387 + $0x1e0] sm:%s379] %v628
          %v630 = vld [vmem:[%s386 + $0x208] sm:%s379]
          %631 = vst [vmem:[%s387 + $0x1e4] sm:%s379] %v630
          %v632 = vld [vmem:[%s386 + $0x1e4] sm:%s379]
          %633 = vst [vmem:[%s387 + $0x1e8] sm:%s379] %v632
          %v634 = vld [vmem:[%s386 + $0x20c] sm:%s379]
          %635 = vst [vmem:[%s387 + $0x1ec] sm:%s379] %v634
          %v636 = vld [vmem:[%s386 + $0x1e8] sm:%s379]
          %637 = vst [vmem:[%s387 + $0x1f0] sm:%s379] %v636
          %v638 = vld [vmem:[%s386 + $0x210] sm:%s379]
          %639 = vst [vmem:[%s387 + $0x1f4] sm:%s379] %v638
          %v640 = vld [vmem:[%s386 + $0x1ec] sm:%s379]
          %641 = vst [vmem:[%s387 + $0x1f8] sm:%s379] %v640
          %v642 = vld [vmem:[%s386 + $0x214] sm:%s379]
          %643 = vst [vmem:[%s387 + $0x1fc] sm:%s379] %v642
          %v644 = vld [vmem:[%s386 + $0x1f0] sm:%s379]
          %645 = vst [vmem:[%s387 + $0x200] sm:%s379] %v644
          %v646 = vld [vmem:[%s386 + $0x218] sm:%s379]
          %647 = vst [vmem:[%s387 + $0x204] sm:%s379] %v646
          %v648 = vld [vmem:[%s386 + $0x1f4] sm:%s379]
          %649 = vst [vmem:[%s387 + $0x208] sm:%s379] %v648
          %v650 = vld [vmem:[%s386 + $0x21c] sm:%s379]
          %651 = vst [vmem:[%s387 + $0x20c] sm:%s379] %v650
          %v652 = vld [vmem:[%s386 + $0x1f8] sm:%s379]
          %653 = vst [vmem:[%s387 + $0x210] sm:%s379] %v652
          %v654 = vld [vmem:[%s386 + $0x220] sm:%s379]
          %655 = vst [vmem:[%s387 + $0x214] sm:%s379] %v654
          %v656 = vld [vmem:[%s386 + $0x1fc] sm:%s379]
          %657 = vst [vmem:[%s387 + $0x218] sm:%s379] %v656
          %v658 = vld [vmem:[%s386 + $0x224] sm:%s379]
          %659 = vst [vmem:[%s387 + $0x21c] sm:%s379] %v658
          %v660 = vld [vmem:[%s386 + $0x200] sm:%s379]
          %661 = vst [vmem:[%s387 + $0x220] sm:%s379] %v660
          %v662 = vld [vmem:[%s386 + $0x228] sm:%s379]
          %663 = vst [vmem:[%s387 + $0x224] sm:%s379] %v662
          %v664 = vld [vmem:[%s386 + $0x204] sm:%s379]
          %665 = vst [vmem:[%s387 + $0x228] sm:%s379] %v664
          %v666 = vld [vmem:[%s386 + $0x22c] sm:%s379]
          %667 = vst [vmem:[%s387 + $0x22c] sm:%s379] %v666
          %v668 = vld [vmem:[%s386 + $0x230] sm:%s379]
          %669 = vst [vmem:[%s387 + $0x230] sm:%s379] %v668
          %v670 = vld [vmem:[%s386 + $0x258] sm:%s379]
          %671 = vst [vmem:[%s387 + $0x234] sm:%s379] %v670
          %v672 = vld [vmem:[%s386 + $0x234] sm:%s379]
          %673 = vst [vmem:[%s387 + $0x238] sm:%s379] %v672
          %v674 = vld [vmem:[%s386 + $0x25c] sm:%s379]
          %675 = vst [vmem:[%s387 + $0x23c] sm:%s379] %v674
          %v676 = vld [vmem:[%s386 + $0x238] sm:%s379]
          %677 = vst [vmem:[%s387 + $0x240] sm:%s379] %v676
          %v678 = vld [vmem:[%s386 + $0x260] sm:%s379]
          %679 = vst [vmem:[%s387 + $0x244] sm:%s379] %v678
          %v680 = vld [vmem:[%s386 + $0x23c] sm:%s379]
          %681 = vst [vmem:[%s387 + $0x248] sm:%s379] %v680
          %v682 = vld [vmem:[%s386 + $0x264] sm:%s379]
          %683 = vst [vmem:[%s387 + $0x24c] sm:%s379] %v682
          %v684 = vld [vmem:[%s386 + $0x240] sm:%s379]
          %685 = vst [vmem:[%s387 + $0x250] sm:%s379] %v684
          %v686 = vld [vmem:[%s386 + $0x268] sm:%s379]
          %687 = vst [vmem:[%s387 + $0x254] sm:%s379] %v686
          %v688 = vld [vmem:[%s386 + $0x244] sm:%s379]
          %689 = vst [vmem:[%s387 + $0x258] sm:%s379] %v688
          %v690 = vld [vmem:[%s386 + $0x26c] sm:%s379]
          %691 = vst [vmem:[%s387 + $0x25c] sm:%s379] %v690
          %v692 = vld [vmem:[%s386 + $0x248] sm:%s379]
          %693 = vst [vmem:[%s387 + $0x260] sm:%s379] %v692
          %v694 = vld [vmem:[%s386 + $0x270] sm:%s379]
          %695 = vst [vmem:[%s387 + $0x264] sm:%s379] %v694
          %v696 = vld [vmem:[%s386 + $0x24c] sm:%s379]
          %697 = vst [vmem:[%s387 + $0x268] sm:%s379] %v696
          %v698 = vld [vmem:[%s386 + $0x274] sm:%s379]
          %699 = vst [vmem:[%s387 + $0x26c] sm:%s379] %v698
          %v700 = vld [vmem:[%s386 + $0x250] sm:%s379]
          %701 = vst [vmem:[%s387 + $0x270] sm:%s379] %v700
          %v702 = vld [vmem:[%s386 + $0x278] sm:%s379]
          %703 = vst [vmem:[%s387 + $0x274] sm:%s379] %v702
          %v704 = vld [vmem:[%s386 + $0x254] sm:%s379]
          %705 = vst [vmem:[%s387 + $0x278] sm:%s379] %v704
          %v706 = vld [vmem:[%s386 + $0x27c] sm:%s379]
          %707 = vst [vmem:[%s387 + $0x27c] sm:%s379] %v706
        $region52: #{eeg_classification_forward.1} parent=39 // loop_footer
          %s385 = sadd.s32 1, %s381
        $region53: #{eeg_classification_forward.1} parent=39 // loop_footer_branch
          %380 = sbr.rel target = $region49
        $region54: #{eeg_classification_forward.1} parent=39 // loop_exit
          _
      $region40: #{eeg_classification_forward.1} parent=24 // pred_fallthru
        _
    $region25: #{eeg_classification_forward.1} parent=1 // pred_fallthru
      _
    // Predicated region
    $region26: #{eeg_classification_forward.1} parent=1 // pred_check
      %p29 = pneg %p25
    $region27: #{eeg_classification_forward.1} parent=1 // pred_check_branch
      %31 = sbr.rel (%p29) target = $region29
    $region28: #{eeg_classification_forward.1} parent=1 // pred_region
      %s32 = sshllo.u32 0, 4
      loop: start=0, step=1, limit=1
      $region30: #{eeg_classification_forward.1} parent=28 // loop_pre_header
        _
      $region31: #{eeg_classification_forward.1} parent=28 // loop_header
        %s34 = sphi 0, %s38
        %p35 = scmp.ge.s32.totalorder %s34, 1
        %s39 = sphi %s3, %s3
        %s40 = sphi [#allocation3], [#allocation3]
      $region32: #{eeg_classification_forward.1} parent=28 // loop_header_branch
        %37 = sbr.rel (%p35) target = $region36
      $region33: #{eeg_classification_forward.1} parent=28 // loop_body
        %v41 = vld [vmem:[%s39] sm:%s32]
        %42 = vst [vmem:[%s40] sm:%s32] %v41
        %v43 = vld [vmem:[%s39 + $0x28] sm:%s32]
        %44 = vst [vmem:[%s40 + $0x4] sm:%s32] %v43
        %v45 = vld [vmem:[%s39 + $0x4] sm:%s32]
        %46 = vst [vmem:[%s40 + $0x8] sm:%s32] %v45
        %v47 = vld [vmem:[%s39 + $0x2c] sm:%s32]
        %48 = vst [vmem:[%s40 + $0xc] sm:%s32] %v47
        %v49 = vld [vmem:[%s39 + $0x8] sm:%s32]
        %50 = vst [vmem:[%s40 + $0x10] sm:%s32] %v49
        %v51 = vld [vmem:[%s39 + $0x30] sm:%s32]
        %52 = vst [vmem:[%s40 + $0x14] sm:%s32] %v51
        %v53 = vld [vmem:[%s39 + $0xc] sm:%s32]
        %54 = vst [vmem:[%s40 + $0x18] sm:%s32] %v53
        %v55 = vld [vmem:[%s39 + $0x34] sm:%s32]
        %56 = vst [vmem:[%s40 + $0x1c] sm:%s32] %v55
        %v57 = vld [vmem:[%s39 + $0x10] sm:%s32]
        %58 = vst [vmem:[%s40 + $0x20] sm:%s32] %v57
        %v59 = vld [vmem:[%s39 + $0x38] sm:%s32]
        %60 = vst [vmem:[%s40 + $0x24] sm:%s32] %v59
        %v61 = vld [vmem:[%s39 + $0x14] sm:%s32]
        %62 = vst [vmem:[%s40 + $0x28] sm:%s32] %v61
        %v63 = vld [vmem:[%s39 + $0x3c] sm:%s32]
        %64 = vst [vmem:[%s40 + $0x2c] sm:%s32] %v63
        %v65 = vld [vmem:[%s39 + $0x18] sm:%s32]
        %66 = vst [vmem:[%s40 + $0x30] sm:%s32] %v65
        %v67 = vld [vmem:[%s39 + $0x40] sm:%s32]
        %68 = vst [vmem:[%s40 + $0x34] sm:%s32] %v67
        %v69 = vld [vmem:[%s39 + $0x1c] sm:%s32]
        %70 = vst [vmem:[%s40 + $0x38] sm:%s32] %v69
        %v71 = vld [vmem:[%s39 + $0x44] sm:%s32]
        %72 = vst [vmem:[%s40 + $0x3c] sm:%s32] %v71
        %v73 = vld [vmem:[%s39 + $0x20] sm:%s32]
        %74 = vst [vmem:[%s40 + $0x40] sm:%s32] %v73
        %v75 = vld [vmem:[%s39 + $0x48] sm:%s32]
        %76 = vst [vmem:[%s40 + $0x44] sm:%s32] %v75
        %v77 = vld [vmem:[%s39 + $0x24] sm:%s32]
        %78 = vst [vmem:[%s40 + $0x48] sm:%s32] %v77
        %v79 = vld [vmem:[%s39 + $0x4c] sm:%s32]
        %80 = vst [vmem:[%s40 + $0x4c] sm:%s32] %v79
        %v81 = vld [vmem:[%s39 + $0x50] sm:%s32]
        %82 = vst [vmem:[%s40 + $0x50] sm:%s32] %v81
        %v83 = vld [vmem:[%s39 + $0x78] sm:%s32]
        %84 = vst [vmem:[%s40 + $0x54] sm:%s32] %v83
        %v85 = vld [vmem:[%s39 + $0x54] sm:%s32]
        %86 = vst [vmem:[%s40 + $0x58] sm:%s32] %v85
        %v87 = vld [vmem:[%s39 + $0x7c] sm:%s32]
        %88 = vst [vmem:[%s40 + $0x5c] sm:%s32] %v87
        %v89 = vld [vmem:[%s39 + $0x58] sm:%s32]
        %90 = vst [vmem:[%s40 + $0x60] sm:%s32] %v89
        %v91 = vld [vmem:[%s39 + $0x80] sm:%s32]
        %92 = vst [vmem:[%s40 + $0x64] sm:%s32] %v91
        %v93 = vld [vmem:[%s39 + $0x5c] sm:%s32]
        %94 = vst [vmem:[%s40 + $0x68] sm:%s32] %v93
        %v95 = vld [vmem:[%s39 + $0x84] sm:%s32]
        %96 = vst [vmem:[%s40 + $0x6c] sm:%s32] %v95
        %v97 = vld [vmem:[%s39 + $0x60] sm:%s32]
        %98 = vst [vmem:[%s40 + $0x70] sm:%s32] %v97
        %v99 = vld [vmem:[%s39 + $0x88] sm:%s32]
        %100 = vst [vmem:[%s40 + $0x74] sm:%s32] %v99
        %v101 = vld [vmem:[%s39 + $0x64] sm:%s32]
        %102 = vst [vmem:[%s40 + $0x78] sm:%s32] %v101
        %v103 = vld [vmem:[%s39 + $0x8c] sm:%s32]
        %104 = vst [vmem:[%s40 + $0x7c] sm:%s32] %v103
        %v105 = vld [vmem:[%s39 + $0x68] sm:%s32]
        %106 = vst [vmem:[%s40 + $0x80] sm:%s32] %v105
        %v107 = vld [vmem:[%s39 + $0x90] sm:%s32]
        %108 = vst [vmem:[%s40 + $0x84] sm:%s32] %v107
        %v109 = vld [vmem:[%s39 + $0x6c] sm:%s32]
        %110 = vst [vmem:[%s40 + $0x88] sm:%s32] %v109
        %v111 = vld [vmem:[%s39 + $0x94] sm:%s32]
        %112 = vst [vmem:[%s40 + $0x8c] sm:%s32] %v111
        %v113 = vld [vmem:[%s39 + $0x70] sm:%s32]
        %114 = vst [vmem:[%s40 + $0x90] sm:%s32] %v113
        %v115 = vld [vmem:[%s39 + $0x98] sm:%s32]
        %116 = vst [vmem:[%s40 + $0x94] sm:%s32] %v115
        %v117 = vld [vmem:[%s39 + $0x74] sm:%s32]
        %118 = vst [vmem:[%s40 + $0x98] sm:%s32] %v117
        %v119 = vld [vmem:[%s39 + $0x9c] sm:%s32]
        %120 = vst [vmem:[%s40 + $0x9c] sm:%s32] %v119
        %v121 = vld [vmem:[%s39 + $0xa0] sm:%s32]
        %122 = vst [vmem:[%s40 + $0xa0] sm:%s32] %v121
        %v123 = vld [vmem:[%s39 + $0xc8] sm:%s32]
        %124 = vst [vmem:[%s40 + $0xa4] sm:%s32] %v123
        %v125 = vld [vmem:[%s39 + $0xa4] sm:%s32]
        %126 = vst [vmem:[%s40 + $0xa8] sm:%s32] %v125
        %v127 = vld [vmem:[%s39 + $0xcc] sm:%s32]
        %128 = vst [vmem:[%s40 + $0xac] sm:%s32] %v127
        %v129 = vld [vmem:[%s39 + $0xa8] sm:%s32]
        %130 = vst [vmem:[%s40 + $0xb0] sm:%s32] %v129
        %v131 = vld [vmem:[%s39 + $0xd0] sm:%s32]
        %132 = vst [vmem:[%s40 + $0xb4] sm:%s32] %v131
        %v133 = vld [vmem:[%s39 + $0xac] sm:%s32]
        %134 = vst [vmem:[%s40 + $0xb8] sm:%s32] %v133
        %v135 = vld [vmem:[%s39 + $0xd4] sm:%s32]
        %136 = vst [vmem:[%s40 + $0xbc] sm:%s32] %v135
        %v137 = vld [vmem:[%s39 + $0xb0] sm:%s32]
        %138 = vst [vmem:[%s40 + $0xc0] sm:%s32] %v137
        %v139 = vld [vmem:[%s39 + $0xd8] sm:%s32]
        %140 = vst [vmem:[%s40 + $0xc4] sm:%s32] %v139
        %v141 = vld [vmem:[%s39 + $0xb4] sm:%s32]
        %142 = vst [vmem:[%s40 + $0xc8] sm:%s32] %v141
        %v143 = vld [vmem:[%s39 + $0xdc] sm:%s32]
        %144 = vst [vmem:[%s40 + $0xcc] sm:%s32] %v143
        %v145 = vld [vmem:[%s39 + $0xb8] sm:%s32]
        %146 = vst [vmem:[%s40 + $0xd0] sm:%s32] %v145
        %v147 = vld [vmem:[%s39 + $0xe0] sm:%s32]
        %148 = vst [vmem:[%s40 + $0xd4] sm:%s32] %v147
        %v149 = vld [vmem:[%s39 + $0xbc] sm:%s32]
        %150 = vst [vmem:[%s40 + $0xd8] sm:%s32] %v149
        %v151 = vld [vmem:[%s39 + $0xe4] sm:%s32]
        %152 = vst [vmem:[%s40 + $0xdc] sm:%s32] %v151
        %v153 = vld [vmem:[%s39 + $0xc0] sm:%s32]
        %154 = vst [vmem:[%s40 + $0xe0] sm:%s32] %v153
        %v155 = vld [vmem:[%s39 + $0xe8] sm:%s32]
        %156 = vst [vmem:[%s40 + $0xe4] sm:%s32] %v155
        %v157 = vld [vmem:[%s39 + $0xc4] sm:%s32]
        %158 = vst [vmem:[%s40 + $0xe8] sm:%s32] %v157
        %v159 = vld [vmem:[%s39 + $0xec] sm:%s32]
        %160 = vst [vmem:[%s40 + $0xec] sm:%s32] %v159
        %v161 = vld [vmem:[%s39 + $0xf0] sm:%s32]
        %162 = vst [vmem:[%s40 + $0xf0] sm:%s32] %v161
        %v163 = vld [vmem:[%s39 + $0x118] sm:%s32]
        %164 = vst [vmem:[%s40 + $0xf4] sm:%s32] %v163
        %v165 = vld [vmem:[%s39 + $0xf4] sm:%s32]
        %166 = vst [vmem:[%s40 + $0xf8] sm:%s32] %v165
        %v167 = vld [vmem:[%s39 + $0x11c] sm:%s32]
        %168 = vst [vmem:[%s40 + $0xfc] sm:%s32] %v167
        %v169 = vld [vmem:[%s39 + $0xf8] sm:%s32]
        %170 = vst [vmem:[%s40 + $0x100] sm:%s32] %v169
        %v171 = vld [vmem:[%s39 + $0x120] sm:%s32]
        %172 = vst [vmem:[%s40 + $0x104] sm:%s32] %v171
        %v173 = vld [vmem:[%s39 + $0xfc] sm:%s32]
        %174 = vst [vmem:[%s40 + $0x108] sm:%s32] %v173
        %v175 = vld [vmem:[%s39 + $0x124] sm:%s32]
        %176 = vst [vmem:[%s40 + $0x10c] sm:%s32] %v175
        %v177 = vld [vmem:[%s39 + $0x100] sm:%s32]
        %178 = vst [vmem:[%s40 + $0x110] sm:%s32] %v177
        %v179 = vld [vmem:[%s39 + $0x128] sm:%s32]
        %180 = vst [vmem:[%s40 + $0x114] sm:%s32] %v179
        %v181 = vld [vmem:[%s39 + $0x104] sm:%s32]
        %182 = vst [vmem:[%s40 + $0x118] sm:%s32] %v181
        %v183 = vld [vmem:[%s39 + $0x12c] sm:%s32]
        %184 = vst [vmem:[%s40 + $0x11c] sm:%s32] %v183
        %v185 = vld [vmem:[%s39 + $0x108] sm:%s32]
        %186 = vst [vmem:[%s40 + $0x120] sm:%s32] %v185
        %v187 = vld [vmem:[%s39 + $0x130] sm:%s32]
        %188 = vst [vmem:[%s40 + $0x124] sm:%s32] %v187
        %v189 = vld [vmem:[%s39 + $0x10c] sm:%s32]
        %190 = vst [vmem:[%s40 + $0x128] sm:%s32] %v189
        %v191 = vld [vmem:[%s39 + $0x134] sm:%s32]
        %192 = vst [vmem:[%s40 + $0x12c] sm:%s32] %v191
        %v193 = vld [vmem:[%s39 + $0x110] sm:%s32]
        %194 = vst [vmem:[%s40 + $0x130] sm:%s32] %v193
        %v195 = vld [vmem:[%s39 + $0x138] sm:%s32]
        %196 = vst [vmem:[%s40 + $0x134] sm:%s32] %v195
        %v197 = vld [vmem:[%s39 + $0x114] sm:%s32]
        %198 = vst [vmem:[%s40 + $0x138] sm:%s32] %v197
        %v199 = vld [vmem:[%s39 + $0x13c] sm:%s32]
        %200 = vst [vmem:[%s40 + $0x13c] sm:%s32] %v199
        %v201 = vld [vmem:[%s39 + $0x140] sm:%s32]
        %202 = vst [vmem:[%s40 + $0x140] sm:%s32] %v201
        %v203 = vld [vmem:[%s39 + $0x168] sm:%s32]
        %204 = vst [vmem:[%s40 + $0x144] sm:%s32] %v203
        %v205 = vld [vmem:[%s39 + $0x144] sm:%s32]
        %206 = vst [vmem:[%s40 + $0x148] sm:%s32] %v205
        %v207 = vld [vmem:[%s39 + $0x16c] sm:%s32]
        %208 = vst [vmem:[%s40 + $0x14c] sm:%s32] %v207
        %v209 = vld [vmem:[%s39 + $0x148] sm:%s32]
        %210 = vst [vmem:[%s40 + $0x150] sm:%s32] %v209
        %v211 = vld [vmem:[%s39 + $0x170] sm:%s32]
        %212 = vst [vmem:[%s40 + $0x154] sm:%s32] %v211
        %v213 = vld [vmem:[%s39 + $0x14c] sm:%s32]
        %214 = vst [vmem:[%s40 + $0x158] sm:%s32] %v213
        %v215 = vld [vmem:[%s39 + $0x174] sm:%s32]
        %216 = vst [vmem:[%s40 + $0x15c] sm:%s32] %v215
        %v217 = vld [vmem:[%s39 + $0x150] sm:%s32]
        %218 = vst [vmem:[%s40 + $0x160] sm:%s32] %v217
        %v219 = vld [vmem:[%s39 + $0x178] sm:%s32]
        %220 = vst [vmem:[%s40 + $0x164] sm:%s32] %v219
        %v221 = vld [vmem:[%s39 + $0x154] sm:%s32]
        %222 = vst [vmem:[%s40 + $0x168] sm:%s32] %v221
        %v223 = vld [vmem:[%s39 + $0x17c] sm:%s32]
        %224 = vst [vmem:[%s40 + $0x16c] sm:%s32] %v223
        %v225 = vld [vmem:[%s39 + $0x158] sm:%s32]
        %226 = vst [vmem:[%s40 + $0x170] sm:%s32] %v225
        %v227 = vld [vmem:[%s39 + $0x180] sm:%s32]
        %228 = vst [vmem:[%s40 + $0x174] sm:%s32] %v227
        %v229 = vld [vmem:[%s39 + $0x15c] sm:%s32]
        %230 = vst [vmem:[%s40 + $0x178] sm:%s32] %v229
        %v231 = vld [vmem:[%s39 + $0x184] sm:%s32]
        %232 = vst [vmem:[%s40 + $0x17c] sm:%s32] %v231
        %v233 = vld [vmem:[%s39 + $0x160] sm:%s32]
        %234 = vst [vmem:[%s40 + $0x180] sm:%s32] %v233
        %v235 = vld [vmem:[%s39 + $0x188] sm:%s32]
        %236 = vst [vmem:[%s40 + $0x184] sm:%s32] %v235
        %v237 = vld [vmem:[%s39 + $0x164] sm:%s32]
        %238 = vst [vmem:[%s40 + $0x188] sm:%s32] %v237
        %v239 = vld [vmem:[%s39 + $0x18c] sm:%s32]
        %240 = vst [vmem:[%s40 + $0x18c] sm:%s32] %v239
        %v241 = vld [vmem:[%s39 + $0x190] sm:%s32]
        %242 = vst [vmem:[%s40 + $0x190] sm:%s32] %v241
        %v243 = vld [vmem:[%s39 + $0x1b8] sm:%s32]
        %244 = vst [vmem:[%s40 + $0x194] sm:%s32] %v243
        %v245 = vld [vmem:[%s39 + $0x194] sm:%s32]
        %246 = vst [vmem:[%s40 + $0x198] sm:%s32] %v245
        %v247 = vld [vmem:[%s39 + $0x1bc] sm:%s32]
        %248 = vst [vmem:[%s40 + $0x19c] sm:%s32] %v247
        %v249 = vld [vmem:[%s39 + $0x198] sm:%s32]
        %250 = vst [vmem:[%s40 + $0x1a0] sm:%s32] %v249
        %v251 = vld [vmem:[%s39 + $0x1c0] sm:%s32]
        %252 = vst [vmem:[%s40 + $0x1a4] sm:%s32] %v251
        %v253 = vld [vmem:[%s39 + $0x19c] sm:%s32]
        %254 = vst [vmem:[%s40 + $0x1a8] sm:%s32] %v253
        %v255 = vld [vmem:[%s39 + $0x1c4] sm:%s32]
        %256 = vst [vmem:[%s40 + $0x1ac] sm:%s32] %v255
        %v257 = vld [vmem:[%s39 + $0x1a0] sm:%s32]
        %258 = vst [vmem:[%s40 + $0x1b0] sm:%s32] %v257
        %v259 = vld [vmem:[%s39 + $0x1c8] sm:%s32]
        %260 = vst [vmem:[%s40 + $0x1b4] sm:%s32] %v259
        %v261 = vld [vmem:[%s39 + $0x1a4] sm:%s32]
        %262 = vst [vmem:[%s40 + $0x1b8] sm:%s32] %v261
        %v263 = vld [vmem:[%s39 + $0x1cc] sm:%s32]
        %264 = vst [vmem:[%s40 + $0x1bc] sm:%s32] %v263
        %v265 = vld [vmem:[%s39 + $0x1a8] sm:%s32]
        %266 = vst [vmem:[%s40 + $0x1c0] sm:%s32] %v265
        %v267 = vld [vmem:[%s39 + $0x1d0] sm:%s32]
        %268 = vst [vmem:[%s40 + $0x1c4] sm:%s32] %v267
        %v269 = vld [vmem:[%s39 + $0x1ac] sm:%s32]
        %270 = vst [vmem:[%s40 + $0x1c8] sm:%s32] %v269
        %v271 = vld [vmem:[%s39 + $0x1d4] sm:%s32]
        %272 = vst [vmem:[%s40 + $0x1cc] sm:%s32] %v271
        %v273 = vld [vmem:[%s39 + $0x1b0] sm:%s32]
        %274 = vst [vmem:[%s40 + $0x1d0] sm:%s32] %v273
        %v275 = vld [vmem:[%s39 + $0x1d8] sm:%s32]
        %276 = vst [vmem:[%s40 + $0x1d4] sm:%s32] %v275
        %v277 = vld [vmem:[%s39 + $0x1b4] sm:%s32]
        %278 = vst [vmem:[%s40 + $0x1d8] sm:%s32] %v277
        %v279 = vld [vmem:[%s39 + $0x1dc] sm:%s32]
        %280 = vst [vmem:[%s40 + $0x1dc] sm:%s32] %v279
        %v281 = vld [vmem:[%s39 + $0x1e0] sm:%s32]
        %282 = vst [vmem:[%s40 + $0x1e0] sm:%s32] %v281
        %v283 = vld [vmem:[%s39 + $0x208] sm:%s32]
        %284 = vst [vmem:[%s40 + $0x1e4] sm:%s32] %v283
        %v285 = vld [vmem:[%s39 + $0x1e4] sm:%s32]
        %286 = vst [vmem:[%s40 + $0x1e8] sm:%s32] %v285
        %v287 = vld [vmem:[%s39 + $0x20c] sm:%s32]
        %288 = vst [vmem:[%s40 + $0x1ec] sm:%s32] %v287
        %v289 = vld [vmem:[%s39 + $0x1e8] sm:%s32]
        %290 = vst [vmem:[%s40 + $0x1f0] sm:%s32] %v289
        %v291 = vld [vmem:[%s39 + $0x210] sm:%s32]
        %292 = vst [vmem:[%s40 + $0x1f4] sm:%s32] %v291
        %v293 = vld [vmem:[%s39 + $0x1ec] sm:%s32]
        %294 = vst [vmem:[%s40 + $0x1f8] sm:%s32] %v293
        %v295 = vld [vmem:[%s39 + $0x214] sm:%s32]
        %296 = vst [vmem:[%s40 + $0x1fc] sm:%s32] %v295
        %v297 = vld [vmem:[%s39 + $0x1f0] sm:%s32]
        %298 = vst [vmem:[%s40 + $0x200] sm:%s32] %v297
        %v299 = vld [vmem:[%s39 + $0x218] sm:%s32]
        %300 = vst [vmem:[%s40 + $0x204] sm:%s32] %v299
        %v301 = vld [vmem:[%s39 + $0x1f4] sm:%s32]
        %302 = vst [vmem:[%s40 + $0x208] sm:%s32] %v301
        %v303 = vld [vmem:[%s39 + $0x21c] sm:%s32]
        %304 = vst [vmem:[%s40 + $0x20c] sm:%s32] %v303
        %v305 = vld [vmem:[%s39 + $0x1f8] sm:%s32]
        %306 = vst [vmem:[%s40 + $0x210] sm:%s32] %v305
        %v307 = vld [vmem:[%s39 + $0x220] sm:%s32]
        %308 = vst [vmem:[%s40 + $0x214] sm:%s32] %v307
        %v309 = vld [vmem:[%s39 + $0x1fc] sm:%s32]
        %310 = vst [vmem:[%s40 + $0x218] sm:%s32] %v309
        %v311 = vld [vmem:[%s39 + $0x224] sm:%s32]
        %312 = vst [vmem:[%s40 + $0x21c] sm:%s32] %v311
        %v313 = vld [vmem:[%s39 + $0x200] sm:%s32]
        %314 = vst [vmem:[%s40 + $0x220] sm:%s32] %v313
        %v315 = vld [vmem:[%s39 + $0x228] sm:%s32]
        %316 = vst [vmem:[%s40 + $0x224] sm:%s32] %v315
        %v317 = vld [vmem:[%s39 + $0x204] sm:%s32]
        %318 = vst [vmem:[%s40 + $0x228] sm:%s32] %v317
        %v319 = vld [vmem:[%s39 + $0x22c] sm:%s32]
        %320 = vst [vmem:[%s40 + $0x22c] sm:%s32] %v319
        %v321 = vld [vmem:[%s39 + $0x230] sm:%s32]
        %322 = vst [vmem:[%s40 + $0x230] sm:%s32] %v321
        %v323 = vld [vmem:[%s39 + $0x258] sm:%s32]
        %324 = vst [vmem:[%s40 + $0x234] sm:%s32] %v323
        %v325 = vld [vmem:[%s39 + $0x234] sm:%s32]
        %326 = vst [vmem:[%s40 + $0x238] sm:%s32] %v325
        %v327 = vld [vmem:[%s39 + $0x25c] sm:%s32]
        %328 = vst [vmem:[%s40 + $0x23c] sm:%s32] %v327
        %v329 = vld [vmem:[%s39 + $0x238] sm:%s32]
        %330 = vst [vmem:[%s40 + $0x240] sm:%s32] %v329
        %v331 = vld [vmem:[%s39 + $0x260] sm:%s32]
        %332 = vst [vmem:[%s40 + $0x244] sm:%s32] %v331
        %v333 = vld [vmem:[%s39 + $0x23c] sm:%s32]
        %334 = vst [vmem:[%s40 + $0x248] sm:%s32] %v333
        %v335 = vld [vmem:[%s39 + $0x264] sm:%s32]
        %336 = vst [vmem:[%s40 + $0x24c] sm:%s32] %v335
        %v337 = vld [vmem:[%s39 + $0x240] sm:%s32]
        %338 = vst [vmem:[%s40 + $0x250] sm:%s32] %v337
        %v339 = vld [vmem:[%s39 + $0x268] sm:%s32]
        %340 = vst [vmem:[%s40 + $0x254] sm:%s32] %v339
        %v341 = vld [vmem:[%s39 + $0x244] sm:%s32]
        %342 = vst [vmem:[%s40 + $0x258] sm:%s32] %v341
        %v343 = vld [vmem:[%s39 + $0x26c] sm:%s32]
        %344 = vst [vmem:[%s40 + $0x25c] sm:%s32] %v343
        %v345 = vld [vmem:[%s39 + $0x248] sm:%s32]
        %346 = vst [vmem:[%s40 + $0x260] sm:%s32] %v345
        %v347 = vld [vmem:[%s39 + $0x270] sm:%s32]
        %348 = vst [vmem:[%s40 + $0x264] sm:%s32] %v347
        %v349 = vld [vmem:[%s39 + $0x24c] sm:%s32]
        %350 = vst [vmem:[%s40 + $0x268] sm:%s32] %v349
        %v351 = vld [vmem:[%s39 + $0x274] sm:%s32]
        %352 = vst [vmem:[%s40 + $0x26c] sm:%s32] %v351
        %v353 = vld [vmem:[%s39 + $0x250] sm:%s32]
        %354 = vst [vmem:[%s40 + $0x270] sm:%s32] %v353
        %v355 = vld [vmem:[%s39 + $0x278] sm:%s32]
        %356 = vst [vmem:[%s40 + $0x274] sm:%s32] %v355
        %v357 = vld [vmem:[%s39 + $0x254] sm:%s32]
        %358 = vst [vmem:[%s40 + $0x278] sm:%s32] %v357
        %v359 = vld [vmem:[%s39 + $0x27c] sm:%s32]
        %360 = vst [vmem:[%s40 + $0x27c] sm:%s32] %v359
      $region34: #{eeg_classification_forward.1} parent=28 // loop_footer
        %s38 = sadd.s32 1, %s34
      $region35: #{eeg_classification_forward.1} parent=28 // loop_footer_branch
        %33 = sbr.rel target = $region31
      $region36: #{eeg_classification_forward.1} parent=28 // loop_exit
        _
    $region29: #{eeg_classification_forward.1} parent=1 // pred_fallthru
      _
    // Predicated region
    $region55: #{eeg_classification_forward.1} parent=1 // pred_check
      _
    $region56: #{eeg_classification_forward.1} parent=1 // pred_check_branch
      %710 = sbr.rel (0) target = $region58
    $region57: #{eeg_classification_forward.1} parent=1 // pred_region
      %711 = vsyncadd [#allocation5], 10240
    $region58: #{eeg_classification_forward.1} parent=1 // pred_fallthru
      _
    %s712 = scalar_lea.sflag [#allocation5], 1
    %p714 = scmp.lt.u32.totalorder 1280, 8
    %p715 = pneg %p714
    // Predicated region
    $region59: #{eeg_classification_forward.1} parent=1 // pred_check
      _
    $region60: #{eeg_classification_forward.1} parent=1 // pred_check_branch
      %717 = sbr.rel (%p714) target = $region62
    $region61: #{eeg_classification_forward.1} parent=1 // pred_region
      %s732 = sand.u32 1280, 7
      %p733 = scmp.eq.s32.totalorder %s732, 0
      // Predicated region
      $region74: #{eeg_classification_forward.1} parent=61 // pred_check
        %p734 = pneg %p733
      $region75: #{eeg_classification_forward.1} parent=61 // pred_check_branch
        %736 = sbr.rel (%p734) target = $region77
      $region76: #{eeg_classification_forward.1} parent=61 // pred_region
        loop: start=0, step=1, limit=1
        $region78: #{eeg_classification_forward.1} parent=76 // loop_pre_header
          _
        $region79: #{eeg_classification_forward.1} parent=76 // loop_header
          %s738 = sphi 0, %s742
          %p739 = scmp.ge.s32.totalorder %s738, 1
          %s743 = sphi %s5, %s5
          %s744 = sphi [#allocation4], [#allocation4]
        $region80: #{eeg_classification_forward.1} parent=76 // loop_header_branch
          %741 = sbr.rel (%p739) target = $region84
        $region81: #{eeg_classification_forward.1} parent=76 // loop_body
          %v745 = vld [vmem:[%s743] sm:$0xff]
          %746 = vst [vmem:[%s744] sm:$0xff] %v745
          %v747 = vld [vmem:[%s743 + $0x8] sm:$0xff]
          %748 = vst [vmem:[%s744 + $0x8] sm:$0xff] %v747
          %v749 = vld [vmem:[%s743 + $0x10] sm:$0xff]
          %750 = vst [vmem:[%s744 + $0x10] sm:$0xff] %v749
          %v751 = vld [vmem:[%s743 + $0x18] sm:$0xff]
          %752 = vst [vmem:[%s744 + $0x18] sm:$0xff] %v751
          %v753 = vld [vmem:[%s743 + $0x20] sm:$0xff]
          %754 = vst [vmem:[%s744 + $0x20] sm:$0xff] %v753
          %v755 = vld [vmem:[%s743 + $0x28] sm:$0xff]
          %756 = vst [vmem:[%s744 + $0x28] sm:$0xff] %v755
          %v757 = vld [vmem:[%s743 + $0x30] sm:$0xff]
          %758 = vst [vmem:[%s744 + $0x30] sm:$0xff] %v757
          %v759 = vld [vmem:[%s743 + $0x38] sm:$0xff]
          %760 = vst [vmem:[%s744 + $0x38] sm:$0xff] %v759
          %v761 = vld [vmem:[%s743 + $0x40] sm:$0xff]
          %762 = vst [vmem:[%s744 + $0x40] sm:$0xff] %v761
          %v763 = vld [vmem:[%s743 + $0x48] sm:$0xff]
          %764 = vst [vmem:[%s744 + $0x48] sm:$0xff] %v763
          %v765 = vld [vmem:[%s743 + $0x50] sm:$0xff]
          %766 = vst [vmem:[%s744 + $0x50] sm:$0xff] %v765
          %v767 = vld [vmem:[%s743 + $0x58] sm:$0xff]
          %768 = vst [vmem:[%s744 + $0x58] sm:$0xff] %v767
          %v769 = vld [vmem:[%s743 + $0x60] sm:$0xff]
          %770 = vst [vmem:[%s744 + $0x60] sm:$0xff] %v769
          %v771 = vld [vmem:[%s743 + $0x68] sm:$0xff]
          %772 = vst [vmem:[%s744 + $0x68] sm:$0xff] %v771
          %v773 = vld [vmem:[%s743 + $0x70] sm:$0xff]
          %774 = vst [vmem:[%s744 + $0x70] sm:$0xff] %v773
          %v775 = vld [vmem:[%s743 + $0x78] sm:$0xff]
          %776 = vst [vmem:[%s744 + $0x78] sm:$0xff] %v775
          %v777 = vld [vmem:[%s743 + $0x80] sm:$0xff]
          %778 = vst [vmem:[%s744 + $0x80] sm:$0xff] %v777
          %v779 = vld [vmem:[%s743 + $0x88] sm:$0xff]
          %780 = vst [vmem:[%s744 + $0x88] sm:$0xff] %v779
          %v781 = vld [vmem:[%s743 + $0x90] sm:$0xff]
          %782 = vst [vmem:[%s744 + $0x90] sm:$0xff] %v781
          %v783 = vld [vmem:[%s743 + $0x98] sm:$0xff]
          %784 = vst [vmem:[%s744 + $0x98] sm:$0xff] %v783
          %v785 = vld [vmem:[%s743 + $0xa0] sm:$0xff]
          %786 = vst [vmem:[%s744 + $0xa0] sm:$0xff] %v785
          %v787 = vld [vmem:[%s743 + $0xa8] sm:$0xff]
          %788 = vst [vmem:[%s744 + $0xa8] sm:$0xff] %v787
          %v789 = vld [vmem:[%s743 + $0xb0] sm:$0xff]
          %790 = vst [vmem:[%s744 + $0xb0] sm:$0xff] %v789
          %v791 = vld [vmem:[%s743 + $0xb8] sm:$0xff]
          %792 = vst [vmem:[%s744 + $0xb8] sm:$0xff] %v791
          %v793 = vld [vmem:[%s743 + $0xc0] sm:$0xff]
          %794 = vst [vmem:[%s744 + $0xc0] sm:$0xff] %v793
          %v795 = vld [vmem:[%s743 + $0xc8] sm:$0xff]
          %796 = vst [vmem:[%s744 + $0xc8] sm:$0xff] %v795
          %v797 = vld [vmem:[%s743 + $0xd0] sm:$0xff]
          %798 = vst [vmem:[%s744 + $0xd0] sm:$0xff] %v797
          %v799 = vld [vmem:[%s743 + $0xd8] sm:$0xff]
          %800 = vst [vmem:[%s744 + $0xd8] sm:$0xff] %v799
          %v801 = vld [vmem:[%s743 + $0xe0] sm:$0xff]
          %802 = vst [vmem:[%s744 + $0xe0] sm:$0xff] %v801
          %v803 = vld [vmem:[%s743 + $0xe8] sm:$0xff]
          %804 = vst [vmem:[%s744 + $0xe8] sm:$0xff] %v803
          %v805 = vld [vmem:[%s743 + $0xf0] sm:$0xff]
          %806 = vst [vmem:[%s744 + $0xf0] sm:$0xff] %v805
          %v807 = vld [vmem:[%s743 + $0xf8] sm:$0xff]
          %808 = vst [vmem:[%s744 + $0xf8] sm:$0xff] %v807
          %v809 = vld [vmem:[%s743 + $0x100] sm:$0xff]
          %810 = vst [vmem:[%s744 + $0x100] sm:$0xff] %v809
          %v811 = vld [vmem:[%s743 + $0x108] sm:$0xff]
          %812 = vst [vmem:[%s744 + $0x108] sm:$0xff] %v811
          %v813 = vld [vmem:[%s743 + $0x110] sm:$0xff]
          %814 = vst [vmem:[%s744 + $0x110] sm:$0xff] %v813
          %v815 = vld [vmem:[%s743 + $0x118] sm:$0xff]
          %816 = vst [vmem:[%s744 + $0x118] sm:$0xff] %v815
          %v817 = vld [vmem:[%s743 + $0x120] sm:$0xff]
          %818 = vst [vmem:[%s744 + $0x120] sm:$0xff] %v817
          %v819 = vld [vmem:[%s743 + $0x128] sm:$0xff]
          %820 = vst [vmem:[%s744 + $0x128] sm:$0xff] %v819
          %v821 = vld [vmem:[%s743 + $0x130] sm:$0xff]
          %822 = vst [vmem:[%s744 + $0x130] sm:$0xff] %v821
          %v823 = vld [vmem:[%s743 + $0x138] sm:$0xff]
          %824 = vst [vmem:[%s744 + $0x138] sm:$0xff] %v823
          %v825 = vld [vmem:[%s743 + $0x140] sm:$0xff]
          %826 = vst [vmem:[%s744 + $0x140] sm:$0xff] %v825
          %v827 = vld [vmem:[%s743 + $0x148] sm:$0xff]
          %828 = vst [vmem:[%s744 + $0x148] sm:$0xff] %v827
          %v829 = vld [vmem:[%s743 + $0x150] sm:$0xff]
          %830 = vst [vmem:[%s744 + $0x150] sm:$0xff] %v829
          %v831 = vld [vmem:[%s743 + $0x158] sm:$0xff]
          %832 = vst [vmem:[%s744 + $0x158] sm:$0xff] %v831
          %v833 = vld [vmem:[%s743 + $0x160] sm:$0xff]
          %834 = vst [vmem:[%s744 + $0x160] sm:$0xff] %v833
          %v835 = vld [vmem:[%s743 + $0x168] sm:$0xff]
          %836 = vst [vmem:[%s744 + $0x168] sm:$0xff] %v835
          %v837 = vld [vmem:[%s743 + $0x170] sm:$0xff]
          %838 = vst [vmem:[%s744 + $0x170] sm:$0xff] %v837
          %v839 = vld [vmem:[%s743 + $0x178] sm:$0xff]
          %840 = vst [vmem:[%s744 + $0x178] sm:$0xff] %v839
          %v841 = vld [vmem:[%s743 + $0x180] sm:$0xff]
          %842 = vst [vmem:[%s744 + $0x180] sm:$0xff] %v841
          %v843 = vld [vmem:[%s743 + $0x188] sm:$0xff]
          %844 = vst [vmem:[%s744 + $0x188] sm:$0xff] %v843
          %v845 = vld [vmem:[%s743 + $0x190] sm:$0xff]
          %846 = vst [vmem:[%s744 + $0x190] sm:$0xff] %v845
          %v847 = vld [vmem:[%s743 + $0x198] sm:$0xff]
          %848 = vst [vmem:[%s744 + $0x198] sm:$0xff] %v847
          %v849 = vld [vmem:[%s743 + $0x1a0] sm:$0xff]
          %850 = vst [vmem:[%s744 + $0x1a0] sm:$0xff] %v849
          %v851 = vld [vmem:[%s743 + $0x1a8] sm:$0xff]
          %852 = vst [vmem:[%s744 + $0x1a8] sm:$0xff] %v851
          %v853 = vld [vmem:[%s743 + $0x1b0] sm:$0xff]
          %854 = vst [vmem:[%s744 + $0x1b0] sm:$0xff] %v853
          %v855 = vld [vmem:[%s743 + $0x1b8] sm:$0xff]
          %856 = vst [vmem:[%s744 + $0x1b8] sm:$0xff] %v855
          %v857 = vld [vmem:[%s743 + $0x1c0] sm:$0xff]
          %858 = vst [vmem:[%s744 + $0x1c0] sm:$0xff] %v857
          %v859 = vld [vmem:[%s743 + $0x1c8] sm:$0xff]
          %860 = vst [vmem:[%s744 + $0x1c8] sm:$0xff] %v859
          %v861 = vld [vmem:[%s743 + $0x1d0] sm:$0xff]
          %862 = vst [vmem:[%s744 + $0x1d0] sm:$0xff] %v861
          %v863 = vld [vmem:[%s743 + $0x1d8] sm:$0xff]
          %864 = vst [vmem:[%s744 + $0x1d8] sm:$0xff] %v863
          %v865 = vld [vmem:[%s743 + $0x1e0] sm:$0xff]
          %866 = vst [vmem:[%s744 + $0x1e0] sm:$0xff] %v865
          %v867 = vld [vmem:[%s743 + $0x1e8] sm:$0xff]
          %868 = vst [vmem:[%s744 + $0x1e8] sm:$0xff] %v867
          %v869 = vld [vmem:[%s743 + $0x1f0] sm:$0xff]
          %870 = vst [vmem:[%s744 + $0x1f0] sm:$0xff] %v869
          %v871 = vld [vmem:[%s743 + $0x1f8] sm:$0xff]
          %872 = vst [vmem:[%s744 + $0x1f8] sm:$0xff] %v871
          %v873 = vld [vmem:[%s743 + $0x200] sm:$0xff]
          %874 = vst [vmem:[%s744 + $0x200] sm:$0xff] %v873
          %v875 = vld [vmem:[%s743 + $0x208] sm:$0xff]
          %876 = vst [vmem:[%s744 + $0x208] sm:$0xff] %v875
          %v877 = vld [vmem:[%s743 + $0x210] sm:$0xff]
          %878 = vst [vmem:[%s744 + $0x210] sm:$0xff] %v877
          %v879 = vld [vmem:[%s743 + $0x218] sm:$0xff]
          %880 = vst [vmem:[%s744 + $0x218] sm:$0xff] %v879
          %v881 = vld [vmem:[%s743 + $0x220] sm:$0xff]
          %882 = vst [vmem:[%s744 + $0x220] sm:$0xff] %v881
          %v883 = vld [vmem:[%s743 + $0x228] sm:$0xff]
          %884 = vst [vmem:[%s744 + $0x228] sm:$0xff] %v883
          %v885 = vld [vmem:[%s743 + $0x230] sm:$0xff]
          %886 = vst [vmem:[%s744 + $0x230] sm:$0xff] %v885
          %v887 = vld [vmem:[%s743 + $0x238] sm:$0xff]
          %888 = vst [vmem:[%s744 + $0x238] sm:$0xff] %v887
          %v889 = vld [vmem:[%s743 + $0x240] sm:$0xff]
          %890 = vst [vmem:[%s744 + $0x240] sm:$0xff] %v889
          %v891 = vld [vmem:[%s743 + $0x248] sm:$0xff]
          %892 = vst [vmem:[%s744 + $0x248] sm:$0xff] %v891
          %v893 = vld [vmem:[%s743 + $0x250] sm:$0xff]
          %894 = vst [vmem:[%s744 + $0x250] sm:$0xff] %v893
          %v895 = vld [vmem:[%s743 + $0x258] sm:$0xff]
          %896 = vst [vmem:[%s744 + $0x258] sm:$0xff] %v895
          %v897 = vld [vmem:[%s743 + $0x260] sm:$0xff]
          %898 = vst [vmem:[%s744 + $0x260] sm:$0xff] %v897
          %v899 = vld [vmem:[%s743 + $0x268] sm:$0xff]
          %900 = vst [vmem:[%s744 + $0x268] sm:$0xff] %v899
          %v901 = vld [vmem:[%s743 + $0x270] sm:$0xff]
          %902 = vst [vmem:[%s744 + $0x270] sm:$0xff] %v901
          %v903 = vld [vmem:[%s743 + $0x278] sm:$0xff]
          %904 = vst [vmem:[%s744 + $0x278] sm:$0xff] %v903
          %v905 = vld [vmem:[%s743 + $0x280] sm:$0xff]
          %906 = vst [vmem:[%s744 + $0x280] sm:$0xff] %v905
          %v907 = vld [vmem:[%s743 + $0x288] sm:$0xff]
          %908 = vst [vmem:[%s744 + $0x288] sm:$0xff] %v907
          %v909 = vld [vmem:[%s743 + $0x290] sm:$0xff]
          %910 = vst [vmem:[%s744 + $0x290] sm:$0xff] %v909
          %v911 = vld [vmem:[%s743 + $0x298] sm:$0xff]
          %912 = vst [vmem:[%s744 + $0x298] sm:$0xff] %v911
          %v913 = vld [vmem:[%s743 + $0x2a0] sm:$0xff]
          %914 = vst [vmem:[%s744 + $0x2a0] sm:$0xff] %v913
          %v915 = vld [vmem:[%s743 + $0x2a8] sm:$0xff]
          %916 = vst [vmem:[%s744 + $0x2a8] sm:$0xff] %v915
          %v917 = vld [vmem:[%s743 + $0x2b0] sm:$0xff]
          %918 = vst [vmem:[%s744 + $0x2b0] sm:$0xff] %v917
          %v919 = vld [vmem:[%s743 + $0x2b8] sm:$0xff]
          %920 = vst [vmem:[%s744 + $0x2b8] sm:$0xff] %v919
          %v921 = vld [vmem:[%s743 + $0x2c0] sm:$0xff]
          %922 = vst [vmem:[%s744 + $0x2c0] sm:$0xff] %v921
          %v923 = vld [vmem:[%s743 + $0x2c8] sm:$0xff]
          %924 = vst [vmem:[%s744 + $0x2c8] sm:$0xff] %v923
          %v925 = vld [vmem:[%s743 + $0x2d0] sm:$0xff]
          %926 = vst [vmem:[%s744 + $0x2d0] sm:$0xff] %v925
          %v927 = vld [vmem:[%s743 + $0x2d8] sm:$0xff]
          %928 = vst [vmem:[%s744 + $0x2d8] sm:$0xff] %v927
          %v929 = vld [vmem:[%s743 + $0x2e0] sm:$0xff]
          %930 = vst [vmem:[%s744 + $0x2e0] sm:$0xff] %v929
          %v931 = vld [vmem:[%s743 + $0x2e8] sm:$0xff]
          %932 = vst [vmem:[%s744 + $0x2e8] sm:$0xff] %v931
          %v933 = vld [vmem:[%s743 + $0x2f0] sm:$0xff]
          %934 = vst [vmem:[%s744 + $0x2f0] sm:$0xff] %v933
          %v935 = vld [vmem:[%s743 + $0x2f8] sm:$0xff]
          %936 = vst [vmem:[%s744 + $0x2f8] sm:$0xff] %v935
          %v937 = vld [vmem:[%s743 + $0x300] sm:$0xff]
          %938 = vst [vmem:[%s744 + $0x300] sm:$0xff] %v937
          %v939 = vld [vmem:[%s743 + $0x308] sm:$0xff]
          %940 = vst [vmem:[%s744 + $0x308] sm:$0xff] %v939
          %v941 = vld [vmem:[%s743 + $0x310] sm:$0xff]
          %942 = vst [vmem:[%s744 + $0x310] sm:$0xff] %v941
          %v943 = vld [vmem:[%s743 + $0x318] sm:$0xff]
          %944 = vst [vmem:[%s744 + $0x318] sm:$0xff] %v943
          %v945 = vld [vmem:[%s743 + $0x320] sm:$0xff]
          %946 = vst [vmem:[%s744 + $0x320] sm:$0xff] %v945
          %v947 = vld [vmem:[%s743 + $0x328] sm:$0xff]
          %948 = vst [vmem:[%s744 + $0x328] sm:$0xff] %v947
          %v949 = vld [vmem:[%s743 + $0x330] sm:$0xff]
          %950 = vst [vmem:[%s744 + $0x330] sm:$0xff] %v949
          %v951 = vld [vmem:[%s743 + $0x338] sm:$0xff]
          %952 = vst [vmem:[%s744 + $0x338] sm:$0xff] %v951
          %v953 = vld [vmem:[%s743 + $0x340] sm:$0xff]
          %954 = vst [vmem:[%s744 + $0x340] sm:$0xff] %v953
          %v955 = vld [vmem:[%s743 + $0x348] sm:$0xff]
          %956 = vst [vmem:[%s744 + $0x348] sm:$0xff] %v955
          %v957 = vld [vmem:[%s743 + $0x350] sm:$0xff]
          %958 = vst [vmem:[%s744 + $0x350] sm:$0xff] %v957
          %v959 = vld [vmem:[%s743 + $0x358] sm:$0xff]
          %960 = vst [vmem:[%s744 + $0x358] sm:$0xff] %v959
          %v961 = vld [vmem:[%s743 + $0x360] sm:$0xff]
          %962 = vst [vmem:[%s744 + $0x360] sm:$0xff] %v961
          %v963 = vld [vmem:[%s743 + $0x368] sm:$0xff]
          %964 = vst [vmem:[%s744 + $0x368] sm:$0xff] %v963
          %v965 = vld [vmem:[%s743 + $0x370] sm:$0xff]
          %966 = vst [vmem:[%s744 + $0x370] sm:$0xff] %v965
          %v967 = vld [vmem:[%s743 + $0x378] sm:$0xff]
          %968 = vst [vmem:[%s744 + $0x378] sm:$0xff] %v967
          %v969 = vld [vmem:[%s743 + $0x380] sm:$0xff]
          %970 = vst [vmem:[%s744 + $0x380] sm:$0xff] %v969
          %v971 = vld [vmem:[%s743 + $0x388] sm:$0xff]
          %972 = vst [vmem:[%s744 + $0x388] sm:$0xff] %v971
          %v973 = vld [vmem:[%s743 + $0x390] sm:$0xff]
          %974 = vst [vmem:[%s744 + $0x390] sm:$0xff] %v973
          %v975 = vld [vmem:[%s743 + $0x398] sm:$0xff]
          %976 = vst [vmem:[%s744 + $0x398] sm:$0xff] %v975
          %v977 = vld [vmem:[%s743 + $0x3a0] sm:$0xff]
          %978 = vst [vmem:[%s744 + $0x3a0] sm:$0xff] %v977
          %v979 = vld [vmem:[%s743 + $0x3a8] sm:$0xff]
          %980 = vst [vmem:[%s744 + $0x3a8] sm:$0xff] %v979
          %v981 = vld [vmem:[%s743 + $0x3b0] sm:$0xff]
          %982 = vst [vmem:[%s744 + $0x3b0] sm:$0xff] %v981
          %v983 = vld [vmem:[%s743 + $0x3b8] sm:$0xff]
          %984 = vst [vmem:[%s744 + $0x3b8] sm:$0xff] %v983
          %v985 = vld [vmem:[%s743 + $0x3c0] sm:$0xff]
          %986 = vst [vmem:[%s744 + $0x3c0] sm:$0xff] %v985
          %v987 = vld [vmem:[%s743 + $0x3c8] sm:$0xff]
          %988 = vst [vmem:[%s744 + $0x3c8] sm:$0xff] %v987
          %v989 = vld [vmem:[%s743 + $0x3d0] sm:$0xff]
          %990 = vst [vmem:[%s744 + $0x3d0] sm:$0xff] %v989
          %v991 = vld [vmem:[%s743 + $0x3d8] sm:$0xff]
          %992 = vst [vmem:[%s744 + $0x3d8] sm:$0xff] %v991
          %v993 = vld [vmem:[%s743 + $0x3e0] sm:$0xff]
          %994 = vst [vmem:[%s744 + $0x3e0] sm:$0xff] %v993
          %v995 = vld [vmem:[%s743 + $0x3e8] sm:$0xff]
          %996 = vst [vmem:[%s744 + $0x3e8] sm:$0xff] %v995
          %v997 = vld [vmem:[%s743 + $0x3f0] sm:$0xff]
          %998 = vst [vmem:[%s744 + $0x3f0] sm:$0xff] %v997
          %v999 = vld [vmem:[%s743 + $0x3f8] sm:$0xff]
          %1000 = vst [vmem:[%s744 + $0x3f8] sm:$0xff] %v999
          %v1001 = vld [vmem:[%s743 + $0x400] sm:$0xff]
          %1002 = vst [vmem:[%s744 + $0x400] sm:$0xff] %v1001
          %v1003 = vld [vmem:[%s743 + $0x408] sm:$0xff]
          %1004 = vst [vmem:[%s744 + $0x408] sm:$0xff] %v1003
          %v1005 = vld [vmem:[%s743 + $0x410] sm:$0xff]
          %1006 = vst [vmem:[%s744 + $0x410] sm:$0xff] %v1005
          %v1007 = vld [vmem:[%s743 + $0x418] sm:$0xff]
          %1008 = vst [vmem:[%s744 + $0x418] sm:$0xff] %v1007
          %v1009 = vld [vmem:[%s743 + $0x420] sm:$0xff]
          %1010 = vst [vmem:[%s744 + $0x420] sm:$0xff] %v1009
          %v1011 = vld [vmem:[%s743 + $0x428] sm:$0xff]
          %1012 = vst [vmem:[%s744 + $0x428] sm:$0xff] %v1011
          %v1013 = vld [vmem:[%s743 + $0x430] sm:$0xff]
          %1014 = vst [vmem:[%s744 + $0x430] sm:$0xff] %v1013
          %v1015 = vld [vmem:[%s743 + $0x438] sm:$0xff]
          %1016 = vst [vmem:[%s744 + $0x438] sm:$0xff] %v1015
          %v1017 = vld [vmem:[%s743 + $0x440] sm:$0xff]
          %1018 = vst [vmem:[%s744 + $0x440] sm:$0xff] %v1017
          %v1019 = vld [vmem:[%s743 + $0x448] sm:$0xff]
          %1020 = vst [vmem:[%s744 + $0x448] sm:$0xff] %v1019
          %v1021 = vld [vmem:[%s743 + $0x450] sm:$0xff]
          %1022 = vst [vmem:[%s744 + $0x450] sm:$0xff] %v1021
          %v1023 = vld [vmem:[%s743 + $0x458] sm:$0xff]
          %1024 = vst [vmem:[%s744 + $0x458] sm:$0xff] %v1023
          %v1025 = vld [vmem:[%s743 + $0x460] sm:$0xff]
          %1026 = vst [vmem:[%s744 + $0x460] sm:$0xff] %v1025
          %v1027 = vld [vmem:[%s743 + $0x468] sm:$0xff]
          %1028 = vst [vmem:[%s744 + $0x468] sm:$0xff] %v1027
          %v1029 = vld [vmem:[%s743 + $0x470] sm:$0xff]
          %1030 = vst [vmem:[%s744 + $0x470] sm:$0xff] %v1029
          %v1031 = vld [vmem:[%s743 + $0x478] sm:$0xff]
          %1032 = vst [vmem:[%s744 + $0x478] sm:$0xff] %v1031
          %v1033 = vld [vmem:[%s743 + $0x480] sm:$0xff]
          %1034 = vst [vmem:[%s744 + $0x480] sm:$0xff] %v1033
          %v1035 = vld [vmem:[%s743 + $0x488] sm:$0xff]
          %1036 = vst [vmem:[%s744 + $0x488] sm:$0xff] %v1035
          %v1037 = vld [vmem:[%s743 + $0x490] sm:$0xff]
          %1038 = vst [vmem:[%s744 + $0x490] sm:$0xff] %v1037
          %v1039 = vld [vmem:[%s743 + $0x498] sm:$0xff]
          %1040 = vst [vmem:[%s744 + $0x498] sm:$0xff] %v1039
          %v1041 = vld [vmem:[%s743 + $0x4a0] sm:$0xff]
          %1042 = vst [vmem:[%s744 + $0x4a0] sm:$0xff] %v1041
          %v1043 = vld [vmem:[%s743 + $0x4a8] sm:$0xff]
          %1044 = vst [vmem:[%s744 + $0x4a8] sm:$0xff] %v1043
          %v1045 = vld [vmem:[%s743 + $0x4b0] sm:$0xff]
          %1046 = vst [vmem:[%s744 + $0x4b0] sm:$0xff] %v1045
          %v1047 = vld [vmem:[%s743 + $0x4b8] sm:$0xff]
          %1048 = vst [vmem:[%s744 + $0x4b8] sm:$0xff] %v1047
          %v1049 = vld [vmem:[%s743 + $0x4c0] sm:$0xff]
          %1050 = vst [vmem:[%s744 + $0x4c0] sm:$0xff] %v1049
          %v1051 = vld [vmem:[%s743 + $0x4c8] sm:$0xff]
          %1052 = vst [vmem:[%s744 + $0x4c8] sm:$0xff] %v1051
          %v1053 = vld [vmem:[%s743 + $0x4d0] sm:$0xff]
          %1054 = vst [vmem:[%s744 + $0x4d0] sm:$0xff] %v1053
          %v1055 = vld [vmem:[%s743 + $0x4d8] sm:$0xff]
          %1056 = vst [vmem:[%s744 + $0x4d8] sm:$0xff] %v1055
          %v1057 = vld [vmem:[%s743 + $0x4e0] sm:$0xff]
          %1058 = vst [vmem:[%s744 + $0x4e0] sm:$0xff] %v1057
          %v1059 = vld [vmem:[%s743 + $0x4e8] sm:$0xff]
          %1060 = vst [vmem:[%s744 + $0x4e8] sm:$0xff] %v1059
          %v1061 = vld [vmem:[%s743 + $0x4f0] sm:$0xff]
          %1062 = vst [vmem:[%s744 + $0x4f0] sm:$0xff] %v1061
          %v1063 = vld [vmem:[%s743 + $0x4f8] sm:$0xff]
          %1064 = vst [vmem:[%s744 + $0x4f8] sm:$0xff] %v1063
        $region82: #{eeg_classification_forward.1} parent=76 // loop_footer
          %s742 = sadd.s32 1, %s738
        $region83: #{eeg_classification_forward.1} parent=76 // loop_footer_branch
          %737 = sbr.rel target = $region79
        $region84: #{eeg_classification_forward.1} parent=76 // loop_exit
          _
      $region77: #{eeg_classification_forward.1} parent=61 // pred_fallthru
        _
      %p1065 = pneg %p733
      // Predicated region
      $region85: #{eeg_classification_forward.1} parent=61 // pred_check
        _
      $region86: #{eeg_classification_forward.1} parent=61 // pred_check_branch
        %1067 = sbr.rel (%p733) target = $region88
      $region87: #{eeg_classification_forward.1} parent=61 // pred_region
        %s1068 = sand.u32 1280, 7
      $region88: #{eeg_classification_forward.1} parent=61 // pred_fallthru
        _
    $region62: #{eeg_classification_forward.1} parent=1 // pred_fallthru
      _
    // Predicated region
    $region63: #{eeg_classification_forward.1} parent=1 // pred_check
      %p718 = pneg %p714
    $region64: #{eeg_classification_forward.1} parent=1 // pred_check_branch
      %720 = sbr.rel (%p718) target = $region66
    $region65: #{eeg_classification_forward.1} parent=1 // pred_region
      %s721 = sshllo.u32 0, 1280
      loop: start=0, step=1, limit=1
      $region67: #{eeg_classification_forward.1} parent=65 // loop_pre_header
        _
      $region68: #{eeg_classification_forward.1} parent=65 // loop_header
        %s723 = sphi 0, %s727
        %p724 = scmp.ge.s32.totalorder %s723, 1
        %s728 = sphi %s5, %s5
        %s729 = sphi [#allocation4], [#allocation4]
      $region69: #{eeg_classification_forward.1} parent=65 // loop_header_branch
        %726 = sbr.rel (%p724) target = $region73
      $region70: #{eeg_classification_forward.1} parent=65 // loop_body
        %v730 = vld [vmem:[%s728] sm:%s721]
        %731 = vst [vmem:[%s729] sm:%s721] %v730
      $region71: #{eeg_classification_forward.1} parent=65 // loop_footer
        %s727 = sadd.s32 1, %s723
      $region72: #{eeg_classification_forward.1} parent=65 // loop_footer_branch
        %722 = sbr.rel target = $region68
      $region73: #{eeg_classification_forward.1} parent=65 // loop_exit
        _
    $region66: #{eeg_classification_forward.1} parent=1 // pred_fallthru
      _
    // Predicated region
    $region89: #{eeg_classification_forward.1} parent=1 // pred_check
      _
    $region90: #{eeg_classification_forward.1} parent=1 // pred_check_branch
      %1071 = sbr.rel (0) target = $region92
    $region91: #{eeg_classification_forward.1} parent=1 // pred_region
      %1072 = vsyncadd %s712, 20480
    $region92: #{eeg_classification_forward.1} parent=1 // pred_fallthru
      _
    %v1073 = vld [vmem:[%s0] sm:$0xff]
    %v1074 = vld [vmem:[%s0 + $0x8] sm:$0xff]
    %v1075 = vld [vmem:[%s0 + $0x10] sm:$0xff]
    %v1076 = vld [vmem:[%s0 + $0x18] sm:$0xff]
    %v1077 = vld [vmem:[%s0 + $0x20] sm:$0xff]
    %v1078 = vld [vmem:[%s0 + $0x28] sm:$0xff]
    %v1079 = vld [vmem:[%s0 + $0x30] sm:$0xff]
    %v1080 = vld [vmem:[%s0 + $0x38] sm:$0xff]
    %vm1081 = vcmask 64512
    %1082 = vst.msk [vmem:[#allocation2] sm:$0xff] %vm1081, %v1073
    %1083 = vst.msk [vmem:[#allocation2 + $0x8] sm:$0xff] %vm1081, %v1074
    %1084 = vst.msk [vmem:[#allocation2 + $0x10] sm:$0xff] %vm1081, %v1075
    %1085 = vst.msk [vmem:[#allocation2 + $0x18] sm:$0xff] %vm1081, %v1076
    %1086 = vst.msk [vmem:[#allocation2 + $0x20] sm:$0xff] %vm1081, %v1077
    %1087 = vst.msk [vmem:[#allocation2 + $0x28] sm:$0xff] %vm1081, %v1078
    %1088 = vst.msk [vmem:[#allocation2 + $0x30] sm:$0xff] %vm1081, %v1079
    %1089 = vst.msk [vmem:[#allocation2 + $0x38] sm:$0xff] %vm1081, %v1080
    %v1090 = vld [vmem:[%s0 + $0x1] sm:$0xff]
    %v1091 = vld [vmem:[%s0 + $0x9] sm:$0xff]
    %v1092 = vld [vmem:[%s0 + $0x11] sm:$0xff]
    %v1093 = vld [vmem:[%s0 + $0x19] sm:$0xff]
    %v1094 = vld [vmem:[%s0 + $0x21] sm:$0xff]
    %v1095 = vld [vmem:[%s0 + $0x29] sm:$0xff]
    %v1096 = vld [vmem:[%s0 + $0x31] sm:$0xff]
    %v1097 = vld [vmem:[%s0 + $0x39] sm:$0xff]
    %1106 = vrot.lane.b32.xlu0 %v1090, 8
    %v1107 = vpop.permute.xlu0 %1106
    %1108 = vrot.lane.b32.xlu0 %v1091, 8
    %v1109 = vpop.permute.xlu0 %1108
    %1110 = vrot.lane.b32.xlu0 %v1092, 8
    %v1111 = vpop.permute.xlu0 %1110
    %1112 = vrot.lane.b32.xlu0 %v1093, 8
    %v1113 = vpop.permute.xlu0 %1112
    %1114 = vrot.lane.b32.xlu0 %v1094, 8
    %v1115 = vpop.permute.xlu0 %1114
    %1116 = vrot.lane.b32.xlu0 %v1095, 8
    %v1117 = vpop.permute.xlu0 %1116
    %1118 = vrot.lane.b32.xlu0 %v1096, 8
    %v1119 = vpop.permute.xlu0 %1118
    %1120 = vrot.lane.b32.xlu0 %v1097, 8
    %v1121 = vpop.permute.xlu0 %1120
    %vm1130 = vcmask 130112
    %1131 = vst.msk [vmem:[#allocation2] sm:$0xff] %vm1130, %v1107
    %1132 = vst.msk [vmem:[#allocation2 + $0x8] sm:$0xff] %vm1130, %v1109
    %1133 = vst.msk [vmem:[#allocation2 + $0x10] sm:$0xff] %vm1130, %v1111
    %1134 = vst.msk [vmem:[#allocation2 + $0x18] sm:$0xff] %vm1130, %v1113
    %1135 = vst.msk [vmem:[#allocation2 + $0x20] sm:$0xff] %vm1130, %v1115
    %1136 = vst.msk [vmem:[#allocation2 + $0x28] sm:$0xff] %vm1130, %v1117
    %1137 = vst.msk [vmem:[#allocation2 + $0x30] sm:$0xff] %vm1130, %v1119
    %1138 = vst.msk [vmem:[#allocation2 + $0x38] sm:$0xff] %vm1130, %v1121
    %v1139 = vld [vmem:[%s0 + $0x2] sm:$0xff]
    %v1140 = vld [vmem:[%s0 + $0xa] sm:$0xff]
    %v1141 = vld [vmem:[%s0 + $0x12] sm:$0xff]
    %v1142 = vld [vmem:[%s0 + $0x1a] sm:$0xff]
    %v1143 = vld [vmem:[%s0 + $0x22] sm:$0xff]
    %v1144 = vld [vmem:[%s0 + $0x2a] sm:$0xff]
    %v1145 = vld [vmem:[%s0 + $0x32] sm:$0xff]
    %v1146 = vld [vmem:[%s0 + $0x3a] sm:$0xff]
    %1155 = vrot.lane.b32.xlu0 %v1139, 16
    %v1156 = vpop.permute.xlu0 %1155
    %1157 = vrot.lane.b32.xlu0 %v1140, 16
    %v1158 = vpop.permute.xlu0 %1157
    %1159 = vrot.lane.b32.xlu0 %v1141, 16
    %v1160 = vpop.permute.xlu0 %1159
    %1161 = vrot.lane.b32.xlu0 %v1142, 16
    %v1162 = vpop.permute.xlu0 %1161
    %1163 = vrot.lane.b32.xlu0 %v1143, 16
    %v1164 = vpop.permute.xlu0 %1163
    %1165 = vrot.lane.b32.xlu0 %v1144, 16
    %v1166 = vpop.permute.xlu0 %1165
    %1167 = vrot.lane.b32.xlu0 %v1145, 16
    %v1168 = vpop.permute.xlu0 %1167
    %1169 = vrot.lane.b32.xlu0 %v1146, 16
    %v1170 = vpop.permute.xlu0 %1169
    %vm1179 = vcmask 195712
    %1180 = vst.msk [vmem:[#allocation2] sm:$0xff] %vm1179, %v1156
    %1181 = vst.msk [vmem:[#allocation2 + $0x8] sm:$0xff] %vm1179, %v1158
    %1182 = vst.msk [vmem:[#allocation2 + $0x10] sm:$0xff] %vm1179, %v1160
    %1183 = vst.msk [vmem:[#allocation2 + $0x18] sm:$0xff] %vm1179, %v1162
    %1184 = vst.msk [vmem:[#allocation2 + $0x20] sm:$0xff] %vm1179, %v1164
    %1185 = vst.msk [vmem:[#allocation2 + $0x28] sm:$0xff] %vm1179, %v1166
    %1186 = vst.msk [vmem:[#allocation2 + $0x30] sm:$0xff] %vm1179, %v1168
    %1187 = vst.msk [vmem:[#allocation2 + $0x38] sm:$0xff] %vm1179, %v1170
    %v1188 = vld [vmem:[%s0 + $0x3] sm:$0xff]
    %v1189 = vld [vmem:[%s0 + $0xb] sm:$0xff]
    %v1190 = vld [vmem:[%s0 + $0x13] sm:$0xff]
    %v1191 = vld [vmem:[%s0 + $0x1b] sm:$0xff]
    %v1192 = vld [vmem:[%s0 + $0x23] sm:$0xff]
    %v1193 = vld [vmem:[%s0 + $0x2b] sm:$0xff]
    %v1194 = vld [vmem:[%s0 + $0x33] sm:$0xff]
    %v1195 = vld [vmem:[%s0 + $0x3b] sm:$0xff]
    %1204 = vrot.lane.b32.xlu0 %v1188, 24
    %v1205 = vpop.permute.xlu0 %1204
    %1206 = vrot.lane.b32.xlu0 %v1189, 24
    %v1207 = vpop.permute.xlu0 %1206
    %1208 = vrot.lane.b32.xlu0 %v1190, 24
    %v1209 = vpop.permute.xlu0 %1208
    %1210 = vrot.lane.b32.xlu0 %v1191, 24
    %v1211 = vpop.permute.xlu0 %1210
    %1212 = vrot.lane.b32.xlu0 %v1192, 24
    %v1213 = vpop.permute.xlu0 %1212
    %1214 = vrot.lane.b32.xlu0 %v1193, 24
    %v1215 = vpop.permute.xlu0 %1214
    %1216 = vrot.lane.b32.xlu0 %v1194, 24
    %v1217 = vpop.permute.xlu0 %1216
    %1218 = vrot.lane.b32.xlu0 %v1195, 24
    %v1219 = vpop.permute.xlu0 %1218
    %vm1228 = vcmask 261312
    %1229 = vst.msk [vmem:[#allocation2] sm:$0xff] %vm1228, %v1205
    %1230 = vst.msk [vmem:[#allocation2 + $0x8] sm:$0xff] %vm1228, %v1207
    %1231 = vst.msk [vmem:[#allocation2 + $0x10] sm:$0xff] %vm1228, %v1209
    %1232 = vst.msk [vmem:[#allocation2 + $0x18] sm:$0xff] %vm1228, %v1211
    %1233 = vst.msk [vmem:[#allocation2 + $0x20] sm:$0xff] %vm1228, %v1213
    %1234 = vst.msk [vmem:[#allocation2 + $0x28] sm:$0xff] %vm1228, %v1215
    %1235 = vst.msk [vmem:[#allocation2 + $0x30] sm:$0xff] %vm1228, %v1217
    %1236 = vst.msk [vmem:[#allocation2 + $0x38] sm:$0xff] %vm1228, %v1219
    %v1237 = vld [vmem:[%s0 + $0x4] sm:$0xff]
    %v1238 = vld [vmem:[%s0 + $0xc] sm:$0xff]
    %v1239 = vld [vmem:[%s0 + $0x14] sm:$0xff]
    %v1240 = vld [vmem:[%s0 + $0x1c] sm:$0xff]
    %v1241 = vld [vmem:[%s0 + $0x24] sm:$0xff]
    %v1242 = vld [vmem:[%s0 + $0x2c] sm:$0xff]
    %v1243 = vld [vmem:[%s0 + $0x34] sm:$0xff]
    %v1244 = vld [vmem:[%s0 + $0x3c] sm:$0xff]
    %1253 = vrot.lane.b32.xlu0 %v1237, 32
    %v1254 = vpop.permute.xlu0 %1253
    %1255 = vrot.lane.b32.xlu0 %v1238, 32
    %v1256 = vpop.permute.xlu0 %1255
    %1257 = vrot.lane.b32.xlu0 %v1239, 32
    %v1258 = vpop.permute.xlu0 %1257
    %1259 = vrot.lane.b32.xlu0 %v1240, 32
    %v1260 = vpop.permute.xlu0 %1259
    %1261 = vrot.lane.b32.xlu0 %v1241, 32
    %v1262 = vpop.permute.xlu0 %1261
    %1263 = vrot.lane.b32.xlu0 %v1242, 32
    %v1264 = vpop.permute.xlu0 %1263
    %1265 = vrot.lane.b32.xlu0 %v1243, 32
    %v1266 = vpop.permute.xlu0 %1265
    %1267 = vrot.lane.b32.xlu0 %v1244, 32
    %v1268 = vpop.permute.xlu0 %1267
    %vm1277 = vcmask 326912
    %1278 = vst.msk [vmem:[#allocation2] sm:$0xff] %vm1277, %v1254
    %1279 = vst.msk [vmem:[#allocation2 + $0x8] sm:$0xff] %vm1277, %v1256
    %1280 = vst.msk [vmem:[#allocation2 + $0x10] sm:$0xff] %vm1277, %v1258
    %1281 = vst.msk [vmem:[#allocation2 + $0x18] sm:$0xff] %vm1277, %v1260
    %1282 = vst.msk [vmem:[#allocation2 + $0x20] sm:$0xff] %vm1277, %v1262
    %1283 = vst.msk [vmem:[#allocation2 + $0x28] sm:$0xff] %vm1277, %v1264
    %1284 = vst.msk [vmem:[#allocation2 + $0x30] sm:$0xff] %vm1277, %v1266
    %1285 = vst.msk [vmem:[#allocation2 + $0x38] sm:$0xff] %vm1277, %v1268
    %v1286 = vld [vmem:[%s0 + $0x5] sm:$0xff]
    %v1287 = vld [vmem:[%s0 + $0xd] sm:$0xff]
    %v1288 = vld [vmem:[%s0 + $0x15] sm:$0xff]
    %v1289 = vld [vmem:[%s0 + $0x1d] sm:$0xff]
    %v1290 = vld [vmem:[%s0 + $0x25] sm:$0xff]
    %v1291 = vld [vmem:[%s0 + $0x2d] sm:$0xff]
    %v1292 = vld [vmem:[%s0 + $0x35] sm:$0xff]
    %v1293 = vld [vmem:[%s0 + $0x3d] sm:$0xff]
    %1302 = vrot.lane.b32.xlu0 %v1286, 40
    %v1303 = vpop.permute.xlu0 %1302
    %1304 = vrot.lane.b32.xlu0 %v1287, 40
    %v1305 = vpop.permute.xlu0 %1304
    %1306 = vrot.lane.b32.xlu0 %v1288, 40
    %v1307 = vpop.permute.xlu0 %1306
    %1308 = vrot.lane.b32.xlu0 %v1289, 40
    %v1309 = vpop.permute.xlu0 %1308
    %1310 = vrot.lane.b32.xlu0 %v1290, 40
    %v1311 = vpop.permute.xlu0 %1310
    %1312 = vrot.lane.b32.xlu0 %v1291, 40
    %v1313 = vpop.permute.xlu0 %1312
    %1314 = vrot.lane.b32.xlu0 %v1292, 40
    %v1315 = vpop.permute.xlu0 %1314
    %1316 = vrot.lane.b32.xlu0 %v1293, 40
    %v1317 = vpop.permute.xlu0 %1316
    %vm1326 = vcmask 392512
    %1327 = vst.msk [vmem:[#allocation2] sm:$0xff] %vm1326, %v1303
    %1328 = vst.msk [vmem:[#allocation2 + $0x8] sm:$0xff] %vm1326, %v1305
    %1329 = vst.msk [vmem:[#allocation2 + $0x10] sm:$0xff] %vm1326, %v1307
    %1330 = vst.msk [vmem:[#allocation2 + $0x18] sm:$0xff] %vm1326, %v1309
    %1331 = vst.msk [vmem:[#allocation2 + $0x20] sm:$0xff] %vm1326, %v1311
    %1332 = vst.msk [vmem:[#allocation2 + $0x28] sm:$0xff] %vm1326, %v1313
    %1333 = vst.msk [vmem:[#allocation2 + $0x30] sm:$0xff] %vm1326, %v1315
    %1334 = vst.msk [vmem:[#allocation2 + $0x38] sm:$0xff] %vm1326, %v1317
    %v1335 = vld [vmem:[%s0 + $0x6] sm:$0xff]
    %v1336 = vld [vmem:[%s0 + $0xe] sm:$0xff]
    %v1337 = vld [vmem:[%s0 + $0x16] sm:$0xff]
    %v1338 = vld [vmem:[%s0 + $0x1e] sm:$0xff]
    %v1339 = vld [vmem:[%s0 + $0x26] sm:$0xff]
    %v1340 = vld [vmem:[%s0 + $0x2e] sm:$0xff]
    %v1341 = vld [vmem:[%s0 + $0x36] sm:$0xff]
    %v1342 = vld [vmem:[%s0 + $0x3e] sm:$0xff]
    %1351 = vrot.lane.b32.xlu0 %v1335, 48
    %v1352 = vpop.permute.xlu0 %1351
    %1353 = vrot.lane.b32.xlu0 %v1336, 48
    %v1354 = vpop.permute.xlu0 %1353
    %1355 = vrot.lane.b32.xlu0 %v1337, 48
    %v1356 = vpop.permute.xlu0 %1355
    %1357 = vrot.lane.b32.xlu0 %v1338, 48
    %v1358 = vpop.permute.xlu0 %1357
    %1359 = vrot.lane.b32.xlu0 %v1339, 48
    %v1360 = vpop.permute.xlu0 %1359
    %1361 = vrot.lane.b32.xlu0 %v1340, 48
    %v1362 = vpop.permute.xlu0 %1361
    %1363 = vrot.lane.b32.xlu0 %v1341, 48
    %v1364 = vpop.permute.xlu0 %1363
    %1365 = vrot.lane.b32.xlu0 %v1342, 48
    %v1366 = vpop.permute.xlu0 %1365
    %vm1375 = vcmask 458112
    %1376 = vst.msk [vmem:[#allocation2] sm:$0xff] %vm1375, %v1352
    %1377 = vst.msk [vmem:[#allocation2 + $0x8] sm:$0xff] %vm1375, %v1354
    %1378 = vst.msk [vmem:[#allocation2 + $0x10] sm:$0xff] %vm1375, %v1356
    %1379 = vst.msk [vmem:[#allocation2 + $0x18] sm:$0xff] %vm1375, %v1358
    %1380 = vst.msk [vmem:[#allocation2 + $0x20] sm:$0xff] %vm1375, %v1360
    %1381 = vst.msk [vmem:[#allocation2 + $0x28] sm:$0xff] %vm1375, %v1362
    %1382 = vst.msk [vmem:[#allocation2 + $0x30] sm:$0xff] %vm1375, %v1364
    %1383 = vst.msk [vmem:[#allocation2 + $0x38] sm:$0xff] %vm1375, %v1366
    %v1384 = vld [vmem:[%s0 + $0x7] sm:$0xff]
    %v1385 = vld [vmem:[%s0 + $0xf] sm:$0xff]
    %v1386 = vld [vmem:[%s0 + $0x17] sm:$0xff]
    %v1387 = vld [vmem:[%s0 + $0x1f] sm:$0xff]
    %v1388 = vld [vmem:[%s0 + $0x27] sm:$0xff]
    %v1389 = vld [vmem:[%s0 + $0x2f] sm:$0xff]
    %v1390 = vld [vmem:[%s0 + $0x37] sm:$0xff]
    %v1391 = vld [vmem:[%s0 + $0x3f] sm:$0xff]
    %1400 = vrot.lane.b32.xlu0 %v1384, 56
    %v1401 = vpop.permute.xlu0 %1400
    %1402 = vrot.lane.b32.xlu0 %v1385, 56
    %v1403 = vpop.permute.xlu0 %1402
    %1404 = vrot.lane.b32.xlu0 %v1386, 56
    %v1405 = vpop.permute.xlu0 %1404
    %1406 = vrot.lane.b32.xlu0 %v1387, 56
    %v1407 = vpop.permute.xlu0 %1406
    %1408 = vrot.lane.b32.xlu0 %v1388, 56
    %v1409 = vpop.permute.xlu0 %1408
    %1410 = vrot.lane.b32.xlu0 %v1389, 56
    %v1411 = vpop.permute.xlu0 %1410
    %1412 = vrot.lane.b32.xlu0 %v1390, 56
    %v1413 = vpop.permute.xlu0 %1412
    %1414 = vrot.lane.b32.xlu0 %v1391, 56
    %v1415 = vpop.permute.xlu0 %1414
    %vm1424 = vcmask 523712
    %1425 = vst.msk [vmem:[#allocation2] sm:$0xff] %vm1424, %v1401
    %1426 = vst.msk [vmem:[#allocation2 + $0x8] sm:$0xff] %vm1424, %v1403
    %1427 = vst.msk [vmem:[#allocation2 + $0x10] sm:$0xff] %vm1424, %v1405
    %1428 = vst.msk [vmem:[#allocation2 + $0x18] sm:$0xff] %vm1424, %v1407
    %1429 = vst.msk [vmem:[#allocation2 + $0x20] sm:$0xff] %vm1424, %v1409
    %1430 = vst.msk [vmem:[#allocation2 + $0x28] sm:$0xff] %vm1424, %v1411
    %1431 = vst.msk [vmem:[#allocation2 + $0x30] sm:$0xff] %vm1424, %v1413
    %1432 = vst.msk [vmem:[#allocation2 + $0x38] sm:$0xff] %vm1424, %v1415
    %s1433 = scalar_lea.vmem %s0, 72
    %v1434 = vld [vmem:[%s1433] sm:$0xff]
    %v1435 = vld [vmem:[%s1433 + $0x8] sm:$0xff]
    %v1436 = vld [vmem:[%s1433 + $0x10] sm:$0xff]
    %v1437 = vld [vmem:[%s1433 + $0x18] sm:$0xff]
    %v1438 = vld [vmem:[%s1433 + $0x20] sm:$0xff]
    %v1439 = vld [vmem:[%s1433 + $0x28] sm:$0xff]
    %v1440 = vld [vmem:[%s1433 + $0x30] sm:$0xff]
    %v1441 = vld [vmem:[%s1433 + $0x38] sm:$0xff]
    %1442 = vst.msk [vmem:[#allocation2 + $0x40] sm:$0xff] %vm1081, %v1434
    %1443 = vst.msk [vmem:[#allocation2 + $0x48] sm:$0xff] %vm1081, %v1435
    %1444 = vst.msk [vmem:[#allocation2 + $0x50] sm:$0xff] %vm1081, %v1436
    %1445 = vst.msk [vmem:[#allocation2 + $0x58] sm:$0xff] %vm1081, %v1437
    %1446 = vst.msk [vmem:[#allocation2 + $0x60] sm:$0xff] %vm1081, %v1438
    %1447 = vst.msk [vmem:[#allocation2 + $0x68] sm:$0xff] %vm1081, %v1439
    %1448 = vst.msk [vmem:[#allocation2 + $0x70] sm:$0xff] %vm1081, %v1440
    %1449 = vst.msk [vmem:[#allocation2 + $0x78] sm:$0xff] %vm1081, %v1441
    %v1450 = vld [vmem:[%s1433 + $0x1] sm:$0xff]
    %v1451 = vld [vmem:[%s1433 + $0x9] sm:$0xff]
    %v1452 = vld [vmem:[%s1433 + $0x11] sm:$0xff]
    %v1453 = vld [vmem:[%s1433 + $0x19] sm:$0xff]
    %v1454 = vld [vmem:[%s1433 + $0x21] sm:$0xff]
    %v1455 = vld [vmem:[%s1433 + $0x29] sm:$0xff]
    %v1456 = vld [vmem:[%s1433 + $0x31] sm:$0xff]
    %v1457 = vld [vmem:[%s1433 + $0x39] sm:$0xff]
    %1466 = vrot.lane.b32.xlu0 %v1450, 8
    %v1467 = vpop.permute.xlu0 %1466
    %1468 = vrot.lane.b32.xlu0 %v1451, 8
    %v1469 = vpop.permute.xlu0 %1468
    %1470 = vrot.lane.b32.xlu0 %v1452, 8
    %v1471 = vpop.permute.xlu0 %1470
    %1472 = vrot.lane.b32.xlu0 %v1453, 8
    %v1473 = vpop.permute.xlu0 %1472
    %1474 = vrot.lane.b32.xlu0 %v1454, 8
    %v1475 = vpop.permute.xlu0 %1474
    %1476 = vrot.lane.b32.xlu0 %v1455, 8
    %v1477 = vpop.permute.xlu0 %1476
    %1478 = vrot.lane.b32.xlu0 %v1456, 8
    %v1479 = vpop.permute.xlu0 %1478
    %1480 = vrot.lane.b32.xlu0 %v1457, 8
    %v1481 = vpop.permute.xlu0 %1480
    %1490 = vst.msk [vmem:[#allocation2 + $0x40] sm:$0xff] %vm1130, %v1467
    %1491 = vst.msk [vmem:[#allocation2 + $0x48] sm:$0xff] %vm1130, %v1469
    %1492 = vst.msk [vmem:[#allocation2 + $0x50] sm:$0xff] %vm1130, %v1471
    %1493 = vst.msk [vmem:[#allocation2 + $0x58] sm:$0xff] %vm1130, %v1473
    %1494 = vst.msk [vmem:[#allocation2 + $0x60] sm:$0xff] %vm1130, %v1475
    %1495 = vst.msk [vmem:[#allocation2 + $0x68] sm:$0xff] %vm1130, %v1477
    %1496 = vst.msk [vmem:[#allocation2 + $0x70] sm:$0xff] %vm1130, %v1479
    %1497 = vst.msk [vmem:[#allocation2 + $0x78] sm:$0xff] %vm1130, %v1481
    %v1498 = vld [vmem:[%s1433 + $0x2] sm:$0xff]
    %v1499 = vld [vmem:[%s1433 + $0xa] sm:$0xff]
    %v1500 = vld [vmem:[%s1433 + $0x12] sm:$0xff]
    %v1501 = vld [vmem:[%s1433 + $0x1a] sm:$0xff]
    %v1502 = vld [vmem:[%s1433 + $0x22] sm:$0xff]
    %v1503 = vld [vmem:[%s1433 + $0x2a] sm:$0xff]
    %v1504 = vld [vmem:[%s1433 + $0x32] sm:$0xff]
    %v1505 = vld [vmem:[%s1433 + $0x3a] sm:$0xff]
    %1514 = vrot.lane.b32.xlu0 %v1498, 16
    %v1515 = vpop.permute.xlu0 %1514
    %1516 = vrot.lane.b32.xlu0 %v1499, 16
    %v1517 = vpop.permute.xlu0 %1516
    %1518 = vrot.lane.b32.xlu0 %v1500, 16
    %v1519 = vpop.permute.xlu0 %1518
    %1520 = vrot.lane.b32.xlu0 %v1501, 16
    %v1521 = vpop.permute.xlu0 %1520
    %1522 = vrot.lane.b32.xlu0 %v1502, 16
    %v1523 = vpop.permute.xlu0 %1522
    %1524 = vrot.lane.b32.xlu0 %v1503, 16
    %v1525 = vpop.permute.xlu0 %1524
    %1526 = vrot.lane.b32.xlu0 %v1504, 16
    %v1527 = vpop.permute.xlu0 %1526
    %1528 = vrot.lane.b32.xlu0 %v1505, 16
    %v1529 = vpop.permute.xlu0 %1528
    %1538 = vst.msk [vmem:[#allocation2 + $0x40] sm:$0xff] %vm1179, %v1515
    %1539 = vst.msk [vmem:[#allocation2 + $0x48] sm:$0xff] %vm1179, %v1517
    %1540 = vst.msk [vmem:[#allocation2 + $0x50] sm:$0xff] %vm1179, %v1519
    %1541 = vst.msk [vmem:[#allocation2 + $0x58] sm:$0xff] %vm1179, %v1521
    %1542 = vst.msk [vmem:[#allocation2 + $0x60] sm:$0xff] %vm1179, %v1523
    %1543 = vst.msk [vmem:[#allocation2 + $0x68] sm:$0xff] %vm1179, %v1525
    %1544 = vst.msk [vmem:[#allocation2 + $0x70] sm:$0xff] %vm1179, %v1527
    %1545 = vst.msk [vmem:[#allocation2 + $0x78] sm:$0xff] %vm1179, %v1529
    %v1546 = vld [vmem:[%s1433 + $0x3] sm:$0xff]
    %v1547 = vld [vmem:[%s1433 + $0xb] sm:$0xff]
    %v1548 = vld [vmem:[%s1433 + $0x13] sm:$0xff]
    %v1549 = vld [vmem:[%s1433 + $0x1b] sm:$0xff]
    %v1550 = vld [vmem:[%s1433 + $0x23] sm:$0xff]
    %v1551 = vld [vmem:[%s1433 + $0x2b] sm:$0xff]
    %v1552 = vld [vmem:[%s1433 + $0x33] sm:$0xff]
    %v1553 = vld [vmem:[%s1433 + $0x3b] sm:$0xff]
    %1562 = vrot.lane.b32.xlu0 %v1546, 24
    %v1563 = vpop.permute.xlu0 %1562
    %1564 = vrot.lane.b32.xlu0 %v1547, 24
    %v1565 = vpop.permute.xlu0 %1564
    %1566 = vrot.lane.b32.xlu0 %v1548, 24
    %v1567 = vpop.permute.xlu0 %1566
    %1568 = vrot.lane.b32.xlu0 %v1549, 24
    %v1569 = vpop.permute.xlu0 %1568
    %1570 = vrot.lane.b32.xlu0 %v1550, 24
    %v1571 = vpop.permute.xlu0 %1570
    %1572 = vrot.lane.b32.xlu0 %v1551, 24
    %v1573 = vpop.permute.xlu0 %1572
    %1574 = vrot.lane.b32.xlu0 %v1552, 24
    %v1575 = vpop.permute.xlu0 %1574
    %1576 = vrot.lane.b32.xlu0 %v1553, 24
    %v1577 = vpop.permute.xlu0 %1576
    %1586 = vst.msk [vmem:[#allocation2 + $0x40] sm:$0xff] %vm1228, %v1563
    %1587 = vst.msk [vmem:[#allocation2 + $0x48] sm:$0xff] %vm1228, %v1565
    %1588 = vst.msk [vmem:[#allocation2 + $0x50] sm:$0xff] %vm1228, %v1567
    %1589 = vst.msk [vmem:[#allocation2 + $0x58] sm:$0xff] %vm1228, %v1569
    %1590 = vst.msk [vmem:[#allocation2 + $0x60] sm:$0xff] %vm1228, %v1571
    %1591 = vst.msk [vmem:[#allocation2 + $0x68] sm:$0xff] %vm1228, %v1573
    %1592 = vst.msk [vmem:[#allocation2 + $0x70] sm:$0xff] %vm1228, %v1575
    %1593 = vst.msk [vmem:[#allocation2 + $0x78] sm:$0xff] %vm1228, %v1577
    %v1594 = vld [vmem:[%s1433 + $0x4] sm:$0xff]
    %v1595 = vld [vmem:[%s1433 + $0xc] sm:$0xff]
    %v1596 = vld [vmem:[%s1433 + $0x14] sm:$0xff]
    %v1597 = vld [vmem:[%s1433 + $0x1c] sm:$0xff]
    %v1598 = vld [vmem:[%s1433 + $0x24] sm:$0xff]
    %v1599 = vld [vmem:[%s1433 + $0x2c] sm:$0xff]
    %v1600 = vld [vmem:[%s1433 + $0x34] sm:$0xff]
    %v1601 = vld [vmem:[%s1433 + $0x3c] sm:$0xff]
    %1610 = vrot.lane.b32.xlu0 %v1594, 32
    %v1611 = vpop.permute.xlu0 %1610
    %1612 = vrot.lane.b32.xlu0 %v1595, 32
    %v1613 = vpop.permute.xlu0 %1612
    %1614 = vrot.lane.b32.xlu0 %v1596, 32
    %v1615 = vpop.permute.xlu0 %1614
    %1616 = vrot.lane.b32.xlu0 %v1597, 32
    %v1617 = vpop.permute.xlu0 %1616
    %1618 = vrot.lane.b32.xlu0 %v1598, 32
    %v1619 = vpop.permute.xlu0 %1618
    %1620 = vrot.lane.b32.xlu0 %v1599, 32
    %v1621 = vpop.permute.xlu0 %1620
    %1622 = vrot.lane.b32.xlu0 %v1600, 32
    %v1623 = vpop.permute.xlu0 %1622
    %1624 = vrot.lane.b32.xlu0 %v1601, 32
    %v1625 = vpop.permute.xlu0 %1624
    %1634 = vst.msk [vmem:[#allocation2 + $0x40] sm:$0xff] %vm1277, %v1611
    %1635 = vst.msk [vmem:[#allocation2 + $0x48] sm:$0xff] %vm1277, %v1613
    %1636 = vst.msk [vmem:[#allocation2 + $0x50] sm:$0xff] %vm1277, %v1615
    %1637 = vst.msk [vmem:[#allocation2 + $0x58] sm:$0xff] %vm1277, %v1617
    %1638 = vst.msk [vmem:[#allocation2 + $0x60] sm:$0xff] %vm1277, %v1619
    %1639 = vst.msk [vmem:[#allocation2 + $0x68] sm:$0xff] %vm1277, %v1621
    %1640 = vst.msk [vmem:[#allocation2 + $0x70] sm:$0xff] %vm1277, %v1623
    %1641 = vst.msk [vmem:[#allocation2 + $0x78] sm:$0xff] %vm1277, %v1625
    %v1642 = vld [vmem:[%s1433 + $0x5] sm:$0xff]
    %v1643 = vld [vmem:[%s1433 + $0xd] sm:$0xff]
    %v1644 = vld [vmem:[%s1433 + $0x15] sm:$0xff]
    %v1645 = vld [vmem:[%s1433 + $0x1d] sm:$0xff]
    %v1646 = vld [vmem:[%s1433 + $0x25] sm:$0xff]
    %v1647 = vld [vmem:[%s1433 + $0x2d] sm:$0xff]
    %v1648 = vld [vmem:[%s1433 + $0x35] sm:$0xff]
    %v1649 = vld [vmem:[%s1433 + $0x3d] sm:$0xff]
    %1658 = vrot.lane.b32.xlu0 %v1642, 40
    %v1659 = vpop.permute.xlu0 %1658
    %1660 = vrot.lane.b32.xlu0 %v1643, 40
    %v1661 = vpop.permute.xlu0 %1660
    %1662 = vrot.lane.b32.xlu0 %v1644, 40
    %v1663 = vpop.permute.xlu0 %1662
    %1664 = vrot.lane.b32.xlu0 %v1645, 40
    %v1665 = vpop.permute.xlu0 %1664
    %1666 = vrot.lane.b32.xlu0 %v1646, 40
    %v1667 = vpop.permute.xlu0 %1666
    %1668 = vrot.lane.b32.xlu0 %v1647, 40
    %v1669 = vpop.permute.xlu0 %1668
    %1670 = vrot.lane.b32.xlu0 %v1648, 40
    %v1671 = vpop.permute.xlu0 %1670
    %1672 = vrot.lane.b32.xlu0 %v1649, 40
    %v1673 = vpop.permute.xlu0 %1672
    %1682 = vst.msk [vmem:[#allocation2 + $0x40] sm:$0xff] %vm1326, %v1659
    %1683 = vst.msk [vmem:[#allocation2 + $0x48] sm:$0xff] %vm1326, %v1661
    %1684 = vst.msk [vmem:[#allocation2 + $0x50] sm:$0xff] %vm1326, %v1663
    %1685 = vst.msk [vmem:[#allocation2 + $0x58] sm:$0xff] %vm1326, %v1665
    %1686 = vst.msk [vmem:[#allocation2 + $0x60] sm:$0xff] %vm1326, %v1667
    %1687 = vst.msk [vmem:[#allocation2 + $0x68] sm:$0xff] %vm1326, %v1669
    %1688 = vst.msk [vmem:[#allocation2 + $0x70] sm:$0xff] %vm1326, %v1671
    %1689 = vst.msk [vmem:[#allocation2 + $0x78] sm:$0xff] %vm1326, %v1673
    %v1690 = vld [vmem:[%s1433 + $0x6] sm:$0xff]
    %v1691 = vld [vmem:[%s1433 + $0xe] sm:$0xff]
    %v1692 = vld [vmem:[%s1433 + $0x16] sm:$0xff]
    %v1693 = vld [vmem:[%s1433 + $0x1e] sm:$0xff]
    %v1694 = vld [vmem:[%s1433 + $0x26] sm:$0xff]
    %v1695 = vld [vmem:[%s1433 + $0x2e] sm:$0xff]
    %v1696 = vld [vmem:[%s1433 + $0x36] sm:$0xff]
    %v1697 = vld [vmem:[%s1433 + $0x3e] sm:$0xff]
    %1706 = vrot.lane.b32.xlu0 %v1690, 48
    %v1707 = vpop.permute.xlu0 %1706
    %1708 = vrot.lane.b32.xlu0 %v1691, 48
    %v1709 = vpop.permute.xlu0 %1708
    %1710 = vrot.lane.b32.xlu0 %v1692, 48
    %v1711 = vpop.permute.xlu0 %1710
    %1712 = vrot.lane.b32.xlu0 %v1693, 48
    %v1713 = vpop.permute.xlu0 %1712
    %1714 = vrot.lane.b32.xlu0 %v1694, 48
    %v1715 = vpop.permute.xlu0 %1714
    %1716 = vrot.lane.b32.xlu0 %v1695, 48
    %v1717 = vpop.permute.xlu0 %1716
    %1718 = vrot.lane.b32.xlu0 %v1696, 48
    %v1719 = vpop.permute.xlu0 %1718
    %1720 = vrot.lane.b32.xlu0 %v1697, 48
    %v1721 = vpop.permute.xlu0 %1720
    %1730 = vst.msk [vmem:[#allocation2 + $0x40] sm:$0xff] %vm1375, %v1707
    %1731 = vst.msk [vmem:[#allocation2 + $0x48] sm:$0xff] %vm1375, %v1709
    %1732 = vst.msk [vmem:[#allocation2 + $0x50] sm:$0xff] %vm1375, %v1711
    %1733 = vst.msk [vmem:[#allocation2 + $0x58] sm:$0xff] %vm1375, %v1713
    %1734 = vst.msk [vmem:[#allocation2 + $0x60] sm:$0xff] %vm1375, %v1715
    %1735 = vst.msk [vmem:[#allocation2 + $0x68] sm:$0xff] %vm1375, %v1717
    %1736 = vst.msk [vmem:[#allocation2 + $0x70] sm:$0xff] %vm1375, %v1719
    %1737 = vst.msk [vmem:[#allocation2 + $0x78] sm:$0xff] %vm1375, %v1721
    %v1738 = vld [vmem:[%s1433 + $0x7] sm:$0xff]
    %v1739 = vld [vmem:[%s1433 + $0xf] sm:$0xff]
    %v1740 = vld [vmem:[%s1433 + $0x17] sm:$0xff]
    %v1741 = vld [vmem:[%s1433 + $0x1f] sm:$0xff]
    %v1742 = vld [vmem:[%s1433 + $0x27] sm:$0xff]
    %v1743 = vld [vmem:[%s1433 + $0x2f] sm:$0xff]
    %v1744 = vld [vmem:[%s1433 + $0x37] sm:$0xff]
    %v1745 = vld [vmem:[%s1433 + $0x3f] sm:$0xff]
    %1754 = vrot.lane.b32.xlu0 %v1738, 56
    %v1755 = vpop.permute.xlu0 %1754
    %1756 = vrot.lane.b32.xlu0 %v1739, 56
    %v1757 = vpop.permute.xlu0 %1756
    %1758 = vrot.lane.b32.xlu0 %v1740, 56
    %v1759 = vpop.permute.xlu0 %1758
    %1760 = vrot.lane.b32.xlu0 %v1741, 56
    %v1761 = vpop.permute.xlu0 %1760
    %1762 = vrot.lane.b32.xlu0 %v1742, 56
    %v1763 = vpop.permute.xlu0 %1762
    %1764 = vrot.lane.b32.xlu0 %v1743, 56
    %v1765 = vpop.permute.xlu0 %1764
    %1766 = vrot.lane.b32.xlu0 %v1744, 56
    %v1767 = vpop.permute.xlu0 %1766
    %1768 = vrot.lane.b32.xlu0 %v1745, 56
    %v1769 = vpop.permute.xlu0 %1768
    %1778 = vst.msk [vmem:[#allocation2 + $0x40] sm:$0xff] %vm1424, %v1755
    %1779 = vst.msk [vmem:[#allocation2 + $0x48] sm:$0xff] %vm1424, %v1757
    %1780 = vst.msk [vmem:[#allocation2 + $0x50] sm:$0xff] %vm1424, %v1759
    %1781 = vst.msk [vmem:[#allocation2 + $0x58] sm:$0xff] %vm1424, %v1761
    %1782 = vst.msk [vmem:[#allocation2 + $0x60] sm:$0xff] %vm1424, %v1763
    %1783 = vst.msk [vmem:[#allocation2 + $0x68] sm:$0xff] %vm1424, %v1765
    %1784 = vst.msk [vmem:[#allocation2 + $0x70] sm:$0xff] %vm1424, %v1767
    %1785 = vst.msk [vmem:[#allocation2 + $0x78] sm:$0xff] %vm1424, %v1769
    %v1786 = vld [vmem:[#allocation2] sm:$0xff]
    %v1787 = vld [vmem:[#allocation2 + $0x8] sm:$0xff]
    %v1788 = vld [vmem:[#allocation2 + $0x10] sm:$0xff]
    %v1789 = vld [vmem:[#allocation2 + $0x18] sm:$0xff]
    %v1790 = vld [vmem:[#allocation2 + $0x20] sm:$0xff]
    %v1791 = vld [vmem:[#allocation2 + $0x28] sm:$0xff]
    %v1792 = vld [vmem:[#allocation2 + $0x30] sm:$0xff]
    %v1793 = vld [vmem:[#allocation2 + $0x38] sm:$0xff]
    %v1794 = vld [vmem:[#allocation2 + $0x40] sm:$0xff]
    %v1795 = vld [vmem:[#allocation2 + $0x48] sm:$0xff]
    %v1796 = vld [vmem:[#allocation2 + $0x50] sm:$0xff]
    %v1797 = vld [vmem:[#allocation2 + $0x58] sm:$0xff]
    %v1798 = vld [vmem:[#allocation2 + $0x60] sm:$0xff]
    %v1799 = vld [vmem:[#allocation2 + $0x68] sm:$0xff]
    %v1800 = vld [vmem:[#allocation2 + $0x70] sm:$0xff]
    %v1801 = vld [vmem:[#allocation2 + $0x78] sm:$0xff]
    %v1802 = vld [vmem:[%s1] sm:$0xff]
    %v1803 = vld [vmem:[%s1 + $0x8] sm:$0xff]
    %v1804 = vld [vmem:[%s1 + $0x10] sm:$0xff]
    %v1805 = vld [vmem:[%s1 + $0x18] sm:$0xff]
    %v1806 = vld [vmem:[%s1 + $0x20] sm:$0xff]
    %v1807 = vld [vmem:[%s1 + $0x28] sm:$0xff]
    %v1808 = vld [vmem:[%s1 + $0x30] sm:$0xff]
    %v1809 = vld [vmem:[%s1 + $0x38] sm:$0xff]
    %v1810 = vld [vmem:[%s2] sm:$0x1]
    %v1812 = vlaneseq
    %v1813 = vshrl.u32 %v1812, 7
    %v1814 = vsub.s32 0, %v1813
    %v1815 = vrot.slane %v1810, %v1814
    %vm1817 = vcmask 523264
    %v1819 = vsel %vm1817, %v1786, 0
    %v1822 = vsel %vm1817, %v1787, 0
    %v1825 = vsel %vm1817, %v1788, 0
    %v1828 = vsel %vm1817, %v1789, 0
    %v1831 = vsel %vm1817, %v1790, 0
    %v1834 = vsel %vm1817, %v1791, 0
    %v1837 = vsel %vm1817, %v1792, 0
    %v1840 = vsel %vm1817, %v1793, 0
    %v1843 = vsel %vm1817, %v1794, 0
    %v1846 = vsel %vm1817, %v1795, 0
    %v1849 = vsel %vm1817, %v1796, 0
    %v1852 = vsel %vm1817, %v1797, 0
    %v1855 = vsel %vm1817, %v1798, 0
    %v1858 = vsel %vm1817, %v1799, 0
    %v1861 = vsel %vm1817, %v1800, 0
    %v1864 = vsel %vm1817, %v1801, 0
    %1866 = vmatprep.subr.mxu0 0.0
    %1867 = vmatpush1.msra.mxu0 %v1802
    %1868 = vmatprep.subr.mxu0 0.0
    %1869 = vmatpush1.msra.mxu0 %v1803
    %1870 = vmatprep.subr.mxu0 0.0
    %1871 = vmatpush1.msra.mxu0 %v1804
    %1872 = vmatprep.subr.mxu0 0.0
    %1873 = vmatpush1.msra.mxu0 %v1805
    %1874 = vmatprep.subr.mxu0 0.0
    %1875 = vmatpush1.msra.mxu0 %v1806
    %1876 = vmatprep.subr.mxu0 0.0
    %1877 = vmatpush1.msra.mxu0 %v1807
    %1878 = vmatprep.subr.mxu0 0.0
    %1879 = vmatpush1.msra.mxu0 %v1808
    %1880 = vmatprep.subr.mxu0 0.0
    %1881 = vmatpush1.msra.mxu0 %v1809
    %1882 = vmatprep.subr.mxu0 0.0
    %1883 = vmatpush1.msra.mxu0 0.0
    %1884 = vmatprep.subr.mxu0 0.0
    %1885 = vmatpush1.msra.mxu0 0.0
    %1886 = vmatprep.subr.mxu0 0.0
    %1887 = vmatpush1.msra.mxu0 0.0
    %1888 = vmatprep.subr.mxu0 0.0
    %1889 = vmatpush1.msra.mxu0 0.0
    %1890 = vmatprep.subr.mxu0 0.0
    %1891 = vmatpush1.msra.mxu0 0.0
    %1892 = vmatprep.subr.mxu0 0.0
    %1893 = vmatpush1.msra.mxu0 0.0
    %1894 = vmatprep.subr.mxu0 0.0
    %1895 = vmatpush1.msra.mxu0 0.0
    %1896 = vmatprep.subr.mxu0 0.0
    %1897 = vmatpush1.msra.mxu0 0.0
    %1898 = vmatprep.subr.mxu0 0.0
    %1899 = vmatpush1.msra.mxu0 0.0
    %1900 = vmatprep.subr.mxu0 0.0
    %1901 = vmatpush1.msra.mxu0 0.0
    %1902 = vmatprep.subr.mxu0 0.0
    %1903 = vmatpush1.msra.mxu0 0.0
    %1904 = vmatprep.subr.mxu0 0.0
    %1905 = vmatpush1.msra.mxu0 0.0
    %1906 = vmatprep.subr.mxu0 0.0
    %1907 = vmatpush1.msra.mxu0 0.0
    %1908 = vmatprep.subr.mxu0 0.0
    %1909 = vmatpush1.msra.mxu0 0.0
    %1910 = vmatprep.subr.mxu0 0.0
    %1911 = vmatpush1.msra.mxu0 0.0
    %1912 = vmatprep.subr.mxu0 0.0
    %1913 = vmatpush1.msra.mxu0 0.0
    %1914 = vmatprep.subr.mxu0 0.0
    %1915 = vmatpush1.msra.mxu0 0.0
    %1916 = vmatprep.subr.mxu0 0.0
    %1917 = vmatpush1.msra.mxu0 0.0
    %1918 = vmatprep.subr.mxu0 0.0
    %1919 = vmatpush1.msra.mxu0 0.0
    %1920 = vmatprep.subr.mxu0 0.0
    %1921 = vmatpush1.msra.mxu0 0.0
    %1922 = vmatprep.subr.mxu0 0.0
    %1923 = vmatpush1.msra.mxu0 0.0
    %1924 = vmatprep.subr.mxu0 0.0
    %1925 = vmatpush1.msra.mxu0 0.0
    %1926 = vmatprep.subr.mxu0 0.0
    %1927 = vmatpush1.msra.mxu0 0.0
    %1928 = vmatprep.subr.mxu0 0.0
    %1929 = vmatpush1.msra.mxu0 0.0
    %1930 = vmatprep.mubr.f32.mxu0 0.0
    %1931 = vmatmul.mubr.f32.gmra.mrb[0].mxu0 %v1819
    %v1932 = vpop.f32.mrb[0].mxu0
    %v1933 = vadd.f32 %v1815, %v1932
    %v1934 = vpop.f32.mrb[0].mxu0
    %1935 = vmatprep.mubr.f32.mxu0 0.0
    %1936 = vmatmul.mubr.f32.gmra.mrb[0].mxu0 %v1822
    %v1937 = vpop.f32.mrb[0].mxu0
    %v1938 = vadd.f32 %v1815, %v1937
    %v1939 = vpop.f32.mrb[0].mxu0
    %1940 = vmatprep.mubr.f32.mxu0 0.0
    %1941 = vmatmul.mubr.f32.gmra.mrb[0].mxu0 %v1825
    %v1942 = vpop.f32.mrb[0].mxu0
    %v1943 = vadd.f32 %v1815, %v1942
    %v1944 = vpop.f32.mrb[0].mxu0
    %1945 = vmatprep.mubr.f32.mxu0 0.0
    %1946 = vmatmul.mubr.f32.gmra.mrb[0].mxu0 %v1828
    %v1947 = vpop.f32.mrb[0].mxu0
    %v1948 = vadd.f32 %v1815, %v1947
    %v1949 = vpop.f32.mrb[0].mxu0
    %1950 = vmatprep.mubr.f32.mxu0 0.0
    %1951 = vmatmul.mubr.f32.gmra.mrb[0].mxu0 %v1831
    %v1952 = vpop.f32.mrb[0].mxu0
    %v1953 = vadd.f32 %v1815, %v1952
    %v1954 = vpop.f32.mrb[0].mxu0
    %1955 = vmatprep.mubr.f32.mxu0 0.0
    %1956 = vmatmul.mubr.f32.gmra.mrb[0].mxu0 %v1834
    %v1957 = vpop.f32.mrb[0].mxu0
    %v1958 = vadd.f32 %v1815, %v1957
    %v1959 = vpop.f32.mrb[0].mxu0
    %1960 = vmatprep.mubr.f32.mxu0 0.0
    %1961 = vmatmul.mubr.f32.gmra.mrb[0].mxu0 %v1837
    %v1962 = vpop.f32.mrb[0].mxu0
    %v1963 = vadd.f32 %v1815, %v1962
    %v1964 = vpop.f32.mrb[0].mxu0
    %1965 = vmatprep.mubr.f32.mxu0 0.0
    %1966 = vmatmul.mubr.f32.gmra.mrb[0].mxu0 %v1840
    %v1967 = vpop.f32.mrb[0].mxu0
    %v1968 = vadd.f32 %v1815, %v1967
    %v1969 = vpop.f32.mrb[0].mxu0
    %1970 = vmatprep.mubr.f32.mxu0 0.0
    %1971 = vmatmul.mubr.f32.gmra.mrb[0].mxu0 %v1843
    %v1972 = vpop.f32.mrb[0].mxu0
    %v1973 = vadd.f32 %v1815, %v1972
    %v1974 = vpop.f32.mrb[0].mxu0
    %1975 = vmatprep.mubr.f32.mxu0 0.0
    %1976 = vmatmul.mubr.f32.gmra.mrb[0].mxu0 %v1846
    %v1977 = vpop.f32.mrb[0].mxu0
    %v1978 = vadd.f32 %v1815, %v1977
    %v1979 = vpop.f32.mrb[0].mxu0
    %1980 = vmatprep.mubr.f32.mxu0 0.0
    %1981 = vmatmul.mubr.f32.gmra.mrb[0].mxu0 %v1849
    %v1982 = vpop.f32.mrb[0].mxu0
    %v1983 = vadd.f32 %v1815, %v1982
    %v1984 = vpop.f32.mrb[0].mxu0
    %1985 = vmatprep.mubr.f32.mxu0 0.0
    %1986 = vmatmul.mubr.f32.gmra.mrb[0].mxu0 %v1852
    %v1987 = vpop.f32.mrb[0].mxu0
    %v1988 = vadd.f32 %v1815, %v1987
    %v1989 = vpop.f32.mrb[0].mxu0
    %1990 = vmatprep.mubr.f32.mxu0 0.0
    %1991 = vmatmul.mubr.f32.gmra.mrb[0].mxu0 %v1855
    %v1992 = vpop.f32.mrb[0].mxu0
    %v1993 = vadd.f32 %v1815, %v1992
    %v1994 = vpop.f32.mrb[0].mxu0
    %1995 = vmatprep.mubr.f32.mxu0 0.0
    %1996 = vmatmul.mubr.f32.gmra.mrb[0].mxu0 %v1858
    %v1997 = vpop.f32.mrb[0].mxu0
    %v1998 = vadd.f32 %v1815, %v1997
    %v1999 = vpop.f32.mrb[0].mxu0
    %2000 = vmatprep.mubr.f32.mxu0 0.0
    %2001 = vmatmul.mubr.f32.gmra.mrb[0].mxu0 %v1861
    %v2002 = vpop.f32.mrb[0].mxu0
    %v2003 = vadd.f32 %v1815, %v2002
    %v2004 = vpop.f32.mrb[0].mxu0
    %2005 = vmatprep.mubr.f32.mxu0 0.0
    %2006 = vmatmul.mubr.f32.gmra.mrb[0].mxu0 %v1864
    %v2007 = vpop.f32.mrb[0].mxu0
    %v2008 = vadd.f32 %v1815, %v2007
    %v2009 = vpop.f32.mrb[0].mxu0
    %2010 = vdwg.mxu0
    %v2011 = vxor.u32 %v1933, 2147483648
    %v2012 = vxor.u32 %v1938, 2147483648
    %v2013 = vxor.u32 %v1943, 2147483648
    %v2014 = vxor.u32 %v1948, 2147483648
    %v2015 = vxor.u32 %v1953, 2147483648
    %v2016 = vxor.u32 %v1958, 2147483648
    %v2017 = vxor.u32 %v1963, 2147483648
    %v2018 = vxor.u32 %v1968, 2147483648
    %v2019 = vxor.u32 %v1973, 2147483648
    %v2020 = vxor.u32 %v1978, 2147483648
    %v2021 = vxor.u32 %v1983, 2147483648
    %v2022 = vxor.u32 %v1988, 2147483648
    %v2023 = vxor.u32 %v1993, 2147483648
    %v2024 = vxor.u32 %v1998, 2147483648
    %v2025 = vxor.u32 %v2003, 2147483648
    %v2026 = vxor.u32 %v2008, 2147483648
    %v2027 = vmul.f32 %v2011, 1.442695
    %v2028 = vpow.pop %v2027
    %v2029 = vmul.f32 %v2012, 1.442695
    %v2030 = vpow.pop %v2029
    %v2031 = vmul.f32 %v2013, 1.442695
    %v2032 = vpow.pop %v2031
    %v2033 = vmul.f32 %v2014, 1.442695
    %v2034 = vpow.pop %v2033
    %v2035 = vmul.f32 %v2015, 1.442695
    %v2036 = vpow.pop %v2035
    %v2037 = vmul.f32 %v2016, 1.442695
    %v2038 = vpow.pop %v2037
    %v2039 = vmul.f32 %v2017, 1.442695
    %v2040 = vpow.pop %v2039
    %v2041 = vmul.f32 %v2018, 1.442695
    %v2042 = vpow.pop %v2041
    %v2043 = vmul.f32 %v2019, 1.442695
    %v2044 = vpow.pop %v2043
    %v2045 = vmul.f32 %v2020, 1.442695
    %v2046 = vpow.pop %v2045
    %v2047 = vmul.f32 %v2021, 1.442695
    %v2048 = vpow.pop %v2047
    %v2049 = vmul.f32 %v2022, 1.442695
    %v2050 = vpow.pop %v2049
    %v2051 = vmul.f32 %v2023, 1.442695
    %v2052 = vpow.pop %v2051
    %v2053 = vmul.f32 %v2024, 1.442695
    %v2054 = vpow.pop %v2053
    %v2055 = vmul.f32 %v2025, 1.442695
    %v2056 = vpow.pop %v2055
    %v2057 = vmul.f32 %v2026, 1.442695
    %v2058 = vpow.pop %v2057
    %v2059 = vadd.f32 %v2028, 1.0
    %v2060 = vadd.f32 %v2030, 1.0
    %v2061 = vadd.f32 %v2032, 1.0
    %v2062 = vadd.f32 %v2034, 1.0
    %v2063 = vadd.f32 %v2036, 1.0
    %v2064 = vadd.f32 %v2038, 1.0
    %v2065 = vadd.f32 %v2040, 1.0
    %v2066 = vadd.f32 %v2042, 1.0
    %v2067 = vadd.f32 %v2044, 1.0
    %v2068 = vadd.f32 %v2046, 1.0
    %v2069 = vadd.f32 %v2048, 1.0
    %v2070 = vadd.f32 %v2050, 1.0
    %v2071 = vadd.f32 %v2052, 1.0
    %v2072 = vadd.f32 %v2054, 1.0
    %v2073 = vadd.f32 %v2056, 1.0
    %v2074 = vadd.f32 %v2058, 1.0
    %v2075 = vrcp.pop %v2059
    %v2076 = vmul.f32 1.0, %v2075
    %v2077 = vrcp.pop %v2060
    %v2078 = vmul.f32 1.0, %v2077
    %v2079 = vrcp.pop %v2061
    %v2080 = vmul.f32 1.0, %v2079
    %v2081 = vrcp.pop %v2062
    %v2082 = vmul.f32 1.0, %v2081
    %v2083 = vrcp.pop %v2063
    %v2084 = vmul.f32 1.0, %v2083
    %v2085 = vrcp.pop %v2064
    %v2086 = vmul.f32 1.0, %v2085
    %v2087 = vrcp.pop %v2065
    %v2088 = vmul.f32 1.0, %v2087
    %v2089 = vrcp.pop %v2066
    %v2090 = vmul.f32 1.0, %v2089
    %v2091 = vrcp.pop %v2067
    %v2092 = vmul.f32 1.0, %v2091
    %v2093 = vrcp.pop %v2068
    %v2094 = vmul.f32 1.0, %v2093
    %v2095 = vrcp.pop %v2069
    %v2096 = vmul.f32 1.0, %v2095
    %v2097 = vrcp.pop %v2070
    %v2098 = vmul.f32 1.0, %v2097
    %v2099 = vrcp.pop %v2071
    %v2100 = vmul.f32 1.0, %v2099
    %v2101 = vrcp.pop %v2072
    %v2102 = vmul.f32 1.0, %v2101
    %v2103 = vrcp.pop %v2073
    %v2104 = vmul.f32 1.0, %v2103
    %v2105 = vrcp.pop %v2074
    %v2106 = vmul.f32 1.0, %v2105
    %v2107 = vmul.f32 %v1933, %v2076
    %v2108 = vmul.f32 %v1938, %v2078
    %v2109 = vmul.f32 %v1943, %v2080
    %v2110 = vmul.f32 %v1948, %v2082
    %v2111 = vmul.f32 %v1953, %v2084
    %v2112 = vmul.f32 %v1958, %v2086
    %v2113 = vmul.f32 %v1963, %v2088
    %v2114 = vmul.f32 %v1968, %v2090
    %v2115 = vmul.f32 %v1973, %v2092
    %v2116 = vmul.f32 %v1978, %v2094
    %v2117 = vmul.f32 %v1983, %v2096
    %v2118 = vmul.f32 %v1988, %v2098
    %v2119 = vmul.f32 %v1993, %v2100
    %v2120 = vmul.f32 %v1998, %v2102
    %v2121 = vmul.f32 %v2003, %v2104
    %v2122 = vmul.f32 %v2008, %v2106
    %v2123 = vadd.f32 %v2107, %v2108
    %v2124 = vadd.f32 %v2123, %v2109
    %v2125 = vadd.f32 %v2124, %v2110
    %v2126 = vadd.f32 %v2125, %v2111
    %v2127 = vadd.f32 %v2126, %v2112
    %v2128 = vadd.f32 %v2127, %v2113
    %v2129 = vadd.f32 %v2128, %v2114
    %v2130 = vrot.slane %v2129, 4
    %v2131 = vadd.f32 %v2129, %v2130
    %v2132 = vrot.slane %v2131, 2
    %v2133 = vadd.f32 %v2131, %v2132
    %v2134 = vrot.slane %v2133, 1
    %v2135 = vadd.f32 %v2133, %v2134
    %v2136 = vadd.f32 %v2115, %v2116
    %v2137 = vadd.f32 %v2136, %v2117
    %v2138 = vadd.f32 %v2137, %v2118
    %v2139 = vadd.f32 %v2138, %v2119
    %v2140 = vadd.f32 %v2139, %v2120
    %v2141 = vadd.f32 %v2140, %v2121
    %v2142 = vadd.f32 %v2141, %v2122
    %v2143 = vrot.slane %v2142, 4
    %v2144 = vadd.f32 %v2142, %v2143
    %v2145 = vrot.slane %v2144, 2
    %v2146 = vadd.f32 %v2144, %v2145
    %v2147 = vrot.slane %v2146, 1
    %v2148 = vadd.f32 %v2146, %v2147
    %v2149 = vmul.f32 %v2135, 0.015625
    %v2150 = vmul.f32 %v2148, 0.015625
    %s2151 = smul.u32 4, 16
    %s2152 = smul.u32 %s2151, 10
    %s2153 = sshll.u32 %s2152, 4
    %2154 = dma.done [#allocation5], %s2153
    %v2155 = vpack.c.bf16 %v2149, %v2149
    %v2156 = vpack.c.bf16 %v2150, %v2150
    %v2157 = vld [vmem:[#allocation3] sm:$0xff]
    %v2158 = vld [vmem:[#allocation3 + $0x8] sm:$0xff]
    %v2159 = vld [vmem:[#allocation3 + $0x10] sm:$0xff]
    %v2160 = vld [vmem:[#allocation3 + $0x18] sm:$0xff]
    %v2161 = vld [vmem:[#allocation3 + $0x20] sm:$0xff]
    %v2162 = vld [vmem:[#allocation3 + $0x28] sm:$0xff]
    %v2163 = vld [vmem:[#allocation3 + $0x30] sm:$0xff]
    %v2164 = vld [vmem:[#allocation3 + $0x38] sm:$0xff]
    %v2165 = vld [vmem:[#allocation3 + $0x40] sm:$0xff]
    %v2166 = vld [vmem:[#allocation3 + $0x48] sm:$0xff]
    %v2167 = vld [vmem:[#allocation3 + $0x50] sm:$0xff]
    %v2168 = vld [vmem:[#allocation3 + $0x58] sm:$0xff]
    %v2169 = vld [vmem:[#allocation3 + $0x60] sm:$0xff]
    %v2170 = vld [vmem:[#allocation3 + $0x68] sm:$0xff]
    %v2171 = vld [vmem:[#allocation3 + $0x70] sm:$0xff]
    %v2172 = vld [vmem:[#allocation3 + $0x78] sm:$0xff]
    %v2173 = vld [vmem:[#allocation3 + $0x80] sm:$0xff]
    %v2174 = vld [vmem:[#allocation3 + $0x88] sm:$0xff]
    %v2175 = vld [vmem:[#allocation3 + $0x90] sm:$0xff]
    %v2176 = vld [vmem:[#allocation3 + $0x98] sm:$0xff]
    %v2177 = vld [vmem:[#allocation3 + $0xa0] sm:$0xff]
    %v2178 = vld [vmem:[#allocation3 + $0xa8] sm:$0xff]
    %v2179 = vld [vmem:[#allocation3 + $0xb0] sm:$0xff]
    %v2180 = vld [vmem:[#allocation3 + $0xb8] sm:$0xff]
    %v2181 = vld [vmem:[#allocation3 + $0xc0] sm:$0xff]
    %v2182 = vld [vmem:[#allocation3 + $0xc8] sm:$0xff]
    %v2183 = vld [vmem:[#allocation3 + $0xd0] sm:$0xff]
    %v2184 = vld [vmem:[#allocation3 + $0xd8] sm:$0xff]
    %v2185 = vld [vmem:[#allocation3 + $0xe0] sm:$0xff]
    %v2186 = vld [vmem:[#allocation3 + $0xe8] sm:$0xff]
    %v2187 = vld [vmem:[#allocation3 + $0xf0] sm:$0xff]
    %v2188 = vld [vmem:[#allocation3 + $0xf8] sm:$0xff]
    %v2189 = vld [vmem:[#allocation3 + $0x100] sm:$0xff]
    %v2190 = vld [vmem:[#allocation3 + $0x108] sm:$0xff]
    %v2191 = vld [vmem:[#allocation3 + $0x110] sm:$0xff]
    %v2192 = vld [vmem:[#allocation3 + $0x118] sm:$0xff]
    %v2193 = vld [vmem:[#allocation3 + $0x120] sm:$0xff]
    %v2194 = vld [vmem:[#allocation3 + $0x128] sm:$0xff]
    %v2195 = vld [vmem:[#allocation3 + $0x130] sm:$0xff]
    %v2196 = vld [vmem:[#allocation3 + $0x138] sm:$0xff]
    %v2197 = vld [vmem:[#allocation3 + $0x140] sm:$0xff]
    %v2198 = vld [vmem:[#allocation3 + $0x148] sm:$0xff]
    %v2199 = vld [vmem:[#allocation3 + $0x150] sm:$0xff]
    %v2200 = vld [vmem:[#allocation3 + $0x158] sm:$0xff]
    %v2201 = vld [vmem:[#allocation3 + $0x160] sm:$0xff]
    %v2202 = vld [vmem:[#allocation3 + $0x168] sm:$0xff]
    %v2203 = vld [vmem:[#allocation3 + $0x170] sm:$0xff]
    %v2204 = vld [vmem:[#allocation3 + $0x178] sm:$0xff]
    %v2205 = vld [vmem:[#allocation3 + $0x180] sm:$0xff]
    %v2206 = vld [vmem:[#allocation3 + $0x188] sm:$0xff]
    %v2207 = vld [vmem:[#allocation3 + $0x190] sm:$0xff]
    %v2208 = vld [vmem:[#allocation3 + $0x198] sm:$0xff]
    %v2209 = vld [vmem:[#allocation3 + $0x1a0] sm:$0xff]
    %v2210 = vld [vmem:[#allocation3 + $0x1a8] sm:$0xff]
    %v2211 = vld [vmem:[#allocation3 + $0x1b0] sm:$0xff]
    %v2212 = vld [vmem:[#allocation3 + $0x1b8] sm:$0xff]
    %v2213 = vld [vmem:[#allocation3 + $0x1c0] sm:$0xff]
    %v2214 = vld [vmem:[#allocation3 + $0x1c8] sm:$0xff]
    %v2215 = vld [vmem:[#allocation3 + $0x1d0] sm:$0xff]
    %v2216 = vld [vmem:[#allocation3 + $0x1d8] sm:$0xff]
    %v2217 = vld [vmem:[#allocation3 + $0x1e0] sm:$0xff]
    %v2218 = vld [vmem:[#allocation3 + $0x1e8] sm:$0xff]
    %v2219 = vld [vmem:[#allocation3 + $0x1f0] sm:$0xff]
    %v2220 = vld [vmem:[#allocation3 + $0x1f8] sm:$0xff]
    %v2221 = vld [vmem:[#allocation3 + $0x200] sm:$0xff]
    %v2222 = vld [vmem:[#allocation3 + $0x208] sm:$0xff]
    %v2223 = vld [vmem:[#allocation3 + $0x210] sm:$0xff]
    %v2224 = vld [vmem:[#allocation3 + $0x218] sm:$0xff]
    %v2225 = vld [vmem:[#allocation3 + $0x220] sm:$0xff]
    %v2226 = vld [vmem:[#allocation3 + $0x228] sm:$0xff]
    %v2227 = vld [vmem:[#allocation3 + $0x230] sm:$0xff]
    %v2228 = vld [vmem:[#allocation3 + $0x238] sm:$0xff]
    %v2229 = vld [vmem:[#allocation3 + $0x240] sm:$0xff]
    %v2230 = vld [vmem:[#allocation3 + $0x248] sm:$0xff]
    %v2231 = vld [vmem:[#allocation3 + $0x250] sm:$0xff]
    %v2232 = vld [vmem:[#allocation3 + $0x258] sm:$0xff]
    %v2233 = vld [vmem:[#allocation3 + $0x260] sm:$0xff]
    %v2234 = vld [vmem:[#allocation3 + $0x268] sm:$0xff]
    %v2235 = vld [vmem:[#allocation3 + $0x270] sm:$0xff]
    %v2236 = vld [vmem:[#allocation3 + $0x278] sm:$0xff]
    %v2237 = vld [vmem:[%s4] sm:$0xff]
    %v2238 = vld [vmem:[%s4 + $0x8] sm:$0x3]
    %v2241 = vlaneseq
    %v2242 = vshrl.u32 %v2241, 7
    %v2243 = vsub.s32 0, %v2242
    %v2244 = vrot.slane %v2237, %v2243
    %v2245 = vlaneseq
    %v2246 = vshrl.u32 %v2245, 7
    %v2247 = vsub.s32 1, %v2246
    %v2248 = vrot.slane %v2237, %v2247
    %v2249 = vlaneseq
    %v2250 = vshrl.u32 %v2249, 7
    %v2251 = vsub.s32 2, %v2250
    %v2252 = vrot.slane %v2237, %v2251
    %v2253 = vlaneseq
    %v2254 = vshrl.u32 %v2253, 7
    %v2255 = vsub.s32 3, %v2254
    %v2256 = vrot.slane %v2237, %v2255
    %v2257 = vlaneseq
    %v2258 = vshrl.u32 %v2257, 7
    %v2259 = vsub.s32 4, %v2258
    %v2260 = vrot.slane %v2237, %v2259
    %v2261 = vlaneseq
    %v2262 = vshrl.u32 %v2261, 7
    %v2263 = vsub.s32 5, %v2262
    %v2264 = vrot.slane %v2237, %v2263
    %v2265 = vlaneseq
    %v2266 = vshrl.u32 %v2265, 7
    %v2267 = vsub.s32 6, %v2266
    %v2268 = vrot.slane %v2237, %v2267
    %v2269 = vlaneseq
    %v2270 = vshrl.u32 %v2269, 7
    %v2271 = vsub.s32 7, %v2270
    %v2272 = vrot.slane %v2237, %v2271
    %v2273 = vlaneseq
    %v2274 = vshrl.u32 %v2273, 7
    %v2275 = vsub.s32 0, %v2274
    %v2276 = vrot.slane %v2238, %v2275
    %v2277 = vlaneseq
    %v2278 = vshrl.u32 %v2277, 7
    %v2279 = vsub.s32 1, %v2278
    %v2280 = vrot.slane %v2238, %v2279
    %v2293 = vunpack.c.l.b16 %v2155
    %v2294 = vunpack.c.l.b16 %v2156
    %vm2295 = vcmask 1041409
    %v2296 = vsel %vm2295, %v2294, %v2293
    %v2297 = vpack.c.b16 %v2296, %v2296
    %2299 = vmatprep.subr.bf16.mxu0 %v2158
    %2300 = vmatpush1.bf16.msra.mxu0 %v2157
    %2301 = vmatprep.subr.bf16.mxu0 %v2168
    %2302 = vmatpush1.bf16.msra.mxu0 %v2167
    %2303 = vmatprep.subr.bf16.mxu0 %v2178
    %2304 = vmatpush1.bf16.msra.mxu0 %v2177
    %2305 = vmatprep.subr.bf16.mxu0 %v2188
    %2306 = vmatpush1.bf16.msra.mxu0 %v2187
    %2307 = vmatprep.subr.bf16.mxu0 %v2198
    %2308 = vmatpush1.bf16.msra.mxu0 %v2197
    %2309 = vmatprep.subr.bf16.mxu0 %v2208
    %2310 = vmatpush1.bf16.msra.mxu0 %v2207
    %2311 = vmatprep.subr.bf16.mxu0 %v2218
    %2312 = vmatpush1.bf16.msra.mxu0 %v2217
    %2313 = vmatprep.subr.bf16.mxu0 %v2228
    %2314 = vmatpush1.bf16.msra.mxu0 %v2227
    %2315 = vmatprep.subr.bf16.mxu0 0
    %2316 = vmatpush1.bf16.msra.mxu0 0
    %2317 = vmatprep.subr.bf16.mxu0 0
    %2318 = vmatpush1.bf16.msra.mxu0 0
    %2319 = vmatprep.subr.bf16.mxu0 0
    %2320 = vmatpush1.bf16.msra.mxu0 0
    %2321 = vmatprep.subr.bf16.mxu0 0
    %2322 = vmatpush1.bf16.msra.mxu0 0
    %2323 = vmatprep.subr.bf16.mxu0 0
    %2324 = vmatpush1.bf16.msra.mxu0 0
    %2325 = vmatprep.subr.bf16.mxu0 0
    %2326 = vmatpush1.bf16.msra.mxu0 0
    %2327 = vmatprep.subr.bf16.mxu0 0
    %2328 = vmatpush1.bf16.msra.mxu0 0
    %2329 = vmatprep.subr.bf16.mxu0 0
    %2330 = vmatpush1.bf16.msra.mxu0 0
    %2331 = vmatprep.mubr.bf16.mxu0 0
    %2332 = vmatmul.mubr.bf16.gmra.mrb[0].mxu0 %v2297
    %v2333 = vpop.f32.mrb[0].mxu0
    %v2334 = vadd.f32 %v2244, %v2333
    %v2335 = vpop.f32.mrb[0].mxu0
    %v2336 = vadd.f32 %v2248, %v2335
    %v2337 = vpop.f32.mrb[0].mxu0
    %v2338 = vpop.f32.mrb[0].mxu0
    %2339 = vdwg.mxu0
    %2340 = vmatprep.subr.bf16.mxu0 %v2160
    %2341 = vmatpush1.bf16.msra.mxu0 %v2159
    %2342 = vmatprep.subr.bf16.mxu0 %v2170
    %2343 = vmatpush1.bf16.msra.mxu0 %v2169
    %2344 = vmatprep.subr.bf16.mxu0 %v2180
    %2345 = vmatpush1.bf16.msra.mxu0 %v2179
    %2346 = vmatprep.subr.bf16.mxu0 %v2190
    %2347 = vmatpush1.bf16.msra.mxu0 %v2189
    %2348 = vmatprep.subr.bf16.mxu0 %v2200
    %2349 = vmatpush1.bf16.msra.mxu0 %v2199
    %2350 = vmatprep.subr.bf16.mxu0 %v2210
    %2351 = vmatpush1.bf16.msra.mxu0 %v2209
    %2352 = vmatprep.subr.bf16.mxu0 %v2220
    %2353 = vmatpush1.bf16.msra.mxu0 %v2219
    %2354 = vmatprep.subr.bf16.mxu0 %v2230
    %2355 = vmatpush1.bf16.msra.mxu0 %v2229
    %2356 = vmatprep.subr.bf16.mxu0 0
    %2357 = vmatpush1.bf16.msra.mxu0 0
    %2358 = vmatprep.subr.bf16.mxu0 0
    %2359 = vmatpush1.bf16.msra.mxu0 0
    %2360 = vmatprep.subr.bf16.mxu0 0
    %2361 = vmatpush1.bf16.msra.mxu0 0
    %2362 = vmatprep.subr.bf16.mxu0 0
    %2363 = vmatpush1.bf16.msra.mxu0 0
    %2364 = vmatprep.subr.bf16.mxu0 0
    %2365 = vmatpush1.bf16.msra.mxu0 0
    %2366 = vmatprep.subr.bf16.mxu0 0
    %2367 = vmatpush1.bf16.msra.mxu0 0
    %2368 = vmatprep.subr.bf16.mxu0 0
    %2369 = vmatpush1.bf16.msra.mxu0 0
    %2370 = vmatprep.subr.bf16.mxu0 0
    %2371 = vmatpush1.bf16.msra.mxu0 0
    %2372 = vmatprep.mubr.bf16.mxu0 0
    %2373 = vmatmul.mubr.bf16.gmra.mrb[0].mxu0 %v2297
    %v2374 = vpop.f32.mrb[0].mxu0
    %v2375 = vadd.f32 %v2252, %v2374
    %v2376 = vpop.f32.mrb[0].mxu0
    %v2377 = vadd.f32 %v2256, %v2376
    %v2378 = vpop.f32.mrb[0].mxu0
    %v2379 = vpop.f32.mrb[0].mxu0
    %2380 = vdwg.mxu0
    %2381 = vmatprep.subr.bf16.mxu0 %v2162
    %2382 = vmatpush1.bf16.msra.mxu0 %v2161
    %2383 = vmatprep.subr.bf16.mxu0 %v2172
    %2384 = vmatpush1.bf16.msra.mxu0 %v2171
    %2385 = vmatprep.subr.bf16.mxu0 %v2182
    %2386 = vmatpush1.bf16.msra.mxu0 %v2181
    %2387 = vmatprep.subr.bf16.mxu0 %v2192
    %2388 = vmatpush1.bf16.msra.mxu0 %v2191
    %2389 = vmatprep.subr.bf16.mxu0 %v2202
    %2390 = vmatpush1.bf16.msra.mxu0 %v2201
    %2391 = vmatprep.subr.bf16.mxu0 %v2212
    %2392 = vmatpush1.bf16.msra.mxu0 %v2211
    %2393 = vmatprep.subr.bf16.mxu0 %v2222
    %2394 = vmatpush1.bf16.msra.mxu0 %v2221
    %2395 = vmatprep.subr.bf16.mxu0 %v2232
    %2396 = vmatpush1.bf16.msra.mxu0 %v2231
    %2397 = vmatprep.subr.bf16.mxu0 0
    %2398 = vmatpush1.bf16.msra.mxu0 0
    %2399 = vmatprep.subr.bf16.mxu0 0
    %2400 = vmatpush1.bf16.msra.mxu0 0
    %2401 = vmatprep.subr.bf16.mxu0 0
    %2402 = vmatpush1.bf16.msra.mxu0 0
    %2403 = vmatprep.subr.bf16.mxu0 0
    %2404 = vmatpush1.bf16.msra.mxu0 0
    %2405 = vmatprep.subr.bf16.mxu0 0
    %2406 = vmatpush1.bf16.msra.mxu0 0
    %2407 = vmatprep.subr.bf16.mxu0 0
    %2408 = vmatpush1.bf16.msra.mxu0 0
    %2409 = vmatprep.subr.bf16.mxu0 0
    %2410 = vmatpush1.bf16.msra.mxu0 0
    %2411 = vmatprep.subr.bf16.mxu0 0
    %2412 = vmatpush1.bf16.msra.mxu0 0
    %2413 = vmatprep.mubr.bf16.mxu0 0
    %2414 = vmatmul.mubr.bf16.gmra.mrb[0].mxu0 %v2297
    %v2415 = vpop.f32.mrb[0].mxu0
    %v2416 = vadd.f32 %v2260, %v2415
    %v2417 = vpop.f32.mrb[0].mxu0
    %v2418 = vadd.f32 %v2264, %v2417
    %v2419 = vpop.f32.mrb[0].mxu0
    %v2420 = vpop.f32.mrb[0].mxu0
    %2421 = vdwg.mxu0
    %2422 = vmatprep.subr.bf16.mxu0 %v2164
    %2423 = vmatpush1.bf16.msra.mxu0 %v2163
    %2424 = vmatprep.subr.bf16.mxu0 %v2174
    %2425 = vmatpush1.bf16.msra.mxu0 %v2173
    %2426 = vmatprep.subr.bf16.mxu0 %v2184
    %2427 = vmatpush1.bf16.msra.mxu0 %v2183
    %2428 = vmatprep.subr.bf16.mxu0 %v2194
    %2429 = vmatpush1.bf16.msra.mxu0 %v2193
    %2430 = vmatprep.subr.bf16.mxu0 %v2204
    %2431 = vmatpush1.bf16.msra.mxu0 %v2203
    %2432 = vmatprep.subr.bf16.mxu0 %v2214
    %2433 = vmatpush1.bf16.msra.mxu0 %v2213
    %2434 = vmatprep.subr.bf16.mxu0 %v2224
    %2435 = vmatpush1.bf16.msra.mxu0 %v2223
    %2436 = vmatprep.subr.bf16.mxu0 %v2234
    %2437 = vmatpush1.bf16.msra.mxu0 %v2233
    %2438 = vmatprep.subr.bf16.mxu0 0
    %2439 = vmatpush1.bf16.msra.mxu0 0
    %2440 = vmatprep.subr.bf16.mxu0 0
    %2441 = vmatpush1.bf16.msra.mxu0 0
    %2442 = vmatprep.subr.bf16.mxu0 0
    %2443 = vmatpush1.bf16.msra.mxu0 0
    %2444 = vmatprep.subr.bf16.mxu0 0
    %2445 = vmatpush1.bf16.msra.mxu0 0
    %2446 = vmatprep.subr.bf16.mxu0 0
    %2447 = vmatpush1.bf16.msra.mxu0 0
    %2448 = vmatprep.subr.bf16.mxu0 0
    %2449 = vmatpush1.bf16.msra.mxu0 0
    %2450 = vmatprep.subr.bf16.mxu0 0
    %2451 = vmatpush1.bf16.msra.mxu0 0
    %2452 = vmatprep.subr.bf16.mxu0 0
    %2453 = vmatpush1.bf16.msra.mxu0 0
    %2454 = vmatprep.mubr.bf16.mxu0 0
    %2455 = vmatmul.mubr.bf16.gmra.mrb[0].mxu0 %v2297
    %v2456 = vpop.f32.mrb[0].mxu0
    %v2457 = vadd.f32 %v2268, %v2456
    %v2458 = vpop.f32.mrb[0].mxu0
    %v2459 = vadd.f32 %v2272, %v2458
    %v2460 = vpop.f32.mrb[0].mxu0
    %v2461 = vpop.f32.mrb[0].mxu0
    %2462 = vdwg.mxu0
    %2463 = vmatprep.subr.bf16.mxu0 %v2166
    %2464 = vmatpush1.bf16.msra.mxu0 %v2165
    %2465 = vmatprep.subr.bf16.mxu0 %v2176
    %2466 = vmatpush1.bf16.msra.mxu0 %v2175
    %2467 = vmatprep.subr.bf16.mxu0 %v2186
    %2468 = vmatpush1.bf16.msra.mxu0 %v2185
    %2469 = vmatprep.subr.bf16.mxu0 %v2196
    %2470 = vmatpush1.bf16.msra.mxu0 %v2195
    %2471 = vmatprep.subr.bf16.mxu0 %v2206
    %2472 = vmatpush1.bf16.msra.mxu0 %v2205
    %2473 = vmatprep.subr.bf16.mxu0 %v2216
    %2474 = vmatpush1.bf16.msra.mxu0 %v2215
    %2475 = vmatprep.subr.bf16.mxu0 %v2226
    %2476 = vmatpush1.bf16.msra.mxu0 %v2225
    %2477 = vmatprep.subr.bf16.mxu0 %v2236
    %2478 = vmatpush1.bf16.msra.mxu0 %v2235
    %2479 = vmatprep.subr.bf16.mxu0 0
    %2480 = vmatpush1.bf16.msra.mxu0 0
    %2481 = vmatprep.subr.bf16.mxu0 0
    %2482 = vmatpush1.bf16.msra.mxu0 0
    %2483 = vmatprep.subr.bf16.mxu0 0
    %2484 = vmatpush1.bf16.msra.mxu0 0
    %2485 = vmatprep.subr.bf16.mxu0 0
    %2486 = vmatpush1.bf16.msra.mxu0 0
    %2487 = vmatprep.subr.bf16.mxu0 0
    %2488 = vmatpush1.bf16.msra.mxu0 0
    %2489 = vmatprep.subr.bf16.mxu0 0
    %2490 = vmatpush1.bf16.msra.mxu0 0
    %2491 = vmatprep.subr.bf16.mxu0 0
    %2492 = vmatpush1.bf16.msra.mxu0 0
    %2493 = vmatprep.subr.bf16.mxu0 0
    %2494 = vmatpush1.bf16.msra.mxu0 0
    %2495 = vmatprep.mubr.bf16.mxu0 0
    %2496 = vmatmul.mubr.bf16.gmra.mrb[0].mxu0 %v2297
    %v2497 = vpop.f32.mrb[0].mxu0
    %v2498 = vadd.f32 %v2276, %v2497
    %v2499 = vpop.f32.mrb[0].mxu0
    %v2500 = vadd.f32 %v2280, %v2499
    %v2501 = vpop.f32.mrb[0].mxu0
    %v2502 = vpop.f32.mrb[0].mxu0
    %2503 = vdwg.mxu0
    %v2504 = vxor.u32 %v2334, 2147483648
    %v2505 = vxor.u32 %v2336, 2147483648
    %v2506 = vxor.u32 %v2375, 2147483648
    %v2507 = vxor.u32 %v2377, 2147483648
    %v2508 = vxor.u32 %v2416, 2147483648
    %v2509 = vxor.u32 %v2418, 2147483648
    %v2510 = vxor.u32 %v2457, 2147483648
    %v2511 = vxor.u32 %v2459, 2147483648
    %v2512 = vxor.u32 %v2498, 2147483648
    %v2513 = vxor.u32 %v2500, 2147483648
    %v2514 = vmul.f32 %v2504, 1.442695
    %v2515 = vpow.pop %v2514
    %v2516 = vmul.f32 %v2505, 1.442695
    %v2517 = vpow.pop %v2516
    %v2518 = vmul.f32 %v2506, 1.442695
    %v2519 = vpow.pop %v2518
    %v2520 = vmul.f32 %v2507, 1.442695
    %v2521 = vpow.pop %v2520
    %v2522 = vmul.f32 %v2508, 1.442695
    %v2523 = vpow.pop %v2522
    %v2524 = vmul.f32 %v2509, 1.442695
    %v2525 = vpow.pop %v2524
    %v2526 = vmul.f32 %v2510, 1.442695
    %v2527 = vpow.pop %v2526
    %v2528 = vmul.f32 %v2511, 1.442695
    %v2529 = vpow.pop %v2528
    %v2530 = vmul.f32 %v2512, 1.442695
    %v2531 = vpow.pop %v2530
    %v2532 = vmul.f32 %v2513, 1.442695
    %v2533 = vpow.pop %v2532
    %v2534 = vadd.f32 %v2515, 1.0
    %v2535 = vadd.f32 %v2517, 1.0
    %v2536 = vadd.f32 %v2519, 1.0
    %v2537 = vadd.f32 %v2521, 1.0
    %v2538 = vadd.f32 %v2523, 1.0
    %v2539 = vadd.f32 %v2525, 1.0
    %v2540 = vadd.f32 %v2527, 1.0
    %v2541 = vadd.f32 %v2529, 1.0
    %v2542 = vadd.f32 %v2531, 1.0
    %v2543 = vadd.f32 %v2533, 1.0
    %v2544 = vrcp.pop %v2534
    %v2545 = vmul.f32 1.0, %v2544
    %v2546 = vrcp.pop %v2535
    %v2547 = vmul.f32 1.0, %v2546
    %v2548 = vrcp.pop %v2536
    %v2549 = vmul.f32 1.0, %v2548
    %v2550 = vrcp.pop %v2537
    %v2551 = vmul.f32 1.0, %v2550
    %v2552 = vrcp.pop %v2538
    %v2553 = vmul.f32 1.0, %v2552
    %v2554 = vrcp.pop %v2539
    %v2555 = vmul.f32 1.0, %v2554
    %v2556 = vrcp.pop %v2540
    %v2557 = vmul.f32 1.0, %v2556
    %v2558 = vrcp.pop %v2541
    %v2559 = vmul.f32 1.0, %v2558
    %v2560 = vrcp.pop %v2542
    %v2561 = vmul.f32 1.0, %v2560
    %v2562 = vrcp.pop %v2543
    %v2563 = vmul.f32 1.0, %v2562
    %v2564 = vmul.f32 %v2334, %v2545
    %v2565 = vmul.f32 %v2336, %v2547
    %v2566 = vmul.f32 %v2375, %v2549
    %v2567 = vmul.f32 %v2377, %v2551
    %v2568 = vmul.f32 %v2416, %v2553
    %v2569 = vmul.f32 %v2418, %v2555
    %v2570 = vmul.f32 %v2457, %v2557
    %v2571 = vmul.f32 %v2459, %v2559
    %v2572 = vmul.f32 %v2498, %v2561
    %v2573 = vmul.f32 %v2500, %v2563
    %s2574 = smul.u32 1280, 1
    %s2575 = sshll.u32 %s2574, 4
    %2576 = dma.done %s712, %s2575
    %v2577 = vld [vmem:[#allocation4] sm:$0xff]
    %v2578 = vld [vmem:[#allocation4 + $0x8] sm:$0xff]
    %v2579 = vld [vmem:[#allocation4 + $0x10] sm:$0xff]
    %v2580 = vld [vmem:[#allocation4 + $0x18] sm:$0xff]
    %v2581 = vld [vmem:[#allocation4 + $0x20] sm:$0xff]
    %v2582 = vld [vmem:[#allocation4 + $0x28] sm:$0xff]
    %v2583 = vld [vmem:[#allocation4 + $0x30] sm:$0xff]
    %v2584 = vld [vmem:[#allocation4 + $0x38] sm:$0xff]
    %v2585 = vld [vmem:[#allocation4 + $0x40] sm:$0xff]
    %v2586 = vld [vmem:[#allocation4 + $0x48] sm:$0xff]
    %v2587 = vld [vmem:[#allocation4 + $0x50] sm:$0xff]
    %v2588 = vld [vmem:[#allocation4 + $0x58] sm:$0xff]
    %v2589 = vld [vmem:[#allocation4 + $0x60] sm:$0xff]
    %v2590 = vld [vmem:[#allocation4 + $0x68] sm:$0xff]
    %v2591 = vld [vmem:[#allocation4 + $0x70] sm:$0xff]
    %v2592 = vld [vmem:[#allocation4 + $0x78] sm:$0xff]
    %v2593 = vld [vmem:[#allocation4 + $0x80] sm:$0xff]
    %v2594 = vld [vmem:[#allocation4 + $0x88] sm:$0xff]
    %v2595 = vld [vmem:[#allocation4 + $0x90] sm:$0xff]
    %v2596 = vld [vmem:[#allocation4 + $0x98] sm:$0xff]
    %v2597 = vld [vmem:[#allocation4 + $0xa0] sm:$0xff]
    %v2598 = vld [vmem:[#allocation4 + $0xa8] sm:$0xff]
    %v2599 = vld [vmem:[#allocation4 + $0xb0] sm:$0xff]
    %v2600 = vld [vmem:[#allocation4 + $0xb8] sm:$0xff]
    %v2601 = vld [vmem:[#allocation4 + $0xc0] sm:$0xff]
    %v2602 = vld [vmem:[#allocation4 + $0xc8] sm:$0xff]
    %v2603 = vld [vmem:[#allocation4 + $0xd0] sm:$0xff]
    %v2604 = vld [vmem:[#allocation4 + $0xd8] sm:$0xff]
    %v2605 = vld [vmem:[#allocation4 + $0xe0] sm:$0xff]
    %v2606 = vld [vmem:[#allocation4 + $0xe8] sm:$0xff]
    %v2607 = vld [vmem:[#allocation4 + $0xf0] sm:$0xff]
    %v2608 = vld [vmem:[#allocation4 + $0xf8] sm:$0xff]
    %v2609 = vld [vmem:[#allocation4 + $0x100] sm:$0xff]
    %v2610 = vld [vmem:[#allocation4 + $0x108] sm:$0xff]
    %v2611 = vld [vmem:[#allocation4 + $0x110] sm:$0xff]
    %v2612 = vld [vmem:[#allocation4 + $0x118] sm:$0xff]
    %v2613 = vld [vmem:[#allocation4 + $0x120] sm:$0xff]
    %v2614 = vld [vmem:[#allocation4 + $0x128] sm:$0xff]
    %v2615 = vld [vmem:[#allocation4 + $0x130] sm:$0xff]
    %v2616 = vld [vmem:[#allocation4 + $0x138] sm:$0xff]
    %v2617 = vld [vmem:[#allocation4 + $0x140] sm:$0xff]
    %v2618 = vld [vmem:[#allocation4 + $0x148] sm:$0xff]
    %v2619 = vld [vmem:[#allocation4 + $0x150] sm:$0xff]
    %v2620 = vld [vmem:[#allocation4 + $0x158] sm:$0xff]
    %v2621 = vld [vmem:[#allocation4 + $0x160] sm:$0xff]
    %v2622 = vld [vmem:[#allocation4 + $0x168] sm:$0xff]
    %v2623 = vld [vmem:[#allocation4 + $0x170] sm:$0xff]
    %v2624 = vld [vmem:[#allocation4 + $0x178] sm:$0xff]
    %v2625 = vld [vmem:[#allocation4 + $0x180] sm:$0xff]
    %v2626 = vld [vmem:[#allocation4 + $0x188] sm:$0xff]
    %v2627 = vld [vmem:[#allocation4 + $0x190] sm:$0xff]
    %v2628 = vld [vmem:[#allocation4 + $0x198] sm:$0xff]
    %v2629 = vld [vmem:[#allocation4 + $0x1a0] sm:$0xff]
    %v2630 = vld [vmem:[#allocation4 + $0x1a8] sm:$0xff]
    %v2631 = vld [vmem:[#allocation4 + $0x1b0] sm:$0xff]
    %v2632 = vld [vmem:[#allocation4 + $0x1b8] sm:$0xff]
    %v2633 = vld [vmem:[#allocation4 + $0x1c0] sm:$0xff]
    %v2634 = vld [vmem:[#allocation4 + $0x1c8] sm:$0xff]
    %v2635 = vld [vmem:[#allocation4 + $0x1d0] sm:$0xff]
    %v2636 = vld [vmem:[#allocation4 + $0x1d8] sm:$0xff]
    %v2637 = vld [vmem:[#allocation4 + $0x1e0] sm:$0xff]
    %v2638 = vld [vmem:[#allocation4 + $0x1e8] sm:$0xff]
    %v2639 = vld [vmem:[#allocation4 + $0x1f0] sm:$0xff]
    %v2640 = vld [vmem:[#allocation4 + $0x1f8] sm:$0xff]
    %v2641 = vld [vmem:[#allocation4 + $0x200] sm:$0xff]
    %v2642 = vld [vmem:[#allocation4 + $0x208] sm:$0xff]
    %v2643 = vld [vmem:[#allocation4 + $0x210] sm:$0xff]
    %v2644 = vld [vmem:[#allocation4 + $0x218] sm:$0xff]
    %v2645 = vld [vmem:[#allocation4 + $0x220] sm:$0xff]
    %v2646 = vld [vmem:[#allocation4 + $0x228] sm:$0xff]
    %v2647 = vld [vmem:[#allocation4 + $0x230] sm:$0xff]
    %v2648 = vld [vmem:[#allocation4 + $0x238] sm:$0xff]
    %v2649 = vld [vmem:[#allocation4 + $0x240] sm:$0xff]
    %v2650 = vld [vmem:[#allocation4 + $0x248] sm:$0xff]
    %v2651 = vld [vmem:[#allocation4 + $0x250] sm:$0xff]
    %v2652 = vld [vmem:[#allocation4 + $0x258] sm:$0xff]
    %v2653 = vld [vmem:[#allocation4 + $0x260] sm:$0xff]
    %v2654 = vld [vmem:[#allocation4 + $0x268] sm:$0xff]
    %v2655 = vld [vmem:[#allocation4 + $0x270] sm:$0xff]
    %v2656 = vld [vmem:[#allocation4 + $0x278] sm:$0xff]
    %v2657 = vld [vmem:[#allocation4 + $0x280] sm:$0xff]
    %v2658 = vld [vmem:[#allocation4 + $0x288] sm:$0xff]
    %v2659 = vld [vmem:[#allocation4 + $0x290] sm:$0xff]
    %v2660 = vld [vmem:[#allocation4 + $0x298] sm:$0xff]
    %v2661 = vld [vmem:[#allocation4 + $0x2a0] sm:$0xff]
    %v2662 = vld [vmem:[#allocation4 + $0x2a8] sm:$0xff]
    %v2663 = vld [vmem:[#allocation4 + $0x2b0] sm:$0xff]
    %v2664 = vld [vmem:[#allocation4 + $0x2b8] sm:$0xff]
    %v2665 = vld [vmem:[#allocation4 + $0x2c0] sm:$0xff]
    %v2666 = vld [vmem:[#allocation4 + $0x2c8] sm:$0xff]
    %v2667 = vld [vmem:[#allocation4 + $0x2d0] sm:$0xff]
    %v2668 = vld [vmem:[#allocation4 + $0x2d8] sm:$0xff]
    %v2669 = vld [vmem:[#allocation4 + $0x2e0] sm:$0xff]
    %v2670 = vld [vmem:[#allocation4 + $0x2e8] sm:$0xff]
    %v2671 = vld [vmem:[#allocation4 + $0x2f0] sm:$0xff]
    %v2672 = vld [vmem:[#allocation4 + $0x2f8] sm:$0xff]
    %v2673 = vld [vmem:[#allocation4 + $0x300] sm:$0xff]
    %v2674 = vld [vmem:[#allocation4 + $0x308] sm:$0xff]
    %v2675 = vld [vmem:[#allocation4 + $0x310] sm:$0xff]
    %v2676 = vld [vmem:[#allocation4 + $0x318] sm:$0xff]
    %v2677 = vld [vmem:[#allocation4 + $0x320] sm:$0xff]
    %v2678 = vld [vmem:[#allocation4 + $0x328] sm:$0xff]
    %v2679 = vld [vmem:[#allocation4 + $0x330] sm:$0xff]
    %v2680 = vld [vmem:[#allocation4 + $0x338] sm:$0xff]
    %v2681 = vld [vmem:[#allocation4 + $0x340] sm:$0xff]
    %v2682 = vld [vmem:[#allocation4 + $0x348] sm:$0xff]
    %v2683 = vld [vmem:[#allocation4 + $0x350] sm:$0xff]
    %v2684 = vld [vmem:[#allocation4 + $0x358] sm:$0xff]
    %v2685 = vld [vmem:[#allocation4 + $0x360] sm:$0xff]
    %v2686 = vld [vmem:[#allocation4 + $0x368] sm:$0xff]
    %v2687 = vld [vmem:[#allocation4 + $0x370] sm:$0xff]
    %v2688 = vld [vmem:[#allocation4 + $0x378] sm:$0xff]
    %v2689 = vld [vmem:[#allocation4 + $0x380] sm:$0xff]
    %v2690 = vld [vmem:[#allocation4 + $0x388] sm:$0xff]
    %v2691 = vld [vmem:[#allocation4 + $0x390] sm:$0xff]
    %v2692 = vld [vmem:[#allocation4 + $0x398] sm:$0xff]
    %v2693 = vld [vmem:[#allocation4 + $0x3a0] sm:$0xff]
    %v2694 = vld [vmem:[#allocation4 + $0x3a8] sm:$0xff]
    %v2695 = vld [vmem:[#allocation4 + $0x3b0] sm:$0xff]
    %v2696 = vld [vmem:[#allocation4 + $0x3b8] sm:$0xff]
    %v2697 = vld [vmem:[#allocation4 + $0x3c0] sm:$0xff]
    %v2698 = vld [vmem:[#allocation4 + $0x3c8] sm:$0xff]
    %v2699 = vld [vmem:[#allocation4 + $0x3d0] sm:$0xff]
    %v2700 = vld [vmem:[#allocation4 + $0x3d8] sm:$0xff]
    %v2701 = vld [vmem:[#allocation4 + $0x3e0] sm:$0xff]
    %v2702 = vld [vmem:[#allocation4 + $0x3e8] sm:$0xff]
    %v2703 = vld [vmem:[#allocation4 + $0x3f0] sm:$0xff]
    %v2704 = vld [vmem:[#allocation4 + $0x3f8] sm:$0xff]
    %v2705 = vld [vmem:[#allocation4 + $0x400] sm:$0xff]
    %v2706 = vld [vmem:[#allocation4 + $0x408] sm:$0xff]
    %v2707 = vld [vmem:[#allocation4 + $0x410] sm:$0xff]
    %v2708 = vld [vmem:[#allocation4 + $0x418] sm:$0xff]
    %v2709 = vld [vmem:[#allocation4 + $0x420] sm:$0xff]
    %v2710 = vld [vmem:[#allocation4 + $0x428] sm:$0xff]
    %v2711 = vld [vmem:[#allocation4 + $0x430] sm:$0xff]
    %v2712 = vld [vmem:[#allocation4 + $0x438] sm:$0xff]
    %v2713 = vld [vmem:[#allocation4 + $0x440] sm:$0xff]
    %v2714 = vld [vmem:[#allocation4 + $0x448] sm:$0xff]
    %v2715 = vld [vmem:[#allocation4 + $0x450] sm:$0xff]
    %v2716 = vld [vmem:[#allocation4 + $0x458] sm:$0xff]
    %v2717 = vld [vmem:[#allocation4 + $0x460] sm:$0xff]
    %v2718 = vld [vmem:[#allocation4 + $0x468] sm:$0xff]
    %v2719 = vld [vmem:[#allocation4 + $0x470] sm:$0xff]
    %v2720 = vld [vmem:[#allocation4 + $0x478] sm:$0xff]
    %v2721 = vld [vmem:[#allocation4 + $0x480] sm:$0xff]
    %v2722 = vld [vmem:[#allocation4 + $0x488] sm:$0xff]
    %v2723 = vld [vmem:[#allocation4 + $0x490] sm:$0xff]
    %v2724 = vld [vmem:[#allocation4 + $0x498] sm:$0xff]
    %v2725 = vld [vmem:[#allocation4 + $0x4a0] sm:$0xff]
    %v2726 = vld [vmem:[#allocation4 + $0x4a8] sm:$0xff]
    %v2727 = vld [vmem:[#allocation4 + $0x4b0] sm:$0xff]
    %v2728 = vld [vmem:[#allocation4 + $0x4b8] sm:$0xff]
    %v2729 = vld [vmem:[#allocation4 + $0x4c0] sm:$0xff]
    %v2730 = vld [vmem:[#allocation4 + $0x4c8] sm:$0xff]
    %v2731 = vld [vmem:[#allocation4 + $0x4d0] sm:$0xff]
    %v2732 = vld [vmem:[#allocation4 + $0x4d8] sm:$0xff]
    %v2733 = vld [vmem:[#allocation4 + $0x4e0] sm:$0xff]
    %v2734 = vld [vmem:[#allocation4 + $0x4e8] sm:$0xff]
    %v2735 = vld [vmem:[#allocation4 + $0x4f0] sm:$0xff]
    %v2736 = vld [vmem:[#allocation4 + $0x4f8] sm:$0xff]
    %v2737 = vld [vmem:[%s6] sm:$0x1]
    %v2739 = vlaneseq
    %v2740 = vshrl.u32 %v2739, 7
    %v2741 = vsub.s32 0, %v2740
    %v2742 = vrot.slane %v2737, %v2741
    %2744 = vmatprep.subr.mxu0 0.0
    %2745 = vmatpush1.msra.mxu0 %v2577
    %2746 = vmatprep.subr.mxu0 0.0
    %2747 = vmatpush1.msra.mxu0 %v2578
    %2748 = vmatprep.subr.mxu0 0.0
    %2749 = vmatpush1.msra.mxu0 %v2579
    %2750 = vmatprep.subr.mxu0 0.0
    %2751 = vmatpush1.msra.mxu0 %v2580
    %2752 = vmatprep.subr.mxu0 0.0
    %2753 = vmatpush1.msra.mxu0 %v2581
    %2754 = vmatprep.subr.mxu0 0.0
    %2755 = vmatpush1.msra.mxu0 %v2582
    %2756 = vmatprep.subr.mxu0 0.0
    %2757 = vmatpush1.msra.mxu0 %v2583
    %2758 = vmatprep.subr.mxu0 0.0
    %2759 = vmatpush1.msra.mxu0 %v2584
    %2760 = vmatprep.subr.mxu0 0.0
    %2761 = vmatpush1.msra.mxu0 %v2585
    %2762 = vmatprep.subr.mxu0 0.0
    %2763 = vmatpush1.msra.mxu0 %v2586
    %2764 = vmatprep.subr.mxu0 0.0
    %2765 = vmatpush1.msra.mxu0 %v2587
    %2766 = vmatprep.subr.mxu0 0.0
    %2767 = vmatpush1.msra.mxu0 %v2588
    %2768 = vmatprep.subr.mxu0 0.0
    %2769 = vmatpush1.msra.mxu0 %v2589
    %2770 = vmatprep.subr.mxu0 0.0
    %2771 = vmatpush1.msra.mxu0 %v2590
    %2772 = vmatprep.subr.mxu0 0.0
    %2773 = vmatpush1.msra.mxu0 %v2591
    %2774 = vmatprep.subr.mxu0 0.0
    %2775 = vmatpush1.msra.mxu0 %v2592
    %2776 = vmatprep.subr.mxu0 0.0
    %2777 = vmatpush1.msra.mxu0 %v2593
    %2778 = vmatprep.subr.mxu0 0.0
    %2779 = vmatpush1.msra.mxu0 %v2594
    %2780 = vmatprep.subr.mxu0 0.0
    %2781 = vmatpush1.msra.mxu0 %v2595
    %2782 = vmatprep.subr.mxu0 0.0
    %2783 = vmatpush1.msra.mxu0 %v2596
    %2784 = vmatprep.subr.mxu0 0.0
    %2785 = vmatpush1.msra.mxu0 %v2597
    %2786 = vmatprep.subr.mxu0 0.0
    %2787 = vmatpush1.msra.mxu0 %v2598
    %2788 = vmatprep.subr.mxu0 0.0
    %2789 = vmatpush1.msra.mxu0 %v2599
    %2790 = vmatprep.subr.mxu0 0.0
    %2791 = vmatpush1.msra.mxu0 %v2600
    %2792 = vmatprep.subr.mxu0 0.0
    %2793 = vmatpush1.msra.mxu0 %v2601
    %2794 = vmatprep.subr.mxu0 0.0
    %2795 = vmatpush1.msra.mxu0 %v2602
    %2796 = vmatprep.subr.mxu0 0.0
    %2797 = vmatpush1.msra.mxu0 %v2603
    %2798 = vmatprep.subr.mxu0 0.0
    %2799 = vmatpush1.msra.mxu0 %v2604
    %2800 = vmatprep.subr.mxu0 0.0
    %2801 = vmatpush1.msra.mxu0 %v2605
    %2802 = vmatprep.subr.mxu0 0.0
    %2803 = vmatpush1.msra.mxu0 %v2606
    %2804 = vmatprep.subr.mxu0 0.0
    %2805 = vmatpush1.msra.mxu0 %v2607
    %2806 = vmatprep.subr.mxu0 0.0
    %2807 = vmatpush1.msra.mxu0 %v2608
    %2808 = vmatprep.mubr.f32.mxu0 %v2565
    %2809 = vmatmul.mubr.f32.gmra.mrb[0].mxu0 %v2564
    %v2810 = vpop.f32.mrb[0].mxu0
    %v2811 = vadd.f32 %v2742, %v2810
    %v2812 = vpop.f32.mrb[0].mxu0
    %2813 = vdwg.mxu0
    %2814 = vmatprep.subr.mxu0 0.0
    %2815 = vmatpush1.msra.mxu0 %v2609
    %2816 = vmatprep.subr.mxu0 0.0
    %2817 = vmatpush1.msra.mxu0 %v2610
    %2818 = vmatprep.subr.mxu0 0.0
    %2819 = vmatpush1.msra.mxu0 %v2611
    %2820 = vmatprep.subr.mxu0 0.0
    %2821 = vmatpush1.msra.mxu0 %v2612
    %2822 = vmatprep.subr.mxu0 0.0
    %2823 = vmatpush1.msra.mxu0 %v2613
    %2824 = vmatprep.subr.mxu0 0.0
    %2825 = vmatpush1.msra.mxu0 %v2614
    %2826 = vmatprep.subr.mxu0 0.0
    %2827 = vmatpush1.msra.mxu0 %v2615
    %2828 = vmatprep.subr.mxu0 0.0
    %2829 = vmatpush1.msra.mxu0 %v2616
    %2830 = vmatprep.subr.mxu0 0.0
    %2831 = vmatpush1.msra.mxu0 %v2617
    %2832 = vmatprep.subr.mxu0 0.0
    %2833 = vmatpush1.msra.mxu0 %v2618
    %2834 = vmatprep.subr.mxu0 0.0
    %2835 = vmatpush1.msra.mxu0 %v2619
    %2836 = vmatprep.subr.mxu0 0.0
    %2837 = vmatpush1.msra.mxu0 %v2620
    %2838 = vmatprep.subr.mxu0 0.0
    %2839 = vmatpush1.msra.mxu0 %v2621
    %2840 = vmatprep.subr.mxu0 0.0
    %2841 = vmatpush1.msra.mxu0 %v2622
    %2842 = vmatprep.subr.mxu0 0.0
    %2843 = vmatpush1.msra.mxu0 %v2623
    %2844 = vmatprep.subr.mxu0 0.0
    %2845 = vmatpush1.msra.mxu0 %v2624
    %2846 = vmatprep.subr.mxu0 0.0
    %2847 = vmatpush1.msra.mxu0 %v2625
    %2848 = vmatprep.subr.mxu0 0.0
    %2849 = vmatpush1.msra.mxu0 %v2626
    %2850 = vmatprep.subr.mxu0 0.0
    %2851 = vmatpush1.msra.mxu0 %v2627
    %2852 = vmatprep.subr.mxu0 0.0
    %2853 = vmatpush1.msra.mxu0 %v2628
    %2854 = vmatprep.subr.mxu0 0.0
    %2855 = vmatpush1.msra.mxu0 %v2629
    %2856 = vmatprep.subr.mxu0 0.0
    %2857 = vmatpush1.msra.mxu0 %v2630
    %2858 = vmatprep.subr.mxu0 0.0
    %2859 = vmatpush1.msra.mxu0 %v2631
    %2860 = vmatprep.subr.mxu0 0.0
    %2861 = vmatpush1.msra.mxu0 %v2632
    %2862 = vmatprep.subr.mxu0 0.0
    %2863 = vmatpush1.msra.mxu0 %v2633
    %2864 = vmatprep.subr.mxu0 0.0
    %2865 = vmatpush1.msra.mxu0 %v2634
    %2866 = vmatprep.subr.mxu0 0.0
    %2867 = vmatpush1.msra.mxu0 %v2635
    %2868 = vmatprep.subr.mxu0 0.0
    %2869 = vmatpush1.msra.mxu0 %v2636
    %2870 = vmatprep.subr.mxu0 0.0
    %2871 = vmatpush1.msra.mxu0 %v2637
    %2872 = vmatprep.subr.mxu0 0.0
    %2873 = vmatpush1.msra.mxu0 %v2638
    %2874 = vmatprep.subr.mxu0 0.0
    %2875 = vmatpush1.msra.mxu0 %v2639
    %2876 = vmatprep.subr.mxu0 0.0
    %2877 = vmatpush1.msra.mxu0 %v2640
    %2878 = vmatprep.mubr.f32.mxu0 %v2567
    %2879 = vmatmul.mubr.f32.gmra.mrb[0].mxu0 %v2566
    %v2880 = vpop.f32.mrb[0].mxu0
    %v2881 = vadd.f32 %v2811, %v2880
    %v2882 = vpop.f32.mrb[0].mxu0
    %2883 = vdwg.mxu0
    %2884 = vmatprep.subr.mxu0 0.0
    %2885 = vmatpush1.msra.mxu0 %v2641
    %2886 = vmatprep.subr.mxu0 0.0
    %2887 = vmatpush1.msra.mxu0 %v2642
    %2888 = vmatprep.subr.mxu0 0.0
    %2889 = vmatpush1.msra.mxu0 %v2643
    %2890 = vmatprep.subr.mxu0 0.0
    %2891 = vmatpush1.msra.mxu0 %v2644
    %2892 = vmatprep.subr.mxu0 0.0
    %2893 = vmatpush1.msra.mxu0 %v2645
    %2894 = vmatprep.subr.mxu0 0.0
    %2895 = vmatpush1.msra.mxu0 %v2646
    %2896 = vmatprep.subr.mxu0 0.0
    %2897 = vmatpush1.msra.mxu0 %v2647
    %2898 = vmatprep.subr.mxu0 0.0
    %2899 = vmatpush1.msra.mxu0 %v2648
    %2900 = vmatprep.subr.mxu0 0.0
    %2901 = vmatpush1.msra.mxu0 %v2649
    %2902 = vmatprep.subr.mxu0 0.0
    %2903 = vmatpush1.msra.mxu0 %v2650
    %2904 = vmatprep.subr.mxu0 0.0
    %2905 = vmatpush1.msra.mxu0 %v2651
    %2906 = vmatprep.subr.mxu0 0.0
    %2907 = vmatpush1.msra.mxu0 %v2652
    %2908 = vmatprep.subr.mxu0 0.0
    %2909 = vmatpush1.msra.mxu0 %v2653
    %2910 = vmatprep.subr.mxu0 0.0
    %2911 = vmatpush1.msra.mxu0 %v2654
    %2912 = vmatprep.subr.mxu0 0.0
    %2913 = vmatpush1.msra.mxu0 %v2655
    %2914 = vmatprep.subr.mxu0 0.0
    %2915 = vmatpush1.msra.mxu0 %v2656
    %2916 = vmatprep.subr.mxu0 0.0
    %2917 = vmatpush1.msra.mxu0 %v2657
    %2918 = vmatprep.subr.mxu0 0.0
    %2919 = vmatpush1.msra.mxu0 %v2658
    %2920 = vmatprep.subr.mxu0 0.0
    %2921 = vmatpush1.msra.mxu0 %v2659
    %2922 = vmatprep.subr.mxu0 0.0
    %2923 = vmatpush1.msra.mxu0 %v2660
    %2924 = vmatprep.subr.mxu0 0.0
    %2925 = vmatpush1.msra.mxu0 %v2661
    %2926 = vmatprep.subr.mxu0 0.0
    %2927 = vmatpush1.msra.mxu0 %v2662
    %2928 = vmatprep.subr.mxu0 0.0
    %2929 = vmatpush1.msra.mxu0 %v2663
    %2930 = vmatprep.subr.mxu0 0.0
    %2931 = vmatpush1.msra.mxu0 %v2664
    %2932 = vmatprep.subr.mxu0 0.0
    %2933 = vmatpush1.msra.mxu0 %v2665
    %2934 = vmatprep.subr.mxu0 0.0
    %2935 = vmatpush1.msra.mxu0 %v2666
    %2936 = vmatprep.subr.mxu0 0.0
    %2937 = vmatpush1.msra.mxu0 %v2667
    %2938 = vmatprep.subr.mxu0 0.0
    %2939 = vmatpush1.msra.mxu0 %v2668
    %2940 = vmatprep.subr.mxu0 0.0
    %2941 = vmatpush1.msra.mxu0 %v2669
    %2942 = vmatprep.subr.mxu0 0.0
    %2943 = vmatpush1.msra.mxu0 %v2670
    %2944 = vmatprep.subr.mxu0 0.0
    %2945 = vmatpush1.msra.mxu0 %v2671
    %2946 = vmatprep.subr.mxu0 0.0
    %2947 = vmatpush1.msra.mxu0 %v2672
    %2948 = vmatprep.mubr.f32.mxu0 %v2569
    %2949 = vmatmul.mubr.f32.gmra.mrb[0].mxu0 %v2568
    %v2950 = vpop.f32.mrb[0].mxu0
    %v2951 = vadd.f32 %v2881, %v2950
    %v2952 = vpop.f32.mrb[0].mxu0
    %2953 = vdwg.mxu0
    %2954 = vmatprep.subr.mxu0 0.0
    %2955 = vmatpush1.msra.mxu0 %v2673
    %2956 = vmatprep.subr.mxu0 0.0
    %2957 = vmatpush1.msra.mxu0 %v2674
    %2958 = vmatprep.subr.mxu0 0.0
    %2959 = vmatpush1.msra.mxu0 %v2675
    %2960 = vmatprep.subr.mxu0 0.0
    %2961 = vmatpush1.msra.mxu0 %v2676
    %2962 = vmatprep.subr.mxu0 0.0
    %2963 = vmatpush1.msra.mxu0 %v2677
    %2964 = vmatprep.subr.mxu0 0.0
    %2965 = vmatpush1.msra.mxu0 %v2678
    %2966 = vmatprep.subr.mxu0 0.0
    %2967 = vmatpush1.msra.mxu0 %v2679
    %2968 = vmatprep.subr.mxu0 0.0
    %2969 = vmatpush1.msra.mxu0 %v2680
    %2970 = vmatprep.subr.mxu0 0.0
    %2971 = vmatpush1.msra.mxu0 %v2681
    %2972 = vmatprep.subr.mxu0 0.0
    %2973 = vmatpush1.msra.mxu0 %v2682
    %2974 = vmatprep.subr.mxu0 0.0
    %2975 = vmatpush1.msra.mxu0 %v2683
    %2976 = vmatprep.subr.mxu0 0.0
    %2977 = vmatpush1.msra.mxu0 %v2684
    %2978 = vmatprep.subr.mxu0 0.0
    %2979 = vmatpush1.msra.mxu0 %v2685
    %2980 = vmatprep.subr.mxu0 0.0
    %2981 = vmatpush1.msra.mxu0 %v2686
    %2982 = vmatprep.subr.mxu0 0.0
    %2983 = vmatpush1.msra.mxu0 %v2687
    %2984 = vmatprep.subr.mxu0 0.0
    %2985 = vmatpush1.msra.mxu0 %v2688
    %2986 = vmatprep.subr.mxu0 0.0
    %2987 = vmatpush1.msra.mxu0 %v2689
    %2988 = vmatprep.subr.mxu0 0.0
    %2989 = vmatpush1.msra.mxu0 %v2690
    %2990 = vmatprep.subr.mxu0 0.0
    %2991 = vmatpush1.msra.mxu0 %v2691
    %2992 = vmatprep.subr.mxu0 0.0
    %2993 = vmatpush1.msra.mxu0 %v2692
    %2994 = vmatprep.subr.mxu0 0.0
    %2995 = vmatpush1.msra.mxu0 %v2693
    %2996 = vmatprep.subr.mxu0 0.0
    %2997 = vmatpush1.msra.mxu0 %v2694
    %2998 = vmatprep.subr.mxu0 0.0
    %2999 = vmatpush1.msra.mxu0 %v2695
    %3000 = vmatprep.subr.mxu0 0.0
    %3001 = vmatpush1.msra.mxu0 %v2696
    %3002 = vmatprep.subr.mxu0 0.0
    %3003 = vmatpush1.msra.mxu0 %v2697
    %3004 = vmatprep.subr.mxu0 0.0
    %3005 = vmatpush1.msra.mxu0 %v2698
    %3006 = vmatprep.subr.mxu0 0.0
    %3007 = vmatpush1.msra.mxu0 %v2699
    %3008 = vmatprep.subr.mxu0 0.0
    %3009 = vmatpush1.msra.mxu0 %v2700
    %3010 = vmatprep.subr.mxu0 0.0
    %3011 = vmatpush1.msra.mxu0 %v2701
    %3012 = vmatprep.subr.mxu0 0.0
    %3013 = vmatpush1.msra.mxu0 %v2702
    %3014 = vmatprep.subr.mxu0 0.0
    %3015 = vmatpush1.msra.mxu0 %v2703
    %3016 = vmatprep.subr.mxu0 0.0
    %3017 = vmatpush1.msra.mxu0 %v2704
    %3018 = vmatprep.mubr.f32.mxu0 %v2571
    %3019 = vmatmul.mubr.f32.gmra.mrb[0].mxu0 %v2570
    %v3020 = vpop.f32.mrb[0].mxu0
    %v3021 = vadd.f32 %v2951, %v3020
    %v3022 = vpop.f32.mrb[0].mxu0
    %3023 = vdwg.mxu0
    %3024 = vmatprep.subr.mxu0 0.0
    %3025 = vmatpush1.msra.mxu0 %v2705
    %3026 = vmatprep.subr.mxu0 0.0
    %3027 = vmatpush1.msra.mxu0 %v2706
    %3028 = vmatprep.subr.mxu0 0.0
    %3029 = vmatpush1.msra.mxu0 %v2707
    %3030 = vmatprep.subr.mxu0 0.0
    %3031 = vmatpush1.msra.mxu0 %v2708
    %3032 = vmatprep.subr.mxu0 0.0
    %3033 = vmatpush1.msra.mxu0 %v2709
    %3034 = vmatprep.subr.mxu0 0.0
    %3035 = vmatpush1.msra.mxu0 %v2710
    %3036 = vmatprep.subr.mxu0 0.0
    %3037 = vmatpush1.msra.mxu0 %v2711
    %3038 = vmatprep.subr.mxu0 0.0
    %3039 = vmatpush1.msra.mxu0 %v2712
    %3040 = vmatprep.subr.mxu0 0.0
    %3041 = vmatpush1.msra.mxu0 %v2713
    %3042 = vmatprep.subr.mxu0 0.0
    %3043 = vmatpush1.msra.mxu0 %v2714
    %3044 = vmatprep.subr.mxu0 0.0
    %3045 = vmatpush1.msra.mxu0 %v2715
    %3046 = vmatprep.subr.mxu0 0.0
    %3047 = vmatpush1.msra.mxu0 %v2716
    %3048 = vmatprep.subr.mxu0 0.0
    %3049 = vmatpush1.msra.mxu0 %v2717
    %3050 = vmatprep.subr.mxu0 0.0
    %3051 = vmatpush1.msra.mxu0 %v2718
    %3052 = vmatprep.subr.mxu0 0.0
    %3053 = vmatpush1.msra.mxu0 %v2719
    %3054 = vmatprep.subr.mxu0 0.0
    %3055 = vmatpush1.msra.mxu0 %v2720
    %3056 = vmatprep.subr.mxu0 0.0
    %3057 = vmatpush1.msra.mxu0 %v2721
    %3058 = vmatprep.subr.mxu0 0.0
    %3059 = vmatpush1.msra.mxu0 %v2722
    %3060 = vmatprep.subr.mxu0 0.0
    %3061 = vmatpush1.msra.mxu0 %v2723
    %3062 = vmatprep.subr.mxu0 0.0
    %3063 = vmatpush1.msra.mxu0 %v2724
    %3064 = vmatprep.subr.mxu0 0.0
    %3065 = vmatpush1.msra.mxu0 %v2725
    %3066 = vmatprep.subr.mxu0 0.0
    %3067 = vmatpush1.msra.mxu0 %v2726
    %3068 = vmatprep.subr.mxu0 0.0
    %3069 = vmatpush1.msra.mxu0 %v2727
    %3070 = vmatprep.subr.mxu0 0.0
    %3071 = vmatpush1.msra.mxu0 %v2728
    %3072 = vmatprep.subr.mxu0 0.0
    %3073 = vmatpush1.msra.mxu0 %v2729
    %3074 = vmatprep.subr.mxu0 0.0
    %3075 = vmatpush1.msra.mxu0 %v2730
    %3076 = vmatprep.subr.mxu0 0.0
    %3077 = vmatpush1.msra.mxu0 %v2731
    %3078 = vmatprep.subr.mxu0 0.0
    %3079 = vmatpush1.msra.mxu0 %v2732
    %3080 = vmatprep.subr.mxu0 0.0
    %3081 = vmatpush1.msra.mxu0 %v2733
    %3082 = vmatprep.subr.mxu0 0.0
    %3083 = vmatpush1.msra.mxu0 %v2734
    %3084 = vmatprep.subr.mxu0 0.0
    %3085 = vmatpush1.msra.mxu0 %v2735
    %3086 = vmatprep.subr.mxu0 0.0
    %3087 = vmatpush1.msra.mxu0 %v2736
    %3088 = vmatprep.mubr.f32.mxu0 %v2573
    %3089 = vmatmul.mubr.f32.gmra.mrb[0].mxu0 %v2572
    %v3090 = vpop.f32.mrb[0].mxu0
    %v3091 = vadd.f32 %v3021, %v3090
    %v3092 = vpop.f32.mrb[0].mxu0
    %3093 = vdwg.mxu0
    %vm3094 = vcmask 58368
    %3095 = vst.msk [vmem:[#allocation6] sm:$0x3] %vm3094, %v3091
    // Predicated region
    $region93: #{eeg_classification_forward.1} parent=1 // pred_check
      _
    $region94: #{eeg_classification_forward.1} parent=1 // pred_check_branch
      %3097 = sbr.rel (0) target = $region96
    $region95: #{eeg_classification_forward.1} parent=1 // pred_region
      %s3099 = ssub.s32 32, 32
      %3100 = vsyncadd [#allocation7], %s3099
      %s3102 = sshll.u32 [#allocation6], 4
      %s3103 = int_to_ptr.vmem [resolvable:$true] %s3102
      %3105 = dma.vmem_to_hbm [thread:$0]  %s3103, 32, %s7, [#allocation7]
    $region96: #{eeg_classification_forward.1} parent=1 // pred_fallthru
      _
    // Predicated region
    $region97: #{eeg_classification_forward.1} parent=1 // pred_check
      _
    $region98: #{eeg_classification_forward.1} parent=1 // pred_check_branch
      %3107 = sbr.rel (0) target = $region100
    $region99: #{eeg_classification_forward.1} parent=1 // pred_region
      %3108 = dma.done [#allocation7], 32
    $region100: #{eeg_classification_forward.1} parent=1 // pred_fallthru
      _
    %3109 = vsyncpa [#allocation7], 1
  %3110 = vsyncmov [#allocation5]
  %s3111 = vpop.sfrf %3110
  %p3112 = scmp.eq.s32.totalorder %s3111, 0
  %p3113 = pneg %p3112
  %3115 = shalt.err (%p3113)
  %s3116 = scalar_lea.sflag [#allocation5], 1
  %3117 = vsyncmov %s3116
  %s3118 = vpop.sfrf %3117
  %p3119 = scmp.eq.s32.totalorder %s3118, 0
  %p3120 = pneg %p3119
  %3122 = shalt.err (%p3120)

</llo_original>
